<compile_context>
chip_gen: v7x
topology: tpu7x:2x2x1
jax: 0.10.0
libtpu: 0.0.40
codegen_flags: <defaults>
</compile_context>

<pallas_src>
import numpy as np
import jax
import jax.numpy as jnp
from jax import lax
from jax.experimental import pallas as pl
from jax.experimental.pallas import tpu as pltpu

# ----------------------------- model config ---------------------------------
CIN = 3            # input channels (NCHW input, PyTorch convention)
IMG = 32           # input spatial size
STEM_C = 16
C1 = 16            # block1 (depthwise-separable) output channels
MID2, C2 = 64, 24  # block2 (inverted residual, expand x4, stride 2)
MID3, C3 = 72, 24  # block3 (inverted residual, expand x3, stride 1)
HEAD_C = 64        # conv_head features
NUM_CLASSES = 10

H1 = W1 = IMG // 2     # 16 : stem output / block1 / block2 input
H2 = W2 = H1 // 2      # 8  : block2 / block3 output
M1 = H1 * W1           # 256 spatial positions per image @ 16x16
M2 = H2 * W2           # 64  spatial positions per image @ 8x8
CPAD = 128             # every channel axis is zero-padded to 128 lanes

# indices into the stacked weight / bias operands
(W_STEM, W_PW1, W_EXP2, W_SE2R, W_SE2E, W_PW2,
 W_EXP3, W_SE3R, W_SE3E, W_PW3, W_HEAD, W_CLS) = range(12)
(B_STEM, B_DW1, B_PW1, B_EXP2, B_DW2, B_SE2R, B_SE2E, B_PW2,
 B_EXP3, B_DW3, B_SE3R, B_SE3E, B_PW3, B_HEAD, B_CLS) = range(15)


# ----------------------------- activations (f32, VPU) -----------------------
def _hswish(x):
    return x * jnp.clip(x + 3.0, 0.0, 6.0) * (1.0 / 6.0)


def _hsig(x):
    return jnp.clip(x + 3.0, 0.0, 6.0) * (1.0 / 6.0)


def _relu(x):
    return jnp.maximum(x, 0.0)


def _identity(x):
    return x


# ----------------------------- fused Pallas kernel --------------------------
def _mbv3_kernel(patches_ref, w_ref, b_ref, dw_ref,
                 s1m_ref, s1p_ref, d2m_ref, d20_ref, d2p_ref,
                 s3m_ref, s3p_ref, out_ref):
    """Whole MobileNetV3 forward for one image (grid axis = batch)."""
    f32 = jnp.float32
    bf16 = jnp.bfloat16

    def mm(x, widx, bidx, act):
        # bf16 MXU matmul, f32 accumulate, bias + activation in f32.
        y = jnp.dot(x.astype(bf16), w_ref[widx], preferred_element_type=f32)
        return act(y + b_ref[bidx])

    def dw_s1(xflat, h, w, blk, bidx, act, s_minus, s_plus):
        # Depthwise 3x3, stride 1, pad 1.  Rows (H) shifted via leading-dim
        # concat/slice; columns (W) shifted by exact 0/1 matrices on the MXU.
        c = xflat.shape[-1]
        taps = dw_ref[blk]                                  # (9,1,128) f32
        x3 = xflat.reshape(h, w, c)
        zrow = jnp.zeros((1, w, c), f32)
        xp = jnp.concatenate([zrow, x3, zrow], axis=0)      # (h+2, w, c)
        z = [xp[kh:kh + h] for kh in range(3)]              # H taps (h, w, c)
        out = None
        for kw in range(3):
            g = (z[0] * taps[kw] + z[1] * taps[3 + kw]
                 + z[2] * taps[6 + kw]).reshape(h * w, c)
            if kw == 1:
                t = g                                        # centre column
            else:
                s = s_minus if kw == 0 else s_plus
                t = jnp.dot(s, g.astype(bf16), preferred_element_type=f32)
            out = t if out is None else out + t
        return act(out + b_ref[bidx])

    def dw_s2(xflat, blk, bidx, act):
        # Depthwise 3x3, stride 2, pad 1: 16x16 -> 8x8.  Row parity via a
        # leading-dim reshape; column shift + stride-2 down-sample folded into
        # one (64,128) selection matrix per kw.
        c = xflat.shape[-1]
        taps = dw_ref[blk]
        x3 = xflat.reshape(H1, W1, c)
        x4 = x3.reshape(H2, 2, W1, c)                       # (8,2,16,C)
        even, odd = x4[:, 0], x4[:, 1]                      # rows 2io / 2io+1
        zrow = jnp.zeros((1, W1, c), f32)
        z = [jnp.concatenate([zrow, odd[:H2 - 1]], axis=0),  # kh=0 -> 2io-1
             even,                                           # kh=1 -> 2io
             odd]                                            # kh=2 -> 2io+1
        mats = (d2m_ref[...], d20_ref[...], d2p_ref[...])
        out = None
        for kw in range(3):
            g = (z[0] * taps[kw] + z[1] * taps[3 + kw]
                 + z[2] * taps[6 + kw]).reshape(H2 * W1, c)  # (128, C)
            t = jnp.dot(mats[kw], g.astype(bf16), preferred_element_type=f32)
            out = t if out is None else out + t
        return act(out + b_ref[bidx])

    def se(x, wr, br, we, be):
        pooled = jnp.mean(x, axis=0, keepdims=True)          # (1, C)
        r = mm(pooled, wr, br, _relu)
        g = mm(r, we, be, _hsig)
        return x * g                                         # channel gate

    patches = patches_ref[...]                               # (256,128) bf16

    # stem: 3x3 s2 conv (im2col matmul, BN folded) + hard-swish
    x = mm(patches, W_STEM, B_STEM, _hswish)                 # 16x16, 16ch

    # block 1: depthwise-separable, k3 s1, relu, residual
    sc = x
    d = dw_s1(x, H1, W1, 0, B_DW1, _relu, s1m_ref[...], s1p_ref[...])
    x = mm(d, W_PW1, B_PW1, _identity) + sc

    # block 2: inverted residual, expand x4, k3 s2, relu, SE
    y = mm(x, W_EXP2, B_EXP2, _relu)                         # 16x16, 64ch
    d = dw_s2(y, 1, B_DW2, _relu)                            # 8x8, 64ch
    d = se(d, W_SE2R, B_SE2R, W_SE2E, B_SE2E)
    x = mm(d, W_PW2, B_PW2, _identity)                       # 8x8, 24ch

    # block 3: inverted residual, expand x3, k3 s1, hswish, SE, residual
    sc = x
    y = mm(x, W_EXP3, B_EXP3, _hswish)                       # 8x8, 72ch
    d = dw_s1(y, H2, W2, 2, B_DW3, _hswish, s3m_ref[...], s3p_ref[...])
    d = se(d, W_SE3R, B_SE3R, W_SE3E, B_SE3E)
    x = mm(d, W_PW3, B_PW3, _identity) + sc                  # 8x8, 24ch

    # head: global-avg-pool -> conv_head(1x1)+hswish -> classifier
    pooled = jnp.mean(x, axis=0, keepdims=True)              # (1,128)
    feat = mm(pooled, W_HEAD, B_HEAD, _hswish)
    logits = mm(feat, W_CLS, B_CLS, _identity)               # (1,128)
    # TODO(synk): F.dropout is skipped (drop_rate=0.0 / eval mode).

    out_ref[...] = jnp.broadcast_to(logits.reshape(1, 1, CPAD), out_ref.shape)


# ----------------------------- host-side helpers ----------------------------
def _w_shift_matrix(m, w, d):
    """(m,m) 0/1 matrix: (S @ g)[i*w+j] = g[i*w+j+d] iff 0 <= j+d < w."""
    r = np.arange(m)
    j = r % w
    valid = (j + d >= 0) & (j + d < w)
    s = (np.arange(m)[None, :] == (r + d)[:, None]) & valid[:, None]
    return jnp.asarray(s, jnp.bfloat16)


def _down_shift_matrix(ho, wo, w, d):
    """(ho*wo, ho*w): out[io,jo] = g[io, 2*jo+d] iff 0 <= 2*jo+d < w."""
    mo = np.arange(ho * wo)
    io, jo = mo // wo, mo % wo
    jsrc = 2 * jo + d
    valid = (jsrc >= 0) & (jsrc < w)
    s = (np.arange(ho * w)[None, :] == (io * w + jsrc)[:, None]) & valid[:, None]
    return jnp.asarray(s, jnp.bfloat16)


def _build_shift_matrices():
    return dict(
        s1m=_w_shift_matrix(M1, W1, -1), s1p=_w_shift_matrix(M1, W1, +1),
        d2m=_down_shift_matrix(H2, W2, W1, -1),
        d20=_down_shift_matrix(H2, W2, W1, 0),
        d2p=_down_shift_matrix(H2, W2, W1, +1),
        s3m=_w_shift_matrix(M2, W2, -1), s3p=_w_shift_matrix(M2, W2, +1),
    )


def _stem_patches(x_nchw):
    """im2col for the stride-2 stem conv (folds the NCHW->NHWC transpose)."""
    n = x_nchw.shape[0]
    x = jnp.transpose(x_nchw, (0, 2, 3, 1)).astype(jnp.float32)  # NHWC
    xp = jnp.pad(x, ((0, 0), (1, 1), (1, 1), (0, 0)))
    cols = []
    for kh in range(3):
        for kw in range(3):
            cols.append(lax.slice(xp, (0, kh, kw, 0),
                                  (n, kh + 2 * H1 - 1, kw + 2 * W1 - 1, CIN),
                                  (1, 2, 2, 1)))
    patches = jnp.concatenate(cols, axis=-1).reshape(n * M1, 9 * CIN)
    patches = jnp.pad(patches, ((0, 0), (0, CPAD - 9 * CIN)))
    return patches.astype(jnp.bfloat16)


def pack_params(p):
    """Pad every channel axis to 128 lanes, fold into stacked kernel operands."""
    def pad_w(w):
        k, n = w.shape
        return jnp.pad(w, ((0, CPAD - k), (0, CPAD - n))).astype(jnp.bfloat16)

    def pad_b(b):
        return jnp.pad(b, (0, CPAD - b.shape[0]))[None, :].astype(jnp.float32)

    def pad_dw(w):
        c = w.shape[-1]
        return jnp.pad(w.reshape(9, c), ((0, 0), (0, CPAD - c)))[:, None, :]

    w_stack = jnp.stack([
        pad_w(p['stem']['w'].reshape(9 * CIN, STEM_C)),
        pad_w(p['b1']['pw_w']),
        pad_w(p['b2']['exp_w']), pad_w(p['b2']['se_w1']),
        pad_w(p['b2']['se_w2']), pad_w(p['b2']['pw_w']),
        pad_w(p['b3']['exp_w']), pad_w(p['b3']['se_w1']),
        pad_w(p['b3']['se_w2']), pad_w(p['b3']['pw_w']),
        pad_w(p['head']['w']), pad_w(p['cls']['w']),
    ])                                                       # (12,128,128) bf16
    b_stack = jnp.stack([
        pad_b(p['stem']['b']),
        pad_b(p['b1']['dw_b']), pad_b(p['b1']['pw_b']),
        pad_b(p['b2']['exp_b']), pad_b(p['b2']['dw_b']),
        pad_b(p['b2']['se_b1']), pad_b(p['b2']['se_b2']), pad_b(p['b2']['pw_b']),
        pad_b(p['b3']['exp_b']), pad_b(p['b3']['dw_b']),
        pad_b(p['b3']['se_b1']), pad_b(p['b3']['se_b2']), pad_b(p['b3']['pw_b']),
        pad_b(p['head']['b']), pad_b(p['cls']['b']),
    ])                                                       # (15,1,128) f32
    dw_stack = jnp.stack([pad_dw(p['b1']['dw_w']),
                          pad_dw(p['b2']['dw_w']),
                          pad_dw(p['b3']['dw_w'])])          # (3,9,1,128) f32
    packed = dict(W=w_stack, B=b_stack, DW=dw_stack)
    packed.update(_build_shift_matrices())
    return packed


def mobilenetv3_forward(x_nchw, packed):
    n = x_nchw.shape[0]
    patches = _stem_patches(x_nchw)
    operands = (patches, packed['W'], packed['B'], packed['DW'],
                packed['s1m'], packed['s1p'],
                packed['d2m'], packed['d20'], packed['d2p'],
                packed['s3m'], packed['s3p'])

    flops = 2 * n * (6 * M1 * CPAD * CPAD          # dense matmuls @16x16 rows
                     + 2 * M1 * M1 * CPAD          # block1 W-shift gathers
                     + 3 * M2 * (H2 * W1) * CPAD   # block2 shift+downsample
                     + 2 * M2 * M2 * CPAD          # block3 W-shift gathers
                     + 8 * M2 * CPAD * CPAD)       # 8x8-row matmuls / SE / head
    bytes_accessed = (sum(int(np.prod(a.shape)) * a.dtype.itemsize
                          for a in operands) + n * 8 * CPAD * 4)

    in_specs = [
        pl.BlockSpec((M1, CPAD), lambda b: (b, 0)),               # patches
        pl.BlockSpec((12, CPAD, CPAD), lambda b: (0, 0, 0)),      # weights
        pl.BlockSpec((15, 1, CPAD), lambda b: (0, 0, 0)),         # biases
        pl.BlockSpec((3, 9, 1, CPAD), lambda b: (0, 0, 0, 0)),    # dw taps
        pl.BlockSpec((M1, M1), lambda b: (0, 0)),                 # s1m
        pl.BlockSpec((M1, M1), lambda b: (0, 0)),                 # s1p
        pl.BlockSpec((M2, H2 * W1), lambda b: (0, 0)),            # d2m
        pl.BlockSpec((M2, H2 * W1), lambda b: (0, 0)),            # d20
        pl.BlockSpec((M2, H2 * W1), lambda b: (0, 0)),            # d2p
        pl.BlockSpec((M2, M2), lambda b: (0, 0)),                 # s3m
        pl.BlockSpec((M2, M2), lambda b: (0, 0)),                 # s3p
    ]
    out = pl.pallas_call(
        _mbv3_kernel,
        out_shape=jax.ShapeDtypeStruct((n, 8, CPAD), jnp.float32),
        grid=(n,),
        in_specs=in_specs,
        out_specs=pl.BlockSpec((1, 8, CPAD), lambda b: (b, 0, 0)),
        compiler_params=pltpu.CompilerParams(
            dimension_semantics=("parallel",)),
        cost_estimate=pl.CostEstimate(flops=int(flops), transcendentals=0,
                                      bytes_accessed=int(bytes_accessed)),
    )(*operands)
    return out[:, 0, :NUM_CLASSES]


# ----------------------------- parameter init -------------------------------
def _normal(key, shape, scale=0.05):
    return scale * jax.random.normal(key, shape, dtype=jnp.float32)


def _fold_bn(key, cout, eps=1e-5):
    k1, k2, k3, k4 = jax.random.split(key, 4)
    gamma = 1.0 + 0.1 * jax.random.normal(k1, (cout,), jnp.float32)
    beta = 0.1 * jax.random.normal(k2, (cout,), jnp.float32)
    mean = 0.1 * jax.random.normal(k3, (cout,), jnp.float32)
    var = 1.0 + 0.1 * jax.random.uniform(k4, (cout,), jnp.float32)
    scale = gamma / jnp.sqrt(var + eps)
    shift = beta - mean * scale
    return scale, shift


def init_params(key):
    it = iter(jax.random.split(key, 64))
    nk = lambda: next(it)
    p = {}

    w = _normal(nk(), (3, 3, CIN, STEM_C))
    s, b = _fold_bn(nk(), STEM_C)
    p['stem'] = dict(w=w * s, b=b)

    # block 1: depthwise-separable, 16 -> 16, stride 1, relu
    dw = _normal(nk(), (3, 3, STEM_C)); s, b = _fold_bn(nk(), STEM_C)
    pw = _normal(nk(), (STEM_C, C1)); sp, bp = _fold_bn(nk(), C1)
    p['b1'] = dict(dw_w=dw * s, dw_b=b, pw_w=pw * sp, pw_b=bp)

    def ir_block(cin, mid, cout):
        exp = _normal(nk(), (cin, mid)); se_, be_ = _fold_bn(nk(), mid)
        dw_ = _normal(nk(), (3, 3, mid)); sd, bd = _fold_bn(nk(), mid)
        red = max(1, mid // 4)                          # se_reduce_mid=True
        sw1 = _normal(nk(), (mid, red)); sb1 = _normal(nk(), (red,))
        sw2 = _normal(nk(), (red, mid)); sb2 = _normal(nk(), (mid,))
        pw_ = _normal(nk(), (mid, cout)); sp_, bp_ = _fold_bn(nk(), cout)
        return dict(exp_w=exp * se_, exp_b=be_, dw_w=dw_ * sd, dw_b=bd,
                    se_w1=sw1, se_b1=sb1, se_w2=sw2, se_b2=sb2,
                    pw_w=pw_ * sp_, pw_b=bp_)

    p['b2'] = ir_block(C1, MID2, C2)                    # stride 2, relu
    p['b3'] = ir_block(C2, MID3, C3)                    # stride 1, hswish
    p['head'] = dict(w=_normal(nk(), (C3, HEAD_C)), b=_normal(nk(), (HEAD_C,)))
    p['cls'] = dict(w=_normal(nk(), (HEAD_C, NUM_CLASSES)),
                    b=_normal(nk(), (NUM_CLASSES,)))
    return p


# ----------------------------- pure-JAX reference ---------------------------
def reference_forward(x_nchw, p):
    x = jnp.transpose(x_nchw, (0, 2, 3, 1)).astype(jnp.float32)
    dn = ('NHWC', 'HWIO', 'NHWC')

    def conv(x, w, stride, groups=1):
        return lax.conv_general_dilated(x, w, (stride, stride),
                                        ((1, 1), (1, 1)), dimension_numbers=dn,
                                        feature_group_count=groups)

    def pw(x, w, b):
        return jnp.einsum('nhwc,cd->nhwd', x, w) + b

    def dw(x, w3, b, stride):
        c = w3.shape[-1]
        return conv(x, w3.reshape(3, 3, 1, c), stride, groups=c) + b

    def se(x, w1, b1, w2, b2):
        s = jnp.mean(x, axis=(1, 2))
        g = _hsig(_relu(s @ w1 + b1) @ w2 + b2)
        return x * g[:, None, None, :]

    x = _hswish(conv(x, p['stem']['w'], 2) + p['stem']['b'])
    sc = x
    d = _relu(dw(x, p['b1']['dw_w'], p['b1']['dw_b'], 1))
    x = pw(d, p['b1']['pw_w'], p['b1']['pw_b']) + sc

    y = _relu(pw(x, p['b2']['exp_w'], p['b2']['exp_b']))
    d = _relu(dw(y, p['b2']['dw_w'], p['b2']['dw_b'], 2))
    d = se(d, p['b2']['se_w1'], p['b2']['se_b1'], p['b2']['se_w2'], p['b2']['se_b2'])
    x = pw(d, p['b2']['pw_w'], p['b2']['pw_b'])

    sc = x
    y = _hswish(pw(x, p['b3']['exp_w'], p['b3']['exp_b']))
    d = _hswish(dw(y, p['b3']['dw_w'], p['b3']['dw_b'], 1))
    d = se(d, p['b3']['se_w1'], p['b3']['se_b1'], p['b3']['se_w2'], p['b3']['se_b2'])
    x = pw(d, p['b3']['pw_w'], p['b3']['pw_b']) + sc

    pooled = jnp.mean(x, axis=(1, 2))
    feat = _hswish(pooled @ p['head']['w'] + p['head']['b'])
    return feat @ p['cls']['w'] + p['cls']['b']


# ----------------------------- main ------------------------------------------
if __name__ == "__main__":
    key = jax.random.PRNGKey(0)
    pkey, xkey = jax.random.split(key)
    params = init_params(pkey)
    packed = pack_params(params)
    x = jax.random.normal(xkey, (2, CIN, IMG, IMG), dtype=jnp.float32)  # NCHW

    fwd = jax.jit(mobilenetv3_forward)
    logits = fwd(x, packed)
    jax.block_until_ready(logits)
    assert logits.shape == (2, NUM_CLASSES) and logits.dtype == jnp.float32

    ref = reference_forward(x, params)
    err = float(jnp.max(jnp.abs(logits - ref)))
    assert err < 5e-2, f"kernel vs reference mismatch: max abs err = {err}"
    print("KERNEL_OK")
</pallas_src>

<mosaic_0001>
module attributes {stable_mosaic.version = 11 : i64} {
  func.func @_mbv3_kernel(%arg0: i32, %arg1: memref<256x128xbf16, #tpu.memory_space<vmem>>, %arg2: memref<12x128x128xbf16, #tpu.memory_space<vmem>>, %arg3: memref<15x1x128xf32, #tpu.memory_space<vmem>>, %arg4: memref<3x9x1x128xf32, #tpu.memory_space<vmem>>, %arg5: memref<256x256xbf16, #tpu.memory_space<vmem>>, %arg6: memref<256x256xbf16, #tpu.memory_space<vmem>>, %arg7: memref<64x128xbf16, #tpu.memory_space<vmem>>, %arg8: memref<64x128xbf16, #tpu.memory_space<vmem>>, %arg9: memref<64x128xbf16, #tpu.memory_space<vmem>>, %arg10: memref<64x64xbf16, #tpu.memory_space<vmem>>, %arg11: memref<64x64xbf16, #tpu.memory_space<vmem>>, %arg12: memref<1x8x128xf32, #tpu.memory_space<vmem>>) attributes {dimension_semantics = [#tpu.dimension_semantics<parallel>], iteration_bounds = array<i64: 2>, scalar_prefetch = 0 : i64, scratch_operands = 0 : i64, tpu.core_type = #tpu.core_type<tc>, window_params = [{transform_indices = @transform_0, window_bounds = array<i64: 256, 128>}, {pipeline_mode = #tpu.pipeline_mode<synchronous>, transform_indices = @transform_1, window_bounds = array<i64: 12, 128, 128>}, {pipeline_mode = #tpu.pipeline_mode<synchronous>, transform_indices = @transform_2, window_bounds = array<i64: 15, 1, 128>}, {pipeline_mode = #tpu.pipeline_mode<synchronous>, transform_indices = @transform_3, window_bounds = array<i64: 3, 9, 1, 128>}, {pipeline_mode = #tpu.pipeline_mode<synchronous>, transform_indices = @transform_4, window_bounds = array<i64: 256, 256>}, {pipeline_mode = #tpu.pipeline_mode<synchronous>, transform_indices = @transform_5, window_bounds = array<i64: 256, 256>}, {pipeline_mode = #tpu.pipeline_mode<synchronous>, transform_indices = @transform_6, window_bounds = array<i64: 64, 128>}, {pipeline_mode = #tpu.pipeline_mode<synchronous>, transform_indices = @transform_7, window_bounds = array<i64: 64, 128>}, {pipeline_mode = #tpu.pipeline_mode<synchronous>, transform_indices = @transform_8, window_bounds = array<i64: 64, 128>}, {pipeline_mode = #tpu.pipeline_mode<synchronous>, transform_indices = @transform_9, window_bounds = array<i64: 64, 64>}, {pipeline_mode = #tpu.pipeline_mode<synchronous>, transform_indices = @transform_10, window_bounds = array<i64: 64, 64>}, {transform_indices = @transform_11, window_bounds = array<i64: 1, 8, 128>}]} {
    %c0 = arith.constant 0 : index
    %c0_0 = arith.constant 0 : index
    %0 = vector.load %arg1[%c0, %c0_0] : memref<256x128xbf16, #tpu.memory_space<vmem>>, vector<256x128xbf16>
    %c0_1 = arith.constant 0 : index
    %c0_2 = arith.constant 0 : index
    %c0_3 = arith.constant 0 : index
    %1 = vector.load %arg2[%c0_1, %c0_2, %c0_3] : memref<12x128x128xbf16, #tpu.memory_space<vmem>>, vector<1x128x128xbf16>
    %2 = vector.shape_cast %1 : vector<1x128x128xbf16> to vector<128x128xbf16>
    %cst = arith.constant dense<0.000000e+00> : vector<256x128xf32>
    %3 = tpu.matmul %0, %2, %cst {dimension_numbers = #tpu.dot_dimension_numbers<[1], [0], [0], [1], [0, 0, 1, 1], [], []>} : vector<256x128xbf16>, vector<128x128xbf16>, vector<256x128xf32> -> vector<256x128xf32>
    %c0_4 = arith.constant 0 : index
    %c0_5 = arith.constant 0 : index
    %c0_6 = arith.constant 0 : index
    %4 = vector.load %arg3[%c0_4, %c0_5, %c0_6] : memref<15x1x128xf32, #tpu.memory_space<vmem>>, vector<1x1x128xf32>
    %5 = vector.shape_cast %4 : vector<1x1x128xf32> to vector<1x128xf32>
    %6 = vector.broadcast %5 : vector<1x128xf32> to vector<256x128xf32>
    %7 = arith.addf %3, %6 : vector<256x128xf32>
    %cst_7 = arith.constant 3.000000e+00 : f32
    %8 = vector.broadcast %cst_7 : f32 to vector<256x128xf32>
    %9 = arith.addf %7, %8 : vector<256x128xf32>
    %cst_8 = arith.constant 0.000000e+00 : f32
    %cst_9 = arith.constant 6.000000e+00 : f32
    %10 = vector.broadcast %cst_8 : f32 to vector<256x128xf32>
    %11 = arith.maximumf %10, %9 : vector<256x128xf32>
    %12 = vector.broadcast %cst_9 : f32 to vector<256x128xf32>
    %13 = arith.minimumf %12, %11 : vector<256x128xf32>
    %14 = arith.mulf %7, %13 : vector<256x128xf32>
    %cst_10 = arith.constant 0.166666672 : f32
    %15 = vector.broadcast %cst_10 : f32 to vector<256x128xf32>
    %16 = arith.mulf %14, %15 : vector<256x128xf32>
    %c0_11 = arith.constant 0 : index
    %c0_12 = arith.constant 0 : index
    %17 = vector.load %arg5[%c0_11, %c0_12] : memref<256x256xbf16, #tpu.memory_space<vmem>>, vector<256x256xbf16>
    %c0_13 = arith.constant 0 : index
    %c0_14 = arith.constant 0 : index
    %18 = vector.load %arg6[%c0_13, %c0_14] : memref<256x256xbf16, #tpu.memory_space<vmem>>, vector<256x256xbf16>
    %c0_15 = arith.constant 0 : index
    %c0_16 = arith.constant 0 : index
    %c0_17 = arith.constant 0 : index
    %c0_18 = arith.constant 0 : index
    %19 = vector.load %arg4[%c0_15, %c0_16, %c0_17, %c0_18] : memref<3x9x1x128xf32, #tpu.memory_space<vmem>>, vector<1x9x1x128xf32>
    %20 = vector.shape_cast %19 : vector<1x9x1x128xf32> to vector<9x1x128xf32>
    %21 = vector.shape_cast %16 : vector<256x128xf32> to vector<16x16x128xf32>
    %cst_19 = arith.constant 0.000000e+00 : f32
    %22 = vector.broadcast %cst_19 : f32 to vector<1x16x128xf32>
    %23 = tpu.concatenate %22, %21, %22 in 0 : vector<1x16x128xf32>, vector<16x16x128xf32>, vector<1x16x128xf32> -> vector<18x16x128xf32>
    %24 = vector.extract_strided_slice %23 {offsets = [0, 0, 0], sizes = [16, 16, 128], strides = [1, 1, 1]} : vector<18x16x128xf32> to vector<16x16x128xf32>
    %25 = vector.extract_strided_slice %23 {offsets = [1, 0, 0], sizes = [16, 16, 128], strides = [1, 1, 1]} : vector<18x16x128xf32> to vector<16x16x128xf32>
    %26 = vector.extract_strided_slice %23 {offsets = [2, 0, 0], sizes = [16, 16, 128], strides = [1, 1, 1]} : vector<18x16x128xf32> to vector<16x16x128xf32>
    %27 = vector.extract_strided_slice %20 {offsets = [0, 0, 0], sizes = [1, 1, 128], strides = [1, 1, 1]} : vector<9x1x128xf32> to vector<1x1x128xf32>
    %28 = vector.shape_cast %27 : vector<1x1x128xf32> to vector<1x128xf32>
    %29 = vector.shape_cast %28 : vector<1x128xf32> to vector<1x1x128xf32>
    %30 = vector.broadcast %29 : vector<1x1x128xf32> to vector<16x16x128xf32>
    %31 = arith.mulf %24, %30 : vector<16x16x128xf32>
    %32 = vector.extract_strided_slice %20 {offsets = [3, 0, 0], sizes = [1, 1, 128], strides = [1, 1, 1]} : vector<9x1x128xf32> to vector<1x1x128xf32>
    %33 = vector.shape_cast %32 : vector<1x1x128xf32> to vector<1x128xf32>
    %34 = vector.shape_cast %33 : vector<1x128xf32> to vector<1x1x128xf32>
    %35 = vector.broadcast %34 : vector<1x1x128xf32> to vector<16x16x128xf32>
    %36 = arith.mulf %25, %35 : vector<16x16x128xf32>
    %37 = arith.addf %31, %36 : vector<16x16x128xf32>
    %38 = vector.extract_strided_slice %20 {offsets = [6, 0, 0], sizes = [1, 1, 128], strides = [1, 1, 1]} : vector<9x1x128xf32> to vector<1x1x128xf32>
    %39 = vector.shape_cast %38 : vector<1x1x128xf32> to vector<1x128xf32>
    %40 = vector.shape_cast %39 : vector<1x128xf32> to vector<1x1x128xf32>
    %41 = vector.broadcast %40 : vector<1x1x128xf32> to vector<16x16x128xf32>
    %42 = arith.mulf %26, %41 : vector<16x16x128xf32>
    %43 = arith.addf %37, %42 : vector<16x16x128xf32>
    %44 = vector.shape_cast %43 : vector<16x16x128xf32> to vector<256x128xf32>
    %45 = arith.truncf %44 : vector<256x128xf32> to vector<256x128xbf16>
    %cst_20 = arith.constant dense<0.000000e+00> : vector<256x128xf32>
    %46 = tpu.matmul %17, %45, %cst_20 {dimension_numbers = #tpu.dot_dimension_numbers<[1], [0], [0], [1], [0, 0, 1, 1], [], []>} : vector<256x256xbf16>, vector<256x128xbf16>, vector<256x128xf32> -> vector<256x128xf32>
    %47 = vector.extract_strided_slice %20 {offsets = [1, 0, 0], sizes = [1, 1, 128], strides = [1, 1, 1]} : vector<9x1x128xf32> to vector<1x1x128xf32>
    %48 = vector.shape_cast %47 : vector<1x1x128xf32> to vector<1x128xf32>
    %49 = vector.shape_cast %48 : vector<1x128xf32> to vector<1x1x128xf32>
    %50 = vector.broadcast %49 : vector<1x1x128xf32> to vector<16x16x128xf32>
    %51 = arith.mulf %24, %50 : vector<16x16x128xf32>
    %52 = vector.extract_strided_slice %20 {offsets = [4, 0, 0], sizes = [1, 1, 128], strides = [1, 1, 1]} : vector<9x1x128xf32> to vector<1x1x128xf32>
    %53 = vector.shape_cast %52 : vector<1x1x128xf32> to vector<1x128xf32>
    %54 = vector.shape_cast %53 : vector<1x128xf32> to vector<1x1x128xf32>
    %55 = vector.broadcast %54 : vector<1x1x128xf32> to vector<16x16x128xf32>
    %56 = arith.mulf %25, %55 : vector<16x16x128xf32>
    %57 = arith.addf %51, %56 : vector<16x16x128xf32>
    %58 = vector.extract_strided_slice %20 {offsets = [7, 0, 0], sizes = [1, 1, 128], strides = [1, 1, 1]} : vector<9x1x128xf32> to vector<1x1x128xf32>
    %59 = vector.shape_cast %58 : vector<1x1x128xf32> to vector<1x128xf32>
    %60 = vector.shape_cast %59 : vector<1x128xf32> to vector<1x1x128xf32>
    %61 = vector.broadcast %60 : vector<1x1x128xf32> to vector<16x16x128xf32>
    %62 = arith.mulf %26, %61 : vector<16x16x128xf32>
    %63 = arith.addf %57, %62 : vector<16x16x128xf32>
    %64 = vector.shape_cast %63 : vector<16x16x128xf32> to vector<256x128xf32>
    %65 = arith.addf %46, %64 : vector<256x128xf32>
    %66 = vector.extract_strided_slice %20 {offsets = [2, 0, 0], sizes = [1, 1, 128], strides = [1, 1, 1]} : vector<9x1x128xf32> to vector<1x1x128xf32>
    %67 = vector.shape_cast %66 : vector<1x1x128xf32> to vector<1x128xf32>
    %68 = vector.shape_cast %67 : vector<1x128xf32> to vector<1x1x128xf32>
    %69 = vector.broadcast %68 : vector<1x1x128xf32> to vector<16x16x128xf32>
    %70 = arith.mulf %24, %69 : vector<16x16x128xf32>
    %71 = vector.extract_strided_slice %20 {offsets = [5, 0, 0], sizes = [1, 1, 128], strides = [1, 1, 1]} : vector<9x1x128xf32> to vector<1x1x128xf32>
    %72 = vector.shape_cast %71 : vector<1x1x128xf32> to vector<1x128xf32>
    %73 = vector.shape_cast %72 : vector<1x128xf32> to vector<1x1x128xf32>
    %74 = vector.broadcast %73 : vector<1x1x128xf32> to vector<16x16x128xf32>
    %75 = arith.mulf %25, %74 : vector<16x16x128xf32>
    %76 = arith.addf %70, %75 : vector<16x16x128xf32>
    %77 = vector.extract_strided_slice %20 {offsets = [8, 0, 0], sizes = [1, 1, 128], strides = [1, 1, 1]} : vector<9x1x128xf32> to vector<1x1x128xf32>
    %78 = vector.shape_cast %77 : vector<1x1x128xf32> to vector<1x128xf32>
    %79 = vector.shape_cast %78 : vector<1x128xf32> to vector<1x1x128xf32>
    %80 = vector.broadcast %79 : vector<1x1x128xf32> to vector<16x16x128xf32>
    %81 = arith.mulf %26, %80 : vector<16x16x128xf32>
    %82 = arith.addf %76, %81 : vector<16x16x128xf32>
    %83 = vector.shape_cast %82 : vector<16x16x128xf32> to vector<256x128xf32>
    %84 = arith.truncf %83 : vector<256x128xf32> to vector<256x128xbf16>
    %cst_21 = arith.constant dense<0.000000e+00> : vector<256x128xf32>
    %85 = tpu.matmul %18, %84, %cst_21 {dimension_numbers = #tpu.dot_dimension_numbers<[1], [0], [0], [1], [0, 0, 1, 1], [], []>} : vector<256x256xbf16>, vector<256x128xbf16>, vector<256x128xf32> -> vector<256x128xf32>
    %86 = arith.addf %65, %85 : vector<256x128xf32>
    %c1 = arith.constant 1 : index
    %c0_22 = arith.constant 0 : index
    %c0_23 = arith.constant 0 : index
    %87 = vector.load %arg3[%c1, %c0_22, %c0_23] : memref<15x1x128xf32, #tpu.memory_space<vmem>>, vector<1x1x128xf32>
    %88 = vector.shape_cast %87 : vector<1x1x128xf32> to vector<1x128xf32>
    %89 = vector.broadcast %88 : vector<1x128xf32> to vector<256x128xf32>
    %90 = arith.addf %86, %89 : vector<256x128xf32>
    %cst_24 = arith.constant 0.000000e+00 : f32
    %91 = vector.broadcast %cst_24 : f32 to vector<256x128xf32>
    %92 = arith.maximumf %90, %91 : vector<256x128xf32>
    %93 = arith.truncf %92 : vector<256x128xf32> to vector<256x128xbf16>
    %c1_25 = arith.constant 1 : index
    %c0_26 = arith.constant 0 : index
    %c0_27 = arith.constant 0 : index
    %94 = vector.load %arg2[%c1_25, %c0_26, %c0_27] : memref<12x128x128xbf16, #tpu.memory_space<vmem>>, vector<1x128x128xbf16>
    %95 = vector.shape_cast %94 : vector<1x128x128xbf16> to vector<128x128xbf16>
    %cst_28 = arith.constant dense<0.000000e+00> : vector<256x128xf32>
    %96 = tpu.matmul %93, %95, %cst_28 {dimension_numbers = #tpu.dot_dimension_numbers<[1], [0], [0], [1], [0, 0, 1, 1], [], []>} : vector<256x128xbf16>, vector<128x128xbf16>, vector<256x128xf32> -> vector<256x128xf32>
    %c2 = arith.constant 2 : index
    %c0_29 = arith.constant 0 : index
    %c0_30 = arith.constant 0 : index
    %97 = vector.load %arg3[%c2, %c0_29, %c0_30] : memref<15x1x128xf32, #tpu.memory_space<vmem>>, vector<1x1x128xf32>
    %98 = vector.shape_cast %97 : vector<1x1x128xf32> to vector<1x128xf32>
    %99 = vector.broadcast %98 : vector<1x128xf32> to vector<256x128xf32>
    %100 = arith.addf %96, %99 : vector<256x128xf32>
    %101 = arith.addf %100, %16 : vector<256x128xf32>
    %102 = arith.truncf %101 : vector<256x128xf32> to vector<256x128xbf16>
    %c2_31 = arith.constant 2 : index
    %c0_32 = arith.constant 0 : index
    %c0_33 = arith.constant 0 : index
    %103 = vector.load %arg2[%c2_31, %c0_32, %c0_33] : memref<12x128x128xbf16, #tpu.memory_space<vmem>>, vector<1x128x128xbf16>
    %104 = vector.shape_cast %103 : vector<1x128x128xbf16> to vector<128x128xbf16>
    %cst_34 = arith.constant dense<0.000000e+00> : vector<256x128xf32>
    %105 = tpu.matmul %102, %104, %cst_34 {dimension_numbers = #tpu.dot_dimension_numbers<[1], [0], [0], [1], [0, 0, 1, 1], [], []>} : vector<256x128xbf16>, vector<128x128xbf16>, vector<256x128xf32> -> vector<256x128xf32>
    %c3 = arith.constant 3 : index
    %c0_35 = arith.constant 0 : index
    %c0_36 = arith.constant 0 : index
    %106 = vector.load %arg3[%c3, %c0_35, %c0_36] : memref<15x1x128xf32, #tpu.memory_space<vmem>>, vector<1x1x128xf32>
    %107 = vector.shape_cast %106 : vector<1x1x128xf32> to vector<1x128xf32>
    %108 = vector.broadcast %107 : vector<1x128xf32> to vector<256x128xf32>
    %109 = arith.addf %105, %108 : vector<256x128xf32>
    %cst_37 = arith.constant 0.000000e+00 : f32
    %110 = vector.broadcast %cst_37 : f32 to vector<256x128xf32>
    %111 = arith.maximumf %109, %110 : vector<256x128xf32>
    %c1_38 = arith.constant 1 : index
    %c0_39 = arith.constant 0 : index
    %c0_40 = arith.constant 0 : index
    %c0_41 = arith.constant 0 : index
    %112 = vector.load %arg4[%c1_38, %c0_39, %c0_40, %c0_41] : memref<3x9x1x128xf32, #tpu.memory_space<vmem>>, vector<1x9x1x128xf32>
    %113 = vector.shape_cast %112 : vector<1x9x1x128xf32> to vector<9x1x128xf32>
    %114 = vector.shape_cast %111 : vector<256x128xf32> to vector<16x16x128xf32>
    %115 = vector.shape_cast %114 : vector<16x16x128xf32> to vector<8x2x16x128xf32>
    %116 = vector.extract_strided_slice %115 {offsets = [0, 0, 0, 0], sizes = [8, 1, 16, 128], strides = [1, 1, 1, 1]} : vector<8x2x16x128xf32> to vector<8x1x16x128xf32>
    %117 = vector.shape_cast %116 : vector<8x1x16x128xf32> to vector<8x16x128xf32>
    %118 = vector.extract_strided_slice %115 {offsets = [0, 1, 0, 0], sizes = [8, 1, 16, 128], strides = [1, 1, 1, 1]} : vector<8x2x16x128xf32> to vector<8x1x16x128xf32>
    %119 = vector.shape_cast %118 : vector<8x1x16x128xf32> to vector<8x16x128xf32>
    %cst_42 = arith.constant 0.000000e+00 : f32
    %120 = vector.broadcast %cst_42 : f32 to vector<1x16x128xf32>
    %121 = vector.extract_strided_slice %119 {offsets = [0, 0, 0], sizes = [7, 16, 128], strides = [1, 1, 1]} : vector<8x16x128xf32> to vector<7x16x128xf32>
    %122 = tpu.concatenate %120, %121 in 0 : vector<1x16x128xf32>, vector<7x16x128xf32> -> vector<8x16x128xf32>
    %c0_43 = arith.constant 0 : index
    %c0_44 = arith.constant 0 : index
    %123 = vector.load %arg7[%c0_43, %c0_44] : memref<64x128xbf16, #tpu.memory_space<vmem>>, vector<64x128xbf16>
    %c0_45 = arith.constant 0 : index
    %c0_46 = arith.constant 0 : index
    %124 = vector.load %arg8[%c0_45, %c0_46] : memref<64x128xbf16, #tpu.memory_space<vmem>>, vector<64x128xbf16>
    %c0_47 = arith.constant 0 : index
    %c0_48 = arith.constant 0 : index
    %125 = vector.load %arg9[%c0_47, %c0_48] : memref<64x128xbf16, #tpu.memory_space<vmem>>, vector<64x128xbf16>
    %126 = vector.extract_strided_slice %113 {offsets = [0, 0, 0], sizes = [1, 1, 128], strides = [1, 1, 1]} : vector<9x1x128xf32> to vector<1x1x128xf32>
    %127 = vector.shape_cast %126 : vector<1x1x128xf32> to vector<1x128xf32>
    %128 = vector.shape_cast %127 : vector<1x128xf32> to vector<1x1x128xf32>
    %129 = vector.broadcast %128 : vector<1x1x128xf32> to vector<8x16x128xf32>
    %130 = arith.mulf %122, %129 : vector<8x16x128xf32>
    %131 = vector.extract_strided_slice %113 {offsets = [3, 0, 0], sizes = [1, 1, 128], strides = [1, 1, 1]} : vector<9x1x128xf32> to vector<1x1x128xf32>
    %132 = vector.shape_cast %131 : vector<1x1x128xf32> to vector<1x128xf32>
    %133 = vector.shape_cast %132 : vector<1x128xf32> to vector<1x1x128xf32>
    %134 = vector.broadcast %133 : vector<1x1x128xf32> to vector<8x16x128xf32>
    %135 = arith.mulf %117, %134 : vector<8x16x128xf32>
    %136 = arith.addf %130, %135 : vector<8x16x128xf32>
    %137 = vector.extract_strided_slice %113 {offsets = [6, 0, 0], sizes = [1, 1, 128], strides = [1, 1, 1]} : vector<9x1x128xf32> to vector<1x1x128xf32>
    %138 = vector.shape_cast %137 : vector<1x1x128xf32> to vector<1x128xf32>
    %139 = vector.shape_cast %138 : vector<1x128xf32> to vector<1x1x128xf32>
    %140 = vector.broadcast %139 : vector<1x1x128xf32> to vector<8x16x128xf32>
    %141 = arith.mulf %119, %140 : vector<8x16x128xf32>
    %142 = arith.addf %136, %141 : vector<8x16x128xf32>
    %143 = vector.shape_cast %142 : vector<8x16x128xf32> to vector<128x128xf32>
    %144 = arith.truncf %143 : vector<128x128xf32> to vector<128x128xbf16>
    %cst_49 = arith.constant dense<0.000000e+00> : vector<64x128xf32>
    %145 = tpu.matmul %123, %144, %cst_49 {dimension_numbers = #tpu.dot_dimension_numbers<[1], [0], [0], [1], [0, 0, 1, 1], [], []>} : vector<64x128xbf16>, vector<128x128xbf16>, vector<64x128xf32> -> vector<64x128xf32>
    %146 = vector.extract_strided_slice %113 {offsets = [1, 0, 0], sizes = [1, 1, 128], strides = [1, 1, 1]} : vector<9x1x128xf32> to vector<1x1x128xf32>
    %147 = vector.shape_cast %146 : vector<1x1x128xf32> to vector<1x128xf32>
    %148 = vector.shape_cast %147 : vector<1x128xf32> to vector<1x1x128xf32>
    %149 = vector.broadcast %148 : vector<1x1x128xf32> to vector<8x16x128xf32>
    %150 = arith.mulf %122, %149 : vector<8x16x128xf32>
    %151 = vector.extract_strided_slice %113 {offsets = [4, 0, 0], sizes = [1, 1, 128], strides = [1, 1, 1]} : vector<9x1x128xf32> to vector<1x1x128xf32>
    %152 = vector.shape_cast %151 : vector<1x1x128xf32> to vector<1x128xf32>
    %153 = vector.shape_cast %152 : vector<1x128xf32> to vector<1x1x128xf32>
    %154 = vector.broadcast %153 : vector<1x1x128xf32> to vector<8x16x128xf32>
    %155 = arith.mulf %117, %154 : vector<8x16x128xf32>
    %156 = arith.addf %150, %155 : vector<8x16x128xf32>
    %157 = vector.extract_strided_slice %113 {offsets = [7, 0, 0], sizes = [1, 1, 128], strides = [1, 1, 1]} : vector<9x1x128xf32> to vector<1x1x128xf32>
    %158 = vector.shape_cast %157 : vector<1x1x128xf32> to vector<1x128xf32>
    %159 = vector.shape_cast %158 : vector<1x128xf32> to vector<1x1x128xf32>
    %160 = vector.broadcast %159 : vector<1x1x128xf32> to vector<8x16x128xf32>
    %161 = arith.mulf %119, %160 : vector<8x16x128xf32>
    %162 = arith.addf %156, %161 : vector<8x16x128xf32>
    %163 = vector.shape_cast %162 : vector<8x16x128xf32> to vector<128x128xf32>
    %164 = arith.truncf %163 : vector<128x128xf32> to vector<128x128xbf16>
    %cst_50 = arith.constant dense<0.000000e+00> : vector<64x128xf32>
    %165 = tpu.matmul %124, %164, %cst_50 {dimension_numbers = #tpu.dot_dimension_numbers<[1], [0], [0], [1], [0, 0, 1, 1], [], []>} : vector<64x128xbf16>, vector<128x128xbf16>, vector<64x128xf32> -> vector<64x128xf32>
    %166 = arith.addf %145, %165 : vector<64x128xf32>
    %167 = vector.extract_strided_slice %113 {offsets = [2, 0, 0], sizes = [1, 1, 128], strides = [1, 1, 1]} : vector<9x1x128xf32> to vector<1x1x128xf32>
    %168 = vector.shape_cast %167 : vector<1x1x128xf32> to vector<1x128xf32>
    %169 = vector.shape_cast %168 : vector<1x128xf32> to vector<1x1x128xf32>
    %170 = vector.broadcast %169 : vector<1x1x128xf32> to vector<8x16x128xf32>
    %171 = arith.mulf %122, %170 : vector<8x16x128xf32>
    %172 = vector.extract_strided_slice %113 {offsets = [5, 0, 0], sizes = [1, 1, 128], strides = [1, 1, 1]} : vector<9x1x128xf32> to vector<1x1x128xf32>
    %173 = vector.shape_cast %172 : vector<1x1x128xf32> to vector<1x128xf32>
    %174 = vector.shape_cast %173 : vector<1x128xf32> to vector<1x1x128xf32>
    %175 = vector.broadcast %174 : vector<1x1x128xf32> to vector<8x16x128xf32>
    %176 = arith.mulf %117, %175 : vector<8x16x128xf32>
    %177 = arith.addf %171, %176 : vector<8x16x128xf32>
    %178 = vector.extract_strided_slice %113 {offsets = [8, 0, 0], sizes = [1, 1, 128], strides = [1, 1, 1]} : vector<9x1x128xf32> to vector<1x1x128xf32>
    %179 = vector.shape_cast %178 : vector<1x1x128xf32> to vector<1x128xf32>
    %180 = vector.shape_cast %179 : vector<1x128xf32> to vector<1x1x128xf32>
    %181 = vector.broadcast %180 : vector<1x1x128xf32> to vector<8x16x128xf32>
    %182 = arith.mulf %119, %181 : vector<8x16x128xf32>
    %183 = arith.addf %177, %182 : vector<8x16x128xf32>
    %184 = vector.shape_cast %183 : vector<8x16x128xf32> to vector<128x128xf32>
    %185 = arith.truncf %184 : vector<128x128xf32> to vector<128x128xbf16>
    %cst_51 = arith.constant dense<0.000000e+00> : vector<64x128xf32>
    %186 = tpu.matmul %125, %185, %cst_51 {dimension_numbers = #tpu.dot_dimension_numbers<[1], [0], [0], [1], [0, 0, 1, 1], [], []>} : vector<64x128xbf16>, vector<128x128xbf16>, vector<64x128xf32> -> vector<64x128xf32>
    %187 = arith.addf %166, %186 : vector<64x128xf32>
    %c4 = arith.constant 4 : index
    %c0_52 = arith.constant 0 : index
    %c0_53 = arith.constant 0 : index
    %188 = vector.load %arg3[%c4, %c0_52, %c0_53] : memref<15x1x128xf32, #tpu.memory_space<vmem>>, vector<1x1x128xf32>
    %189 = vector.shape_cast %188 : vector<1x1x128xf32> to vector<1x128xf32>
    %190 = vector.broadcast %189 : vector<1x128xf32> to vector<64x128xf32>
    %191 = arith.addf %187, %190 : vector<64x128xf32>
    %cst_54 = arith.constant 0.000000e+00 : f32
    %192 = vector.broadcast %cst_54 : f32 to vector<64x128xf32>
    %193 = arith.maximumf %191, %192 : vector<64x128xf32>
    %cst_55 = arith.constant dense<0.000000e+00> : vector<128xf32>
    %194 = vector.multi_reduction <add>, %193, %cst_55 [0] : vector<64x128xf32> to vector<128xf32>
    %195 = vector.shape_cast %194 : vector<128xf32> to vector<1x128xf32>
    %cst_56 = arith.constant 6.400000e+01 : f32
    %196 = vector.broadcast %cst_56 : f32 to vector<1x128xf32>
    %197 = arith.divf %195, %196 : vector<1x128xf32>
    %198 = arith.truncf %197 : vector<1x128xf32> to vector<1x128xbf16>
    %c3_57 = arith.constant 3 : index
    %c0_58 = arith.constant 0 : index
    %c0_59 = arith.constant 0 : index
    %199 = vector.load %arg2[%c3_57, %c0_58, %c0_59] : memref<12x128x128xbf16, #tpu.memory_space<vmem>>, vector<1x128x128xbf16>
    %200 = vector.shape_cast %199 : vector<1x128x128xbf16> to vector<128x128xbf16>
    %cst_60 = arith.constant dense<0.000000e+00> : vector<1x128xf32>
    %201 = tpu.matmul %198, %200, %cst_60 {dimension_numbers = #tpu.dot_dimension_numbers<[1], [0], [0], [1], [0, 0, 1, 1], [], []>} : vector<1x128xbf16>, vector<128x128xbf16>, vector<1x128xf32> -> vector<1x128xf32>
    %c5 = arith.constant 5 : index
    %c0_61 = arith.constant 0 : index
    %c0_62 = arith.constant 0 : index
    %202 = vector.load %arg3[%c5, %c0_61, %c0_62] : memref<15x1x128xf32, #tpu.memory_space<vmem>>, vector<1x1x128xf32>
    %203 = vector.shape_cast %202 : vector<1x1x128xf32> to vector<1x128xf32>
    %204 = arith.addf %201, %203 : vector<1x128xf32>
    %cst_63 = arith.constant 0.000000e+00 : f32
    %205 = vector.broadcast %cst_63 : f32 to vector<1x128xf32>
    %206 = arith.maximumf %204, %205 : vector<1x128xf32>
    %207 = arith.truncf %206 : vector<1x128xf32> to vector<1x128xbf16>
    %c4_64 = arith.constant 4 : index
    %c0_65 = arith.constant 0 : index
    %c0_66 = arith.constant 0 : index
    %208 = vector.load %arg2[%c4_64, %c0_65, %c0_66] : memref<12x128x128xbf16, #tpu.memory_space<vmem>>, vector<1x128x128xbf16>
    %209 = vector.shape_cast %208 : vector<1x128x128xbf16> to vector<128x128xbf16>
    %cst_67 = arith.constant dense<0.000000e+00> : vector<1x128xf32>
    %210 = tpu.matmul %207, %209, %cst_67 {dimension_numbers = #tpu.dot_dimension_numbers<[1], [0], [0], [1], [0, 0, 1, 1], [], []>} : vector<1x128xbf16>, vector<128x128xbf16>, vector<1x128xf32> -> vector<1x128xf32>
    %c6 = arith.constant 6 : index
    %c0_68 = arith.constant 0 : index
    %c0_69 = arith.constant 0 : index
    %211 = vector.load %arg3[%c6, %c0_68, %c0_69] : memref<15x1x128xf32, #tpu.memory_space<vmem>>, vector<1x1x128xf32>
    %212 = vector.shape_cast %211 : vector<1x1x128xf32> to vector<1x128xf32>
    %213 = arith.addf %210, %212 : vector<1x128xf32>
    %cst_70 = arith.constant 3.000000e+00 : f32
    %214 = vector.broadcast %cst_70 : f32 to vector<1x128xf32>
    %215 = arith.addf %213, %214 : vector<1x128xf32>
    %cst_71 = arith.constant 0.000000e+00 : f32
    %cst_72 = arith.constant 6.000000e+00 : f32
    %216 = vector.broadcast %cst_71 : f32 to vector<1x128xf32>
    %217 = arith.maximumf %216, %215 : vector<1x128xf32>
    %218 = vector.broadcast %cst_72 : f32 to vector<1x128xf32>
    %219 = arith.minimumf %218, %217 : vector<1x128xf32>
    %cst_73 = arith.constant 0.166666672 : f32
    %220 = vector.broadcast %cst_73 : f32 to vector<1x128xf32>
    %221 = arith.mulf %219, %220 : vector<1x128xf32>
    %222 = vector.broadcast %221 : vector<1x128xf32> to vector<64x128xf32>
    %223 = arith.mulf %193, %222 : vector<64x128xf32>
    %224 = arith.truncf %223 : vector<64x128xf32> to vector<64x128xbf16>
    %c5_74 = arith.constant 5 : index
    %c0_75 = arith.constant 0 : index
    %c0_76 = arith.constant 0 : index
    %225 = vector.load %arg2[%c5_74, %c0_75, %c0_76] : memref<12x128x128xbf16, #tpu.memory_space<vmem>>, vector<1x128x128xbf16>
    %226 = vector.shape_cast %225 : vector<1x128x128xbf16> to vector<128x128xbf16>
    %cst_77 = arith.constant dense<0.000000e+00> : vector<64x128xf32>
    %227 = tpu.matmul %224, %226, %cst_77 {dimension_numbers = #tpu.dot_dimension_numbers<[1], [0], [0], [1], [0, 0, 1, 1], [], []>} : vector<64x128xbf16>, vector<128x128xbf16>, vector<64x128xf32> -> vector<64x128xf32>
    %c7 = arith.constant 7 : index
    %c0_78 = arith.constant 0 : index
    %c0_79 = arith.constant 0 : index
    %228 = vector.load %arg3[%c7, %c0_78, %c0_79] : memref<15x1x128xf32, #tpu.memory_space<vmem>>, vector<1x1x128xf32>
    %229 = vector.shape_cast %228 : vector<1x1x128xf32> to vector<1x128xf32>
    %230 = vector.broadcast %229 : vector<1x128xf32> to vector<64x128xf32>
    %231 = arith.addf %227, %230 : vector<64x128xf32>
    %232 = arith.truncf %231 : vector<64x128xf32> to vector<64x128xbf16>
    %c6_80 = arith.constant 6 : index
    %c0_81 = arith.constant 0 : index
    %c0_82 = arith.constant 0 : index
    %233 = vector.load %arg2[%c6_80, %c0_81, %c0_82] : memref<12x128x128xbf16, #tpu.memory_space<vmem>>, vector<1x128x128xbf16>
    %234 = vector.shape_cast %233 : vector<1x128x128xbf16> to vector<128x128xbf16>
    %cst_83 = arith.constant dense<0.000000e+00> : vector<64x128xf32>
    %235 = tpu.matmul %232, %234, %cst_83 {dimension_numbers = #tpu.dot_dimension_numbers<[1], [0], [0], [1], [0, 0, 1, 1], [], []>} : vector<64x128xbf16>, vector<128x128xbf16>, vector<64x128xf32> -> vector<64x128xf32>
    %c8 = arith.constant 8 : index
    %c0_84 = arith.constant 0 : index
    %c0_85 = arith.constant 0 : index
    %236 = vector.load %arg3[%c8, %c0_84, %c0_85] : memref<15x1x128xf32, #tpu.memory_space<vmem>>, vector<1x1x128xf32>
    %237 = vector.shape_cast %236 : vector<1x1x128xf32> to vector<1x128xf32>
    %238 = vector.broadcast %237 : vector<1x128xf32> to vector<64x128xf32>
    %239 = arith.addf %235, %238 : vector<64x128xf32>
    %cst_86 = arith.constant 3.000000e+00 : f32
    %240 = vector.broadcast %cst_86 : f32 to vector<64x128xf32>
    %241 = arith.addf %239, %240 : vector<64x128xf32>
    %cst_87 = arith.constant 0.000000e+00 : f32
    %cst_88 = arith.constant 6.000000e+00 : f32
    %242 = vector.broadcast %cst_87 : f32 to vector<64x128xf32>
    %243 = arith.maximumf %242, %241 : vector<64x128xf32>
    %244 = vector.broadcast %cst_88 : f32 to vector<64x128xf32>
    %245 = arith.minimumf %244, %243 : vector<64x128xf32>
    %246 = arith.mulf %239, %245 : vector<64x128xf32>
    %cst_89 = arith.constant 0.166666672 : f32
    %247 = vector.broadcast %cst_89 : f32 to vector<64x128xf32>
    %248 = arith.mulf %246, %247 : vector<64x128xf32>
    %c0_90 = arith.constant 0 : index
    %c0_91 = arith.constant 0 : index
    %249 = vector.load %arg10[%c0_90, %c0_91] : memref<64x64xbf16, #tpu.memory_space<vmem>>, vector<64x64xbf16>
    %c0_92 = arith.constant 0 : index
    %c0_93 = arith.constant 0 : index
    %250 = vector.load %arg11[%c0_92, %c0_93] : memref<64x64xbf16, #tpu.memory_space<vmem>>, vector<64x64xbf16>
    %c2_94 = arith.constant 2 : index
    %c0_95 = arith.constant 0 : index
    %c0_96 = arith.constant 0 : index
    %c0_97 = arith.constant 0 : index
    %251 = vector.load %arg4[%c2_94, %c0_95, %c0_96, %c0_97] : memref<3x9x1x128xf32, #tpu.memory_space<vmem>>, vector<1x9x1x128xf32>
    %252 = vector.shape_cast %251 : vector<1x9x1x128xf32> to vector<9x1x128xf32>
    %253 = vector.shape_cast %248 : vector<64x128xf32> to vector<8x8x128xf32>
    %cst_98 = arith.constant 0.000000e+00 : f32
    %254 = vector.broadcast %cst_98 : f32 to vector<1x8x128xf32>
    %255 = tpu.concatenate %254, %253, %254 in 0 : vector<1x8x128xf32>, vector<8x8x128xf32>, vector<1x8x128xf32> -> vector<10x8x128xf32>
    %256 = vector.extract_strided_slice %255 {offsets = [0, 0, 0], sizes = [8, 8, 128], strides = [1, 1, 1]} : vector<10x8x128xf32> to vector<8x8x128xf32>
    %257 = vector.extract_strided_slice %255 {offsets = [1, 0, 0], sizes = [8, 8, 128], strides = [1, 1, 1]} : vector<10x8x128xf32> to vector<8x8x128xf32>
    %258 = vector.extract_strided_slice %255 {offsets = [2, 0, 0], sizes = [8, 8, 128], strides = [1, 1, 1]} : vector<10x8x128xf32> to vector<8x8x128xf32>
    %259 = vector.extract_strided_slice %252 {offsets = [0, 0, 0], sizes = [1, 1, 128], strides = [1, 1, 1]} : vector<9x1x128xf32> to vector<1x1x128xf32>
    %260 = vector.shape_cast %259 : vector<1x1x128xf32> to vector<1x128xf32>
    %261 = vector.shape_cast %260 : vector<1x128xf32> to vector<1x1x128xf32>
    %262 = vector.broadcast %261 : vector<1x1x128xf32> to vector<8x8x128xf32>
    %263 = arith.mulf %256, %262 : vector<8x8x128xf32>
    %264 = vector.extract_strided_slice %252 {offsets = [3, 0, 0], sizes = [1, 1, 128], strides = [1, 1, 1]} : vector<9x1x128xf32> to vector<1x1x128xf32>
    %265 = vector.shape_cast %264 : vector<1x1x128xf32> to vector<1x128xf32>
    %266 = vector.shape_cast %265 : vector<1x128xf32> to vector<1x1x128xf32>
    %267 = vector.broadcast %266 : vector<1x1x128xf32> to vector<8x8x128xf32>
    %268 = arith.mulf %257, %267 : vector<8x8x128xf32>
    %269 = arith.addf %263, %268 : vector<8x8x128xf32>
    %270 = vector.extract_strided_slice %252 {offsets = [6, 0, 0], sizes = [1, 1, 128], strides = [1, 1, 1]} : vector<9x1x128xf32> to vector<1x1x128xf32>
    %271 = vector.shape_cast %270 : vector<1x1x128xf32> to vector<1x128xf32>
    %272 = vector.shape_cast %271 : vector<1x128xf32> to vector<1x1x128xf32>
    %273 = vector.broadcast %272 : vector<1x1x128xf32> to vector<8x8x128xf32>
    %274 = arith.mulf %258, %273 : vector<8x8x128xf32>
    %275 = arith.addf %269, %274 : vector<8x8x128xf32>
    %276 = vector.shape_cast %275 : vector<8x8x128xf32> to vector<64x128xf32>
    %277 = arith.truncf %276 : vector<64x128xf32> to vector<64x128xbf16>
    %cst_99 = arith.constant dense<0.000000e+00> : vector<64x128xf32>
    %278 = tpu.matmul %249, %277, %cst_99 {dimension_numbers = #tpu.dot_dimension_numbers<[1], [0], [0], [1], [0, 0, 1, 1], [], []>} : vector<64x64xbf16>, vector<64x128xbf16>, vector<64x128xf32> -> vector<64x128xf32>
    %279 = vector.extract_strided_slice %252 {offsets = [1, 0, 0], sizes = [1, 1, 128], strides = [1, 1, 1]} : vector<9x1x128xf32> to vector<1x1x128xf32>
    %280 = vector.shape_cast %279 : vector<1x1x128xf32> to vector<1x128xf32>
    %281 = vector.shape_cast %280 : vector<1x128xf32> to vector<1x1x128xf32>
    %282 = vector.broadcast %281 : vector<1x1x128xf32> to vector<8x8x128xf32>
    %283 = arith.mulf %256, %282 : vector<8x8x128xf32>
    %284 = vector.extract_strided_slice %252 {offsets = [4, 0, 0], sizes = [1, 1, 128], strides = [1, 1, 1]} : vector<9x1x128xf32> to vector<1x1x128xf32>
    %285 = vector.shape_cast %284 : vector<1x1x128xf32> to vector<1x128xf32>
    %286 = vector.shape_cast %285 : vector<1x128xf32> to vector<1x1x128xf32>
    %287 = vector.broadcast %286 : vector<1x1x128xf32> to vector<8x8x128xf32>
    %288 = arith.mulf %257, %287 : vector<8x8x128xf32>
    %289 = arith.addf %283, %288 : vector<8x8x128xf32>
    %290 = vector.extract_strided_slice %252 {offsets = [7, 0, 0], sizes = [1, 1, 128], strides = [1, 1, 1]} : vector<9x1x128xf32> to vector<1x1x128xf32>
    %291 = vector.shape_cast %290 : vector<1x1x128xf32> to vector<1x128xf32>
    %292 = vector.shape_cast %291 : vector<1x128xf32> to vector<1x1x128xf32>
    %293 = vector.broadcast %292 : vector<1x1x128xf32> to vector<8x8x128xf32>
    %294 = arith.mulf %258, %293 : vector<8x8x128xf32>
    %295 = arith.addf %289, %294 : vector<8x8x128xf32>
    %296 = vector.shape_cast %295 : vector<8x8x128xf32> to vector<64x128xf32>
    %297 = arith.addf %278, %296 : vector<64x128xf32>
    %298 = vector.extract_strided_slice %252 {offsets = [2, 0, 0], sizes = [1, 1, 128], strides = [1, 1, 1]} : vector<9x1x128xf32> to vector<1x1x128xf32>
    %299 = vector.shape_cast %298 : vector<1x1x128xf32> to vector<1x128xf32>
    %300 = vector.shape_cast %299 : vector<1x128xf32> to vector<1x1x128xf32>
    %301 = vector.broadcast %300 : vector<1x1x128xf32> to vector<8x8x128xf32>
    %302 = arith.mulf %256, %301 : vector<8x8x128xf32>
    %303 = vector.extract_strided_slice %252 {offsets = [5, 0, 0], sizes = [1, 1, 128], strides = [1, 1, 1]} : vector<9x1x128xf32> to vector<1x1x128xf32>
    %304 = vector.shape_cast %303 : vector<1x1x128xf32> to vector<1x128xf32>
    %305 = vector.shape_cast %304 : vector<1x128xf32> to vector<1x1x128xf32>
    %306 = vector.broadcast %305 : vector<1x1x128xf32> to vector<8x8x128xf32>
    %307 = arith.mulf %257, %306 : vector<8x8x128xf32>
    %308 = arith.addf %302, %307 : vector<8x8x128xf32>
    %309 = vector.extract_strided_slice %252 {offsets = [8, 0, 0], sizes = [1, 1, 128], strides = [1, 1, 1]} : vector<9x1x128xf32> to vector<1x1x128xf32>
    %310 = vector.shape_cast %309 : vector<1x1x128xf32> to vector<1x128xf32>
    %311 = vector.shape_cast %310 : vector<1x128xf32> to vector<1x1x128xf32>
    %312 = vector.broadcast %311 : vector<1x1x128xf32> to vector<8x8x128xf32>
    %313 = arith.mulf %258, %312 : vector<8x8x128xf32>
    %314 = arith.addf %308, %313 : vector<8x8x128xf32>
    %315 = vector.shape_cast %314 : vector<8x8x128xf32> to vector<64x128xf32>
    %316 = arith.truncf %315 : vector<64x128xf32> to vector<64x128xbf16>
    %cst_100 = arith.constant dense<0.000000e+00> : vector<64x128xf32>
    %317 = tpu.matmul %250, %316, %cst_100 {dimension_numbers = #tpu.dot_dimension_numbers<[1], [0], [0], [1], [0, 0, 1, 1], [], []>} : vector<64x64xbf16>, vector<64x128xbf16>, vector<64x128xf32> -> vector<64x128xf32>
    %318 = arith.addf %297, %317 : vector<64x128xf32>
    %c9 = arith.constant 9 : index
    %c0_101 = arith.constant 0 : index
    %c0_102 = arith.constant 0 : index
    %319 = vector.load %arg3[%c9, %c0_101, %c0_102] : memref<15x1x128xf32, #tpu.memory_space<vmem>>, vector<1x1x128xf32>
    %320 = vector.shape_cast %319 : vector<1x1x128xf32> to vector<1x128xf32>
    %321 = vector.broadcast %320 : vector<1x128xf32> to vector<64x128xf32>
    %322 = arith.addf %318, %321 : vector<64x128xf32>
    %cst_103 = arith.constant 3.000000e+00 : f32
    %323 = vector.broadcast %cst_103 : f32 to vector<64x128xf32>
    %324 = arith.addf %322, %323 : vector<64x128xf32>
    %cst_104 = arith.constant 0.000000e+00 : f32
    %cst_105 = arith.constant 6.000000e+00 : f32
    %325 = vector.broadcast %cst_104 : f32 to vector<64x128xf32>
    %326 = arith.maximumf %325, %324 : vector<64x128xf32>
    %327 = vector.broadcast %cst_105 : f32 to vector<64x128xf32>
    %328 = arith.minimumf %327, %326 : vector<64x128xf32>
    %329 = arith.mulf %322, %328 : vector<64x128xf32>
    %cst_106 = arith.constant 0.166666672 : f32
    %330 = vector.broadcast %cst_106 : f32 to vector<64x128xf32>
    %331 = arith.mulf %329, %330 : vector<64x128xf32>
    %cst_107 = arith.constant dense<0.000000e+00> : vector<128xf32>
    %332 = vector.multi_reduction <add>, %331, %cst_107 [0] : vector<64x128xf32> to vector<128xf32>
    %333 = vector.shape_cast %332 : vector<128xf32> to vector<1x128xf32>
    %cst_108 = arith.constant 6.400000e+01 : f32
    %334 = vector.broadcast %cst_108 : f32 to vector<1x128xf32>
    %335 = arith.divf %333, %334 : vector<1x128xf32>
    %336 = arith.truncf %335 : vector<1x128xf32> to vector<1x128xbf16>
    %c7_109 = arith.constant 7 : index
    %c0_110 = arith.constant 0 : index
    %c0_111 = arith.constant 0 : index
    %337 = vector.load %arg2[%c7_109, %c0_110, %c0_111] : memref<12x128x128xbf16, #tpu.memory_space<vmem>>, vector<1x128x128xbf16>
    %338 = vector.shape_cast %337 : vector<1x128x128xbf16> to vector<128x128xbf16>
    %cst_112 = arith.constant dense<0.000000e+00> : vector<1x128xf32>
    %339 = tpu.matmul %336, %338, %cst_112 {dimension_numbers = #tpu.dot_dimension_numbers<[1], [0], [0], [1], [0, 0, 1, 1], [], []>} : vector<1x128xbf16>, vector<128x128xbf16>, vector<1x128xf32> -> vector<1x128xf32>
    %c10 = arith.constant 10 : index
    %c0_113 = arith.constant 0 : index
    %c0_114 = arith.constant 0 : index
    %340 = vector.load %arg3[%c10, %c0_113, %c0_114] : memref<15x1x128xf32, #tpu.memory_space<vmem>>, vector<1x1x128xf32>
    %341 = vector.shape_cast %340 : vector<1x1x128xf32> to vector<1x128xf32>
    %342 = arith.addf %339, %341 : vector<1x128xf32>
    %cst_115 = arith.constant 0.000000e+00 : f32
    %343 = vector.broadcast %cst_115 : f32 to vector<1x128xf32>
    %344 = arith.maximumf %342, %343 : vector<1x128xf32>
    %345 = arith.truncf %344 : vector<1x128xf32> to vector<1x128xbf16>
    %c8_116 = arith.constant 8 : index
    %c0_117 = arith.constant 0 : index
    %c0_118 = arith.constant 0 : index
    %346 = vector.load %arg2[%c8_116, %c0_117, %c0_118] : memref<12x128x128xbf16, #tpu.memory_space<vmem>>, vector<1x128x128xbf16>
    %347 = vector.shape_cast %346 : vector<1x128x128xbf16> to vector<128x128xbf16>
    %cst_119 = arith.constant dense<0.000000e+00> : vector<1x128xf32>
    %348 = tpu.matmul %345, %347, %cst_119 {dimension_numbers = #tpu.dot_dimension_numbers<[1], [0], [0], [1], [0, 0, 1, 1], [], []>} : vector<1x128xbf16>, vector<128x128xbf16>, vector<1x128xf32> -> vector<1x128xf32>
    %c11 = arith.constant 11 : index
    %c0_120 = arith.constant 0 : index
    %c0_121 = arith.constant 0 : index
    %349 = vector.load %arg3[%c11, %c0_120, %c0_121] : memref<15x1x128xf32, #tpu.memory_space<vmem>>, vector<1x1x128xf32>
    %350 = vector.shape_cast %349 : vector<1x1x128xf32> to vector<1x128xf32>
    %351 = arith.addf %348, %350 : vector<1x128xf32>
    %cst_122 = arith.constant 3.000000e+00 : f32
    %352 = vector.broadcast %cst_122 : f32 to vector<1x128xf32>
    %353 = arith.addf %351, %352 : vector<1x128xf32>
    %cst_123 = arith.constant 0.000000e+00 : f32
    %cst_124 = arith.constant 6.000000e+00 : f32
    %354 = vector.broadcast %cst_123 : f32 to vector<1x128xf32>
    %355 = arith.maximumf %354, %353 : vector<1x128xf32>
    %356 = vector.broadcast %cst_124 : f32 to vector<1x128xf32>
    %357 = arith.minimumf %356, %355 : vector<1x128xf32>
    %cst_125 = arith.constant 0.166666672 : f32
    %358 = vector.broadcast %cst_125 : f32 to vector<1x128xf32>
    %359 = arith.mulf %357, %358 : vector<1x128xf32>
    %360 = vector.broadcast %359 : vector<1x128xf32> to vector<64x128xf32>
    %361 = arith.mulf %331, %360 : vector<64x128xf32>
    %362 = arith.truncf %361 : vector<64x128xf32> to vector<64x128xbf16>
    %c9_126 = arith.constant 9 : index
    %c0_127 = arith.constant 0 : index
    %c0_128 = arith.constant 0 : index
    %363 = vector.load %arg2[%c9_126, %c0_127, %c0_128] : memref<12x128x128xbf16, #tpu.memory_space<vmem>>, vector<1x128x128xbf16>
    %364 = vector.shape_cast %363 : vector<1x128x128xbf16> to vector<128x128xbf16>
    %cst_129 = arith.constant dense<0.000000e+00> : vector<64x128xf32>
    %365 = tpu.matmul %362, %364, %cst_129 {dimension_numbers = #tpu.dot_dimension_numbers<[1], [0], [0], [1], [0, 0, 1, 1], [], []>} : vector<64x128xbf16>, vector<128x128xbf16>, vector<64x128xf32> -> vector<64x128xf32>
    %c12 = arith.constant 12 : index
    %c0_130 = arith.constant 0 : index
    %c0_131 = arith.constant 0 : index
    %366 = vector.load %arg3[%c12, %c0_130, %c0_131] : memref<15x1x128xf32, #tpu.memory_space<vmem>>, vector<1x1x128xf32>
    %367 = vector.shape_cast %366 : vector<1x1x128xf32> to vector<1x128xf32>
    %368 = vector.broadcast %367 : vector<1x128xf32> to vector<64x128xf32>
    %369 = arith.addf %365, %368 : vector<64x128xf32>
    %370 = arith.addf %369, %231 : vector<64x128xf32>
    %cst_132 = arith.constant dense<0.000000e+00> : vector<128xf32>
    %371 = vector.multi_reduction <add>, %370, %cst_132 [0] : vector<64x128xf32> to vector<128xf32>
    %372 = vector.shape_cast %371 : vector<128xf32> to vector<1x128xf32>
    %cst_133 = arith.constant 6.400000e+01 : f32
    %373 = vector.broadcast %cst_133 : f32 to vector<1x128xf32>
    %374 = arith.divf %372, %373 : vector<1x128xf32>
    %375 = arith.truncf %374 : vector<1x128xf32> to vector<1x128xbf16>
    %c10_134 = arith.constant 10 : index
    %c0_135 = arith.constant 0 : index
    %c0_136 = arith.constant 0 : index
    %376 = vector.load %arg2[%c10_134, %c0_135, %c0_136] : memref<12x128x128xbf16, #tpu.memory_space<vmem>>, vector<1x128x128xbf16>
    %377 = vector.shape_cast %376 : vector<1x128x128xbf16> to vector<128x128xbf16>
    %cst_137 = arith.constant dense<0.000000e+00> : vector<1x128xf32>
    %378 = tpu.matmul %375, %377, %cst_137 {dimension_numbers = #tpu.dot_dimension_numbers<[1], [0], [0], [1], [0, 0, 1, 1], [], []>} : vector<1x128xbf16>, vector<128x128xbf16>, vector<1x128xf32> -> vector<1x128xf32>
    %c13 = arith.constant 13 : index
    %c0_138 = arith.constant 0 : index
    %c0_139 = arith.constant 0 : index
    %379 = vector.load %arg3[%c13, %c0_138, %c0_139] : memref<15x1x128xf32, #tpu.memory_space<vmem>>, vector<1x1x128xf32>
    %380 = vector.shape_cast %379 : vector<1x1x128xf32> to vector<1x128xf32>
    %381 = arith.addf %378, %380 : vector<1x128xf32>
    %cst_140 = arith.constant 3.000000e+00 : f32
    %382 = vector.broadcast %cst_140 : f32 to vector<1x128xf32>
    %383 = arith.addf %381, %382 : vector<1x128xf32>
    %cst_141 = arith.constant 0.000000e+00 : f32
    %cst_142 = arith.constant 6.000000e+00 : f32
    %384 = vector.broadcast %cst_141 : f32 to vector<1x128xf32>
    %385 = arith.maximumf %384, %383 : vector<1x128xf32>
    %386 = vector.broadcast %cst_142 : f32 to vector<1x128xf32>
    %387 = arith.minimumf %386, %385 : vector<1x128xf32>
    %388 = arith.mulf %381, %387 : vector<1x128xf32>
    %cst_143 = arith.constant 0.166666672 : f32
    %389 = vector.broadcast %cst_143 : f32 to vector<1x128xf32>
    %390 = arith.mulf %388, %389 : vector<1x128xf32>
    %391 = arith.truncf %390 : vector<1x128xf32> to vector<1x128xbf16>
    %c11_144 = arith.constant 11 : index
    %c0_145 = arith.constant 0 : index
    %c0_146 = arith.constant 0 : index
    %392 = vector.load %arg2[%c11_144, %c0_145, %c0_146] : memref<12x128x128xbf16, #tpu.memory_space<vmem>>, vector<1x128x128xbf16>
    %393 = vector.shape_cast %392 : vector<1x128x128xbf16> to vector<128x128xbf16>
    %cst_147 = arith.constant dense<0.000000e+00> : vector<1x128xf32>
    %394 = tpu.matmul %391, %393, %cst_147 {dimension_numbers = #tpu.dot_dimension_numbers<[1], [0], [0], [1], [0, 0, 1, 1], [], []>} : vector<1x128xbf16>, vector<128x128xbf16>, vector<1x128xf32> -> vector<1x128xf32>
    %c14 = arith.constant 14 : index
    %c0_148 = arith.constant 0 : index
    %c0_149 = arith.constant 0 : index
    %395 = vector.load %arg3[%c14, %c0_148, %c0_149] : memref<15x1x128xf32, #tpu.memory_space<vmem>>, vector<1x1x128xf32>
    %396 = vector.shape_cast %395 : vector<1x1x128xf32> to vector<1x128xf32>
    %397 = arith.addf %394, %396 : vector<1x128xf32>
    %398 = vector.shape_cast %397 : vector<1x128xf32> to vector<1x1x128xf32>
    %399 = vector.shape_cast %398 : vector<1x1x128xf32> to vector<1x1x128xf32>
    %400 = vector.broadcast %399 : vector<1x1x128xf32> to vector<1x8x128xf32>
    %c0_150 = arith.constant 0 : index
    %c0_151 = arith.constant 0 : index
    %c0_152 = arith.constant 0 : index
    %401 = vector.load %arg12[%c0_150, %c0_151, %c0_152] : memref<1x8x128xf32, #tpu.memory_space<vmem>>, vector<1x8x128xf32>
    tpu.vector_store %arg12[%c0_150, %c0_151, %c0_152], %400 {strides = array<i32>} : memref<1x8x128xf32, #tpu.memory_space<vmem>>, vector<1x8x128xf32>,
    return
  }
  func.func @transform_0(%arg0: i32) -> (i32, i32) {
    %c0_i32 = arith.constant 0 : i32
    %c0_i32_0 = arith.constant 0 : i32
    return %arg0, %c0_i32 : i32, i32
  }
  func.func @transform_1(%arg0: i32) -> (i32, i32, i32) {
    %c0_i32 = arith.constant 0 : i32
    %c0_i32_0 = arith.constant 0 : i32
    %c0_i32_1 = arith.constant 0 : i32
    %c0_i32_2 = arith.constant 0 : i32
    return %c0_i32, %c0_i32_0, %c0_i32_1 : i32, i32, i32
  }
  func.func @transform_2(%arg0: i32) -> (i32, i32, i32) {
    %c0_i32 = arith.constant 0 : i32
    %c0_i32_0 = arith.constant 0 : i32
    %c0_i32_1 = arith.constant 0 : i32
    %c0_i32_2 = arith.constant 0 : i32
    return %c0_i32, %c0_i32_0, %c0_i32_1 : i32, i32, i32
  }
  func.func @transform_3(%arg0: i32) -> (i32, i32, i32, i32) {
    %c0_i32 = arith.constant 0 : i32
    %c0_i32_0 = arith.constant 0 : i32
    %c0_i32_1 = arith.constant 0 : i32
    %c0_i32_2 = arith.constant 0 : i32
    %c0_i32_3 = arith.constant 0 : i32
    return %c0_i32, %c0_i32_0, %c0_i32_1, %c0_i32_2 : i32, i32, i32, i32
  }
  func.func @transform_4(%arg0: i32) -> (i32, i32) {
    %c0_i32 = arith.constant 0 : i32
    %c0_i32_0 = arith.constant 0 : i32
    %c0_i32_1 = arith.constant 0 : i32
    return %c0_i32, %c0_i32_0 : i32, i32
  }
  func.func @transform_5(%arg0: i32) -> (i32, i32) {
    %c0_i32 = arith.constant 0 : i32
    %c0_i32_0 = arith.constant 0 : i32
    %c0_i32_1 = arith.constant 0 : i32
    return %c0_i32, %c0_i32_0 : i32, i32
  }
  func.func @transform_6(%arg0: i32) -> (i32, i32) {
    %c0_i32 = arith.constant 0 : i32
    %c0_i32_0 = arith.constant 0 : i32
    %c0_i32_1 = arith.constant 0 : i32
    return %c0_i32, %c0_i32_0 : i32, i32
  }
  func.func @transform_7(%arg0: i32) -> (i32, i32) {
    %c0_i32 = arith.constant 0 : i32
    %c0_i32_0 = arith.constant 0 : i32
    %c0_i32_1 = arith.constant 0 : i32
    return %c0_i32, %c0_i32_0 : i32, i32
  }
  func.func @transform_8(%arg0: i32) -> (i32, i32) {
    %c0_i32 = arith.constant 0 : i32
    %c0_i32_0 = arith.constant 0 : i32
    %c0_i32_1 = arith.constant 0 : i32
    return %c0_i32, %c0_i32_0 : i32, i32
  }
  func.func @transform_9(%arg0: i32) -> (i32, i32) {
    %c0_i32 = arith.constant 0 : i32
    %c0_i32_0 = arith.constant 0 : i32
    %c0_i32_1 = arith.constant 0 : i32
    return %c0_i32, %c0_i32_0 : i32, i32
  }
  func.func @transform_10(%arg0: i32) -> (i32, i32) {
    %c0_i32 = arith.constant 0 : i32
    %c0_i32_0 = arith.constant 0 : i32
    %c0_i32_1 = arith.constant 0 : i32
    return %c0_i32, %c0_i32_0 : i32, i32
  }
  func.func @transform_11(%arg0: i32) -> (i32, i32, i32) {
    %c0_i32 = arith.constant 0 : i32
    %c0_i32_0 = arith.constant 0 : i32
    %c0_i32_1 = arith.constant 0 : i32
    return %arg0, %c0_i32, %c0_i32_0 : i32, i32, i32
  }
}

</mosaic_0001>

<llo_original>
// kernel: mobilenetv3_forward.1
$region0: #{mobilenetv3_forward.1}
  #allocation0 [shape = 'u32[]', space=smem, size = 0x4, offset = 0x4, fixed_abs, tag = 'smem constant byte address 0x4 - core index']
  #allocation1 [shape = 'u32[144,128]{1,0:T(1,128)}', space=vmem, size = 0x12000, scoped, tag = 'internal scratch']
  %s0 = inlined_call_operand.vmem [shape: bf16[512,128], index: 0, kind: input, shape index: {}]
  %s1 = inlined_call_operand.vmem [shape: bf16[12,128,128], index: 1, kind: input, shape index: {}]
  %s2 = inlined_call_operand.vmem [shape: f32[15,1,128], index: 2, kind: input, shape index: {}]
  %s3 = inlined_call_operand.vmem [shape: f32[3,9,1,128], index: 3, kind: input, shape index: {}]
  %s4 = inlined_call_operand.vmem [shape: bf16[256,256], index: 4, kind: input, shape index: {}]
  %s5 = inlined_call_operand.vmem [shape: bf16[256,256], index: 5, kind: input, shape index: {}]
  %s6 = inlined_call_operand.vmem [shape: bf16[64,128], index: 6, kind: input, shape index: {}]
  %s7 = inlined_call_operand.vmem [shape: bf16[64,128], index: 7, kind: input, shape index: {}]
  %s8 = inlined_call_operand.vmem [shape: bf16[64,128], index: 8, kind: input, shape index: {}]
  %s9 = inlined_call_operand.vmem [shape: bf16[64,64], index: 9, kind: input, shape index: {}]
  %s10 = inlined_call_operand.vmem [shape: bf16[64,64], index: 10, kind: input, shape index: {}]
  %s11 = inlined_call_operand.vmem [shape: f32[2,8,128], index: 11, kind: output, shape index: {}]
  %s12 = sld [smem:[#allocation0]]
  $region77: #{mobilenetv3_forward.1} parent=0
    _
  %s14 = ssub.s32 1, %s12
  %s15 = scalar_select 0, %s14, %s12
  loop: start=0, step=1, limit=4
  $region2: #{mobilenetv3_forward.1} parent=0 // loop_pre_header
    _
  $region3: #{mobilenetv3_forward.1} parent=0 // loop_header
    %s17 = sphi 0, %s21
    %p18 = scmp.ge.s32.totalorder %s17, 4
    %s27 = sphi 0, %s29
    %s30 = sphi 0, %s27
    %s31 = sphi 0, %s30
    %s47 = sphi 0, %s31
    %s51 = sphi 0, %s51
    %s53 = sphi 0, %s51
    %s54 = sphi 0, %s53
    %s68 = sphi 0, %s54
    %s72 = sphi 0, %s72
    %s74 = sphi 0, %s72
    %s75 = sphi 0, %s74
    %s89 = sphi 0, %s75
    %s93 = sphi 0, %s93
    %s95 = sphi 0, %s93
    %s96 = sphi 0, %s95
    %s110 = sphi 0, %s96
    %s114 = sphi 0, %s114
    %s116 = sphi 0, %s114
    %s117 = sphi 0, %s116
    %s131 = sphi 0, %s117
    %s135 = sphi 0, %s135
    %s137 = sphi 0, %s135
    %s138 = sphi 0, %s137
    %s152 = sphi 0, %s138
    %s156 = sphi 0, %s156
    %s158 = sphi 0, %s156
    %s159 = sphi 0, %s158
    %s173 = sphi 0, %s159
    %s177 = sphi 0, %s177
    %s179 = sphi 0, %s177
    %s180 = sphi 0, %s179
    %s194 = sphi 0, %s180
    %s198 = sphi 0, %s198
    %s200 = sphi 0, %s198
    %s201 = sphi 0, %s200
    %s215 = sphi 0, %s201
    %s219 = sphi 0, %s219
    %s221 = sphi 0, %s219
    %s222 = sphi 0, %s221
    %s236 = sphi 0, %s222
    %s240 = sphi 0, %s240
    %s242 = sphi 0, %s240
    %s243 = sphi 0, %s242
    %s257 = sphi 0, %s243
    %s263 = sphi 0, %s265
    %s266 = sphi 0, %s263
    %s267 = sphi 0, %s266
    %s283 = sphi 0, %s267
  $region4: #{mobilenetv3_forward.1} parent=0 // loop_header_branch
    %20 = sbr.rel (%p18) target = $region8
  $region5: #{mobilenetv3_forward.1} parent=0 // loop_body
    %s22 = ssub.s32 %s17, 1
    %s23 = ssub.s32 %s17, 2
    %s24 = sadd.s32 %s17, 1
    %s25 = ssub.s32 %s17, %s24
    %p26 = scmp.eq.s32.totalorder %s25, 0
    %s28 = sadd.s32 %s27, 1
    %s29 = scalar_select %p26, %s27, %s28
    %p32 = pneg %p26
    %p33 = scmp.eq.s32.totalorder %s17, 1
    %p34 = por %p32, %p33
    %p35 = scmp.ne.s32.totalorder %s27, %s30
    %p36 = scmp.eq.s32.totalorder %s17, 0
    %p37 = por %p35, %p36
    %p38 = scmp.ne.s32.totalorder %s27, %s30
    %p39 = scmp.eq.s32.totalorder %s22, 1
    %p40 = por %p38, %p39
    %p41 = scmp.ne.s32.totalorder %s30, %s31
    %p42 = scmp.eq.s32.totalorder %s22, 0
    %p43 = por %p41, %p42
    %p44 = scmp.ne.s32.totalorder %s30, %s31
    %p45 = scmp.eq.s32.totalorder %s23, 1
    %p46 = por %p44, %p45
    %p48 = scmp.ne.s32.totalorder %s31, %s47
    %p49 = scmp.eq.s32.totalorder %s23, 0
    %p50 = por %p48, %p49
    %s52 = sadd.s32 %s51, 1
    %p55 = scmp.eq.s32.totalorder %s17, 1
    %p56 = scmp.ne.s32.totalorder %s51, %s53
    %p57 = scmp.eq.s32.totalorder %s17, 0
    %p58 = por %p56, %p57
    %p59 = scmp.ne.s32.totalorder %s51, %s53
    %p60 = scmp.eq.s32.totalorder %s22, 1
    %p61 = por %p59, %p60
    %p62 = scmp.ne.s32.totalorder %s53, %s54
    %p63 = scmp.eq.s32.totalorder %s22, 0
    %p64 = por %p62, %p63
    %p65 = scmp.ne.s32.totalorder %s53, %s54
    %p66 = scmp.eq.s32.totalorder %s23, 1
    %p67 = por %p65, %p66
    %p69 = scmp.ne.s32.totalorder %s54, %s68
    %p70 = scmp.eq.s32.totalorder %s23, 0
    %p71 = por %p69, %p70
    %s73 = sadd.s32 %s72, 1
    %p76 = scmp.eq.s32.totalorder %s17, 1
    %p77 = scmp.ne.s32.totalorder %s72, %s74
    %p78 = scmp.eq.s32.totalorder %s17, 0
    %p79 = por %p77, %p78
    %p80 = scmp.ne.s32.totalorder %s72, %s74
    %p81 = scmp.eq.s32.totalorder %s22, 1
    %p82 = por %p80, %p81
    %p83 = scmp.ne.s32.totalorder %s74, %s75
    %p84 = scmp.eq.s32.totalorder %s22, 0
    %p85 = por %p83, %p84
    %p86 = scmp.ne.s32.totalorder %s74, %s75
    %p87 = scmp.eq.s32.totalorder %s23, 1
    %p88 = por %p86, %p87
    %p90 = scmp.ne.s32.totalorder %s75, %s89
    %p91 = scmp.eq.s32.totalorder %s23, 0
    %p92 = por %p90, %p91
    %s94 = sadd.s32 %s93, 1
    %p97 = scmp.eq.s32.totalorder %s17, 1
    %p98 = scmp.ne.s32.totalorder %s93, %s95
    %p99 = scmp.eq.s32.totalorder %s17, 0
    %p100 = por %p98, %p99
    %p101 = scmp.ne.s32.totalorder %s93, %s95
    %p102 = scmp.eq.s32.totalorder %s22, 1
    %p103 = por %p101, %p102
    %p104 = scmp.ne.s32.totalorder %s95, %s96
    %p105 = scmp.eq.s32.totalorder %s22, 0
    %p106 = por %p104, %p105
    %p107 = scmp.ne.s32.totalorder %s95, %s96
    %p108 = scmp.eq.s32.totalorder %s23, 1
    %p109 = por %p107, %p108
    %p111 = scmp.ne.s32.totalorder %s96, %s110
    %p112 = scmp.eq.s32.totalorder %s23, 0
    %p113 = por %p111, %p112
    %s115 = sadd.s32 %s114, 1
    %p118 = scmp.eq.s32.totalorder %s17, 1
    %p119 = scmp.ne.s32.totalorder %s114, %s116
    %p120 = scmp.eq.s32.totalorder %s17, 0
    %p121 = por %p119, %p120
    %p122 = scmp.ne.s32.totalorder %s114, %s116
    %p123 = scmp.eq.s32.totalorder %s22, 1
    %p124 = por %p122, %p123
    %p125 = scmp.ne.s32.totalorder %s116, %s117
    %p126 = scmp.eq.s32.totalorder %s22, 0
    %p127 = por %p125, %p126
    %p128 = scmp.ne.s32.totalorder %s116, %s117
    %p129 = scmp.eq.s32.totalorder %s23, 1
    %p130 = por %p128, %p129
    %p132 = scmp.ne.s32.totalorder %s117, %s131
    %p133 = scmp.eq.s32.totalorder %s23, 0
    %p134 = por %p132, %p133
    %s136 = sadd.s32 %s135, 1
    %p139 = scmp.eq.s32.totalorder %s17, 1
    %p140 = scmp.ne.s32.totalorder %s135, %s137
    %p141 = scmp.eq.s32.totalorder %s17, 0
    %p142 = por %p140, %p141
    %p143 = scmp.ne.s32.totalorder %s135, %s137
    %p144 = scmp.eq.s32.totalorder %s22, 1
    %p145 = por %p143, %p144
    %p146 = scmp.ne.s32.totalorder %s137, %s138
    %p147 = scmp.eq.s32.totalorder %s22, 0
    %p148 = por %p146, %p147
    %p149 = scmp.ne.s32.totalorder %s137, %s138
    %p150 = scmp.eq.s32.totalorder %s23, 1
    %p151 = por %p149, %p150
    %p153 = scmp.ne.s32.totalorder %s138, %s152
    %p154 = scmp.eq.s32.totalorder %s23, 0
    %p155 = por %p153, %p154
    %s157 = sadd.s32 %s156, 1
    %p160 = scmp.eq.s32.totalorder %s17, 1
    %p161 = scmp.ne.s32.totalorder %s156, %s158
    %p162 = scmp.eq.s32.totalorder %s17, 0
    %p163 = por %p161, %p162
    %p164 = scmp.ne.s32.totalorder %s156, %s158
    %p165 = scmp.eq.s32.totalorder %s22, 1
    %p166 = por %p164, %p165
    %p167 = scmp.ne.s32.totalorder %s158, %s159
    %p168 = scmp.eq.s32.totalorder %s22, 0
    %p169 = por %p167, %p168
    %p170 = scmp.ne.s32.totalorder %s158, %s159
    %p171 = scmp.eq.s32.totalorder %s23, 1
    %p172 = por %p170, %p171
    %p174 = scmp.ne.s32.totalorder %s159, %s173
    %p175 = scmp.eq.s32.totalorder %s23, 0
    %p176 = por %p174, %p175
    %s178 = sadd.s32 %s177, 1
    %p181 = scmp.eq.s32.totalorder %s17, 1
    %p182 = scmp.ne.s32.totalorder %s177, %s179
    %p183 = scmp.eq.s32.totalorder %s17, 0
    %p184 = por %p182, %p183
    %p185 = scmp.ne.s32.totalorder %s177, %s179
    %p186 = scmp.eq.s32.totalorder %s22, 1
    %p187 = por %p185, %p186
    %p188 = scmp.ne.s32.totalorder %s179, %s180
    %p189 = scmp.eq.s32.totalorder %s22, 0
    %p190 = por %p188, %p189
    %p191 = scmp.ne.s32.totalorder %s179, %s180
    %p192 = scmp.eq.s32.totalorder %s23, 1
    %p193 = por %p191, %p192
    %p195 = scmp.ne.s32.totalorder %s180, %s194
    %p196 = scmp.eq.s32.totalorder %s23, 0
    %p197 = por %p195, %p196
    %s199 = sadd.s32 %s198, 1
    %p202 = scmp.eq.s32.totalorder %s17, 1
    %p203 = scmp.ne.s32.totalorder %s198, %s200
    %p204 = scmp.eq.s32.totalorder %s17, 0
    %p205 = por %p203, %p204
    %p206 = scmp.ne.s32.totalorder %s198, %s200
    %p207 = scmp.eq.s32.totalorder %s22, 1
    %p208 = por %p206, %p207
    %p209 = scmp.ne.s32.totalorder %s200, %s201
    %p210 = scmp.eq.s32.totalorder %s22, 0
    %p211 = por %p209, %p210
    %p212 = scmp.ne.s32.totalorder %s200, %s201
    %p213 = scmp.eq.s32.totalorder %s23, 1
    %p214 = por %p212, %p213
    %p216 = scmp.ne.s32.totalorder %s201, %s215
    %p217 = scmp.eq.s32.totalorder %s23, 0
    %p218 = por %p216, %p217
    %s220 = sadd.s32 %s219, 1
    %p223 = scmp.eq.s32.totalorder %s17, 1
    %p224 = scmp.ne.s32.totalorder %s219, %s221
    %p225 = scmp.eq.s32.totalorder %s17, 0
    %p226 = por %p224, %p225
    %p227 = scmp.ne.s32.totalorder %s219, %s221
    %p228 = scmp.eq.s32.totalorder %s22, 1
    %p229 = por %p227, %p228
    %p230 = scmp.ne.s32.totalorder %s221, %s222
    %p231 = scmp.eq.s32.totalorder %s22, 0
    %p232 = por %p230, %p231
    %p233 = scmp.ne.s32.totalorder %s221, %s222
    %p234 = scmp.eq.s32.totalorder %s23, 1
    %p235 = por %p233, %p234
    %p237 = scmp.ne.s32.totalorder %s222, %s236
    %p238 = scmp.eq.s32.totalorder %s23, 0
    %p239 = por %p237, %p238
    %s241 = sadd.s32 %s240, 1
    %p244 = scmp.eq.s32.totalorder %s17, 1
    %p245 = scmp.ne.s32.totalorder %s240, %s242
    %p246 = scmp.eq.s32.totalorder %s17, 0
    %p247 = por %p245, %p246
    %p248 = scmp.ne.s32.totalorder %s240, %s242
    %p249 = scmp.eq.s32.totalorder %s22, 1
    %p250 = por %p248, %p249
    %p251 = scmp.ne.s32.totalorder %s242, %s243
    %p252 = scmp.eq.s32.totalorder %s22, 0
    %p253 = por %p251, %p252
    %p254 = scmp.ne.s32.totalorder %s242, %s243
    %p255 = scmp.eq.s32.totalorder %s23, 1
    %p256 = por %p254, %p255
    %p258 = scmp.ne.s32.totalorder %s243, %s257
    %p259 = scmp.eq.s32.totalorder %s23, 0
    %p260 = por %p258, %p259
    %s261 = ssub.s32 %s17, %s24
    %p262 = scmp.eq.s32.totalorder %s261, 0
    %s264 = sadd.s32 %s263, 1
    %s265 = scalar_select %p262, %s263, %s264
    %p268 = pneg %p262
    %p269 = scmp.eq.s32.totalorder %s17, 1
    %p270 = por %p268, %p269
    %p271 = scmp.ne.s32.totalorder %s263, %s266
    %p272 = scmp.eq.s32.totalorder %s17, 0
    %p273 = por %p271, %p272
    %p274 = scmp.ne.s32.totalorder %s263, %s266
    %p275 = scmp.eq.s32.totalorder %s22, 1
    %p276 = por %p274, %p275
    %p277 = scmp.ne.s32.totalorder %s266, %s267
    %p278 = scmp.eq.s32.totalorder %s22, 0
    %p279 = por %p277, %p278
    %p280 = scmp.ne.s32.totalorder %s266, %s267
    %p281 = scmp.eq.s32.totalorder %s23, 1
    %p282 = por %p280, %p281
    %p284 = scmp.ne.s32.totalorder %s267, %s283
    %p285 = scmp.eq.s32.totalorder %s23, 0
    %p286 = por %p284, %p285
    %p287 = scmp.le.s32.totalorder 1, %s17
    %p288 = scmp.lt.s32.totalorder %s17, 3
    %p289 = pnand %p287, %p288
    %p290 = pneg %p289
    // Predicated region
    $region9: #{mobilenetv3_forward.1} parent=5 // pred_check
      _
    $region10: #{mobilenetv3_forward.1} parent=5 // pred_check_branch
      %292 = sbr.rel (%p289) target = $region12
    $region11: #{mobilenetv3_forward.1} parent=5 // pred_region
      %s293 = ssub.s32 %s17, 1
      // Predicated region
      $region13: #{mobilenetv3_forward.1} parent=11 // pred_check
        %p294 = pneg %p64
      $region14: #{mobilenetv3_forward.1} parent=11 // pred_check_branch
        %296 = sbr.rel (%p294) target = $region16
      $region15: #{mobilenetv3_forward.1} parent=11 // pred_region
        _
      $region16: #{mobilenetv3_forward.1} parent=11 // pred_fallthru
        _
      // Predicated region
      $region17: #{mobilenetv3_forward.1} parent=11 // pred_check
        %p297 = pneg %p85
      $region18: #{mobilenetv3_forward.1} parent=11 // pred_check_branch
        %299 = sbr.rel (%p297) target = $region20
      $region19: #{mobilenetv3_forward.1} parent=11 // pred_region
        _
      $region20: #{mobilenetv3_forward.1} parent=11 // pred_fallthru
        _
      // Predicated region
      $region21: #{mobilenetv3_forward.1} parent=11 // pred_check
        %p300 = pneg %p106
      $region22: #{mobilenetv3_forward.1} parent=11 // pred_check_branch
        %302 = sbr.rel (%p300) target = $region24
      $region23: #{mobilenetv3_forward.1} parent=11 // pred_region
        _
      $region24: #{mobilenetv3_forward.1} parent=11 // pred_fallthru
        _
      // Predicated region
      $region25: #{mobilenetv3_forward.1} parent=11 // pred_check
        %p303 = pneg %p127
      $region26: #{mobilenetv3_forward.1} parent=11 // pred_check_branch
        %305 = sbr.rel (%p303) target = $region28
      $region27: #{mobilenetv3_forward.1} parent=11 // pred_region
        _
      $region28: #{mobilenetv3_forward.1} parent=11 // pred_fallthru
        _
      // Predicated region
      $region29: #{mobilenetv3_forward.1} parent=11 // pred_check
        %p306 = pneg %p148
      $region30: #{mobilenetv3_forward.1} parent=11 // pred_check_branch
        %308 = sbr.rel (%p306) target = $region32
      $region31: #{mobilenetv3_forward.1} parent=11 // pred_region
        _
      $region32: #{mobilenetv3_forward.1} parent=11 // pred_fallthru
        _
      // Predicated region
      $region33: #{mobilenetv3_forward.1} parent=11 // pred_check
        %p309 = pneg %p169
      $region34: #{mobilenetv3_forward.1} parent=11 // pred_check_branch
        %311 = sbr.rel (%p309) target = $region36
      $region35: #{mobilenetv3_forward.1} parent=11 // pred_region
        _
      $region36: #{mobilenetv3_forward.1} parent=11 // pred_fallthru
        _
      // Predicated region
      $region37: #{mobilenetv3_forward.1} parent=11 // pred_check
        %p312 = pneg %p190
      $region38: #{mobilenetv3_forward.1} parent=11 // pred_check_branch
        %314 = sbr.rel (%p312) target = $region40
      $region39: #{mobilenetv3_forward.1} parent=11 // pred_region
        _
      $region40: #{mobilenetv3_forward.1} parent=11 // pred_fallthru
        _
      // Predicated region
      $region41: #{mobilenetv3_forward.1} parent=11 // pred_check
        %p315 = pneg %p211
      $region42: #{mobilenetv3_forward.1} parent=11 // pred_check_branch
        %317 = sbr.rel (%p315) target = $region44
      $region43: #{mobilenetv3_forward.1} parent=11 // pred_region
        _
      $region44: #{mobilenetv3_forward.1} parent=11 // pred_fallthru
        _
      // Predicated region
      $region45: #{mobilenetv3_forward.1} parent=11 // pred_check
        %p318 = pneg %p232
      $region46: #{mobilenetv3_forward.1} parent=11 // pred_check_branch
        %320 = sbr.rel (%p318) target = $region48
      $region47: #{mobilenetv3_forward.1} parent=11 // pred_region
        _
      $region48: #{mobilenetv3_forward.1} parent=11 // pred_fallthru
        _
      // Predicated region
      $region49: #{mobilenetv3_forward.1} parent=11 // pred_check
        %p321 = pneg %p253
      $region50: #{mobilenetv3_forward.1} parent=11 // pred_check_branch
        %323 = sbr.rel (%p321) target = $region52
      $region51: #{mobilenetv3_forward.1} parent=11 // pred_region
        _
      $region52: #{mobilenetv3_forward.1} parent=11 // pred_fallthru
        _
    $region12: #{mobilenetv3_forward.1} parent=5 // pred_fallthru
      _
    %p324 = scmp.lt.s32.totalorder %s17, 2
    // Predicated region
    $region53: #{mobilenetv3_forward.1} parent=5 // pred_check
      %p325 = pneg %p324
    $region54: #{mobilenetv3_forward.1} parent=5 // pred_check_branch
      %327 = sbr.rel (%p325) target = $region56
    $region55: #{mobilenetv3_forward.1} parent=5 // pred_region
      // Predicated region
      $region57: #{mobilenetv3_forward.1} parent=55 // pred_check
        %p328 = pneg %p37
      $region58: #{mobilenetv3_forward.1} parent=55 // pred_check_branch
        %330 = sbr.rel (%p328) target = $region60
      $region59: #{mobilenetv3_forward.1} parent=55 // pred_region
        %s331 = smul.u32 32, %s17
        %p332 = scmp.lt.s32.totalorder %s331, 63
        %s333 = scalar_select %p332, %s331, 63
        %s334 = smul.addr %s333, 4
        %s335 = scalar_lea.vmem %s0, %s334
        %s336 = smul.u32 32, %s17
      $region60: #{mobilenetv3_forward.1} parent=55 // pred_fallthru
        _
    $region56: #{mobilenetv3_forward.1} parent=5 // pred_fallthru
      _
    %p337 = scmp.le.s32.totalorder 1, %s17
    %p338 = scmp.lt.s32.totalorder %s17, 3
    %p339 = pnand %p337, %p338
    %p340 = pneg %p339
    // Predicated region
    $region61: #{mobilenetv3_forward.1} parent=5 // pred_check
      _
    $region62: #{mobilenetv3_forward.1} parent=5 // pred_check_branch
      %342 = sbr.rel (%p339) target = $region64
    $region63: #{mobilenetv3_forward.1} parent=5 // pred_region
      %s343 = ssub.s32 %s17, 1
      %s344 = smul.u32 32, %s22
      %p345 = scmp.lt.s32.totalorder %s344, 63
      %s346 = scalar_select %p345, %s344, 63
      %s347 = smul.addr %s346, 4
      %s348 = scalar_lea.vmem %s0, %s347
      %p349 = pneg %p43
      %p350 = pneg %p40
      %p351 = pneg %p64
      %p352 = pneg %p61
      %p353 = pneg %p85
      %p354 = pneg %p82
      %p355 = pneg %p106
      %p356 = pneg %p103
      %p357 = pneg %p127
      %p358 = pneg %p124
      %p359 = pneg %p148
      %p360 = pneg %p145
      %p361 = pneg %p169
      %p362 = pneg %p166
      %p363 = pneg %p190
      %p364 = pneg %p187
      %p365 = pneg %p211
      %p366 = pneg %p208
      %p367 = pneg %p232
      %p368 = pneg %p229
      %p369 = pneg %p253
      %p370 = pneg %p250
      %p371 = pneg %p279
      %p372 = pneg %p276
      %p373 = scmp.lt.s32.totalorder %s22, 1
      %s374 = scalar_select %p373, %s22, 1
      %s375 = smul.addr %s374, 8
      %s376 = scalar_lea.vmem %s11, %s375
      %s377 = smul.u32 32, %s22
      %p378 = scmp.lt.s32.totalorder %s377, 63
      %s379 = scalar_select %p378, %s377, 63
      %s380 = smul.addr %s379, 4
      %s381 = scalar_lea.vmem %s0, %s380
      %s382 = smul.u32 32, %s22
      %p383 = scmp.lt.s32.totalorder %s22, 1
      %s384 = scalar_select %p383, %s22, 1
      %s385 = smul.addr %s384, 8
      %s386 = scalar_lea.vmem %s11, %s385
      %v388 = vld [vmem:[%s381] sm:$0xf]
      %v389 = vld [vmem:[%s381 + $0x4] sm:$0xf]
      %v390 = vld [vmem:[%s381 + $0x8] sm:$0xf]
      %v391 = vld [vmem:[%s381 + $0xc] sm:$0xf]
      %v392 = vld [vmem:[%s381 + $0x10] sm:$0xf]
      %v393 = vld [vmem:[%s381 + $0x14] sm:$0xf]
      %v394 = vld [vmem:[%s381 + $0x18] sm:$0xf]
      %v395 = vld [vmem:[%s381 + $0x1c] sm:$0xf]
      %v396 = vld [vmem:[%s381 + $0x20] sm:$0xf]
      %v397 = vld [vmem:[%s381 + $0x24] sm:$0xf]
      %v398 = vld [vmem:[%s381 + $0x28] sm:$0xf]
      %v399 = vld [vmem:[%s381 + $0x2c] sm:$0xf]
      %v400 = vld [vmem:[%s381 + $0x30] sm:$0xf]
      %v401 = vld [vmem:[%s381 + $0x34] sm:$0xf]
      %v402 = vld [vmem:[%s381 + $0x38] sm:$0xf]
      %v403 = vld [vmem:[%s381 + $0x3c] sm:$0xf]
      %v404 = vld [vmem:[%s381 + $0x40] sm:$0xf]
      %v405 = vld [vmem:[%s381 + $0x44] sm:$0xf]
      %v406 = vld [vmem:[%s381 + $0x48] sm:$0xf]
      %v407 = vld [vmem:[%s381 + $0x4c] sm:$0xf]
      %v408 = vld [vmem:[%s381 + $0x50] sm:$0xf]
      %v409 = vld [vmem:[%s381 + $0x54] sm:$0xf]
      %v410 = vld [vmem:[%s381 + $0x58] sm:$0xf]
      %v411 = vld [vmem:[%s381 + $0x5c] sm:$0xf]
      %v412 = vld [vmem:[%s381 + $0x60] sm:$0xf]
      %v413 = vld [vmem:[%s381 + $0x64] sm:$0xf]
      %v414 = vld [vmem:[%s381 + $0x68] sm:$0xf]
      %v415 = vld [vmem:[%s381 + $0x6c] sm:$0xf]
      %v416 = vld [vmem:[%s381 + $0x70] sm:$0xf]
      %v417 = vld [vmem:[%s381 + $0x74] sm:$0xf]
      %v418 = vld [vmem:[%s381 + $0x78] sm:$0xf]
      %v419 = vld [vmem:[%s381 + $0x7c] sm:$0xf]
      %v420 = vld [vmem:[%s1] sm:$0xf]
      %v421 = vld [vmem:[%s1 + $0x4] sm:$0xf]
      %v422 = vld [vmem:[%s1 + $0x8] sm:$0xf]
      %v423 = vld [vmem:[%s1 + $0xc] sm:$0xf]
      %v424 = vld [vmem:[%s1 + $0x10] sm:$0xf]
      %v425 = vld [vmem:[%s1 + $0x14] sm:$0xf]
      %v426 = vld [vmem:[%s1 + $0x18] sm:$0xf]
      %v427 = vld [vmem:[%s1 + $0x1c] sm:$0xf]
      %v428 = vld [vmem:[%s1 + $0x20] sm:$0xf]
      %v429 = vld [vmem:[%s1 + $0x24] sm:$0xf]
      %v430 = vld [vmem:[%s1 + $0x28] sm:$0xf]
      %v431 = vld [vmem:[%s1 + $0x2c] sm:$0xf]
      %v432 = vld [vmem:[%s1 + $0x30] sm:$0xf]
      %v433 = vld [vmem:[%s1 + $0x34] sm:$0xf]
      %v434 = vld [vmem:[%s1 + $0x38] sm:$0xf]
      %v435 = vld [vmem:[%s1 + $0x3c] sm:$0xf]
      %v436 = vld [vmem:[%s2] sm:$0x1]
      %v438 = vlaneseq
      %v439 = vshrl.u32 %v438, 7
      %v440 = vsub.s32 0, %v439
      %v441 = vrot.slane %v436, %v440
      %v475 = vunpack.c.l.b16 %v388
      %v476 = vunpack.c.l.b16 %v389
      %v477 = vunpack.c.l.b16 %v390
      %v478 = vunpack.c.l.b16 %v391
      %v479 = vunpack.c.l.b16 %v392
      %v480 = vunpack.c.l.b16 %v393
      %v481 = vunpack.c.l.b16 %v394
      %v482 = vunpack.c.l.b16 %v395
      %v483 = vunpack.c.l.b16 %v396
      %v484 = vunpack.c.l.b16 %v397
      %v485 = vunpack.c.l.b16 %v398
      %v486 = vunpack.c.l.b16 %v399
      %v487 = vunpack.c.l.b16 %v400
      %v488 = vunpack.c.l.b16 %v401
      %v489 = vunpack.c.l.b16 %v402
      %v490 = vunpack.c.l.b16 %v403
      %v491 = vunpack.c.l.b16 %v404
      %v492 = vunpack.c.l.b16 %v405
      %v493 = vunpack.c.l.b16 %v406
      %v494 = vunpack.c.l.b16 %v407
      %v495 = vunpack.c.l.b16 %v408
      %v496 = vunpack.c.l.b16 %v409
      %v497 = vunpack.c.l.b16 %v410
      %v498 = vunpack.c.l.b16 %v411
      %v499 = vunpack.c.l.b16 %v412
      %v500 = vunpack.c.l.b16 %v413
      %v501 = vunpack.c.l.b16 %v414
      %v502 = vunpack.c.l.b16 %v415
      %v503 = vunpack.c.l.b16 %v416
      %v504 = vunpack.c.l.b16 %v417
      %v505 = vunpack.c.l.b16 %v418
      %v506 = vunpack.c.l.b16 %v419
      %v507 = vpack.c.b16 %v476, %v475
      %v508 = vpack.c.b16 %v478, %v477
      %v509 = vpack.c.b16 %v480, %v479
      %v510 = vpack.c.b16 %v482, %v481
      %v511 = vpack.c.b16 %v484, %v483
      %v512 = vpack.c.b16 %v486, %v485
      %v513 = vpack.c.b16 %v488, %v487
      %v514 = vpack.c.b16 %v490, %v489
      %v515 = vpack.c.b16 %v492, %v491
      %v516 = vpack.c.b16 %v494, %v493
      %v517 = vpack.c.b16 %v496, %v495
      %v518 = vpack.c.b16 %v498, %v497
      %v519 = vpack.c.b16 %v500, %v499
      %v520 = vpack.c.b16 %v502, %v501
      %v521 = vpack.c.b16 %v504, %v503
      %v522 = vpack.c.b16 %v506, %v505
      %v555 = vunpack.c.l.b16 %v420
      %v556 = vunpack.c.l.b16 %v421
      %v557 = vunpack.c.l.b16 %v422
      %v558 = vunpack.c.l.b16 %v423
      %v559 = vunpack.c.l.b16 %v424
      %v560 = vunpack.c.l.b16 %v425
      %v561 = vunpack.c.l.b16 %v426
      %v562 = vunpack.c.l.b16 %v427
      %v563 = vunpack.c.l.b16 %v428
      %v564 = vunpack.c.l.b16 %v429
      %v565 = vunpack.c.l.b16 %v430
      %v566 = vunpack.c.l.b16 %v431
      %v567 = vunpack.c.l.b16 %v432
      %v568 = vunpack.c.l.b16 %v433
      %v569 = vunpack.c.l.b16 %v434
      %v570 = vunpack.c.l.b16 %v435
      %v571 = vpack.c.b16 %v556, %v555
      %v572 = vpack.c.b16 %v558, %v557
      %v573 = vpack.c.b16 %v560, %v559
      %v574 = vpack.c.b16 %v562, %v561
      %v575 = vpack.c.b16 %v564, %v563
      %v576 = vpack.c.b16 %v566, %v565
      %v577 = vpack.c.b16 %v568, %v567
      %v578 = vpack.c.b16 %v570, %v569
      %587 = vmatprep.subr.bf16.mxu0 0
      %588 = vmatpush1.bf16.msra.mxu0 %v571
      %589 = vmatprep.subr.bf16.mxu0 0
      %590 = vmatpush1.bf16.msra.mxu0 %v572
      %591 = vmatprep.subr.bf16.mxu0 0
      %592 = vmatpush1.bf16.msra.mxu0 %v573
      %593 = vmatprep.subr.bf16.mxu0 0
      %594 = vmatpush1.bf16.msra.mxu0 %v574
      %595 = vmatprep.subr.bf16.mxu0 0
      %596 = vmatpush1.bf16.msra.mxu0 %v575
      %597 = vmatprep.subr.bf16.mxu0 0
      %598 = vmatpush1.bf16.msra.mxu0 %v576
      %599 = vmatprep.subr.bf16.mxu0 0
      %600 = vmatpush1.bf16.msra.mxu0 %v577
      %601 = vmatprep.subr.bf16.mxu0 0
      %602 = vmatpush1.bf16.msra.mxu0 %v578
      %603 = vmatprep.subr.bf16.mxu0 0
      %604 = vmatpush1.bf16.msra.mxu0 0
      %605 = vmatprep.subr.bf16.mxu0 0
      %606 = vmatpush1.bf16.msra.mxu0 0
      %607 = vmatprep.subr.bf16.mxu0 0
      %608 = vmatpush1.bf16.msra.mxu0 0
      %609 = vmatprep.subr.bf16.mxu0 0
      %610 = vmatpush1.bf16.msra.mxu0 0
      %611 = vmatprep.subr.bf16.mxu0 0
      %612 = vmatpush1.bf16.msra.mxu0 0
      %613 = vmatprep.subr.bf16.mxu0 0
      %614 = vmatpush1.bf16.msra.mxu0 0
      %615 = vmatprep.subr.bf16.mxu0 0
      %616 = vmatpush1.bf16.msra.mxu0 0
      %617 = vmatprep.subr.bf16.mxu0 0
      %618 = vmatpush1.bf16.msra.mxu0 0
      %619 = vmatprep.mubr.bf16.mxu0 0
      %620 = vmatmul.mubr.bf16.gmra.mrb[0].mxu0 %v507
      %v621 = vpop.f32.mrb[0].mxu0
      %v622 = vadd.f32 %v441, %v621
      %v623 = vpop.f32.mrb[0].mxu0
      %v624 = vpop.f32.mrb[0].mxu0
      %v625 = vadd.f32 %v441, %v624
      %v626 = vpop.f32.mrb[0].mxu0
      %627 = vmatprep.mubr.bf16.mxu0 0
      %628 = vmatmul.mubr.bf16.gmra.mrb[0].mxu0 %v508
      %v629 = vpop.f32.mrb[0].mxu0
      %v630 = vadd.f32 %v441, %v629
      %v631 = vpop.f32.mrb[0].mxu0
      %v632 = vpop.f32.mrb[0].mxu0
      %v633 = vadd.f32 %v441, %v632
      %v634 = vpop.f32.mrb[0].mxu0
      %635 = vmatprep.mubr.bf16.mxu0 0
      %636 = vmatmul.mubr.bf16.gmra.mrb[0].mxu0 %v509
      %v637 = vpop.f32.mrb[0].mxu0
      %v638 = vadd.f32 %v441, %v637
      %v639 = vpop.f32.mrb[0].mxu0
      %v640 = vpop.f32.mrb[0].mxu0
      %v641 = vadd.f32 %v441, %v640
      %v642 = vpop.f32.mrb[0].mxu0
      %643 = vmatprep.mubr.bf16.mxu0 0
      %644 = vmatmul.mubr.bf16.gmra.mrb[0].mxu0 %v510
      %v645 = vpop.f32.mrb[0].mxu0
      %v646 = vadd.f32 %v441, %v645
      %v647 = vpop.f32.mrb[0].mxu0
      %v648 = vpop.f32.mrb[0].mxu0
      %v649 = vadd.f32 %v441, %v648
      %v650 = vpop.f32.mrb[0].mxu0
      %651 = vmatprep.mubr.bf16.mxu0 0
      %652 = vmatmul.mubr.bf16.gmra.mrb[0].mxu0 %v511
      %v653 = vpop.f32.mrb[0].mxu0
      %v654 = vadd.f32 %v441, %v653
      %v655 = vpop.f32.mrb[0].mxu0
      %v656 = vpop.f32.mrb[0].mxu0
      %v657 = vadd.f32 %v441, %v656
      %v658 = vpop.f32.mrb[0].mxu0
      %659 = vmatprep.mubr.bf16.mxu0 0
      %660 = vmatmul.mubr.bf16.gmra.mrb[0].mxu0 %v512
      %v661 = vpop.f32.mrb[0].mxu0
      %v662 = vadd.f32 %v441, %v661
      %v663 = vpop.f32.mrb[0].mxu0
      %v664 = vpop.f32.mrb[0].mxu0
      %v665 = vadd.f32 %v441, %v664
      %v666 = vpop.f32.mrb[0].mxu0
      %667 = vmatprep.mubr.bf16.mxu0 0
      %668 = vmatmul.mubr.bf16.gmra.mrb[0].mxu0 %v513
      %v669 = vpop.f32.mrb[0].mxu0
      %v670 = vadd.f32 %v441, %v669
      %v671 = vpop.f32.mrb[0].mxu0
      %v672 = vpop.f32.mrb[0].mxu0
      %v673 = vadd.f32 %v441, %v672
      %v674 = vpop.f32.mrb[0].mxu0
      %675 = vmatprep.mubr.bf16.mxu0 0
      %676 = vmatmul.mubr.bf16.gmra.mrb[0].mxu0 %v514
      %v677 = vpop.f32.mrb[0].mxu0
      %v678 = vadd.f32 %v441, %v677
      %v679 = vpop.f32.mrb[0].mxu0
      %v680 = vpop.f32.mrb[0].mxu0
      %v681 = vadd.f32 %v441, %v680
      %v682 = vpop.f32.mrb[0].mxu0
      %683 = vmatprep.mubr.bf16.mxu0 0
      %684 = vmatmul.mubr.bf16.gmra.mrb[0].mxu0 %v515
      %v685 = vpop.f32.mrb[0].mxu0
      %v686 = vadd.f32 %v441, %v685
      %v687 = vpop.f32.mrb[0].mxu0
      %v688 = vpop.f32.mrb[0].mxu0
      %v689 = vadd.f32 %v441, %v688
      %v690 = vpop.f32.mrb[0].mxu0
      %691 = vmatprep.mubr.bf16.mxu0 0
      %692 = vmatmul.mubr.bf16.gmra.mrb[0].mxu0 %v516
      %v693 = vpop.f32.mrb[0].mxu0
      %v694 = vadd.f32 %v441, %v693
      %v695 = vpop.f32.mrb[0].mxu0
      %v696 = vpop.f32.mrb[0].mxu0
      %v697 = vadd.f32 %v441, %v696
      %v698 = vpop.f32.mrb[0].mxu0
      %699 = vmatprep.mubr.bf16.mxu0 0
      %700 = vmatmul.mubr.bf16.gmra.mrb[0].mxu0 %v517
      %v701 = vpop.f32.mrb[0].mxu0
      %v702 = vadd.f32 %v441, %v701
      %v703 = vpop.f32.mrb[0].mxu0
      %v704 = vpop.f32.mrb[0].mxu0
      %v705 = vadd.f32 %v441, %v704
      %v706 = vpop.f32.mrb[0].mxu0
      %707 = vmatprep.mubr.bf16.mxu0 0
      %708 = vmatmul.mubr.bf16.gmra.mrb[0].mxu0 %v518
      %v709 = vpop.f32.mrb[0].mxu0
      %v710 = vadd.f32 %v441, %v709
      %v711 = vpop.f32.mrb[0].mxu0
      %v712 = vpop.f32.mrb[0].mxu0
      %v713 = vadd.f32 %v441, %v712
      %v714 = vpop.f32.mrb[0].mxu0
      %715 = vmatprep.mubr.bf16.mxu0 0
      %716 = vmatmul.mubr.bf16.gmra.mrb[0].mxu0 %v519
      %v717 = vpop.f32.mrb[0].mxu0
      %v718 = vadd.f32 %v441, %v717
      %v719 = vpop.f32.mrb[0].mxu0
      %v720 = vpop.f32.mrb[0].mxu0
      %v721 = vadd.f32 %v441, %v720
      %v722 = vpop.f32.mrb[0].mxu0
      %723 = vmatprep.mubr.bf16.mxu0 0
      %724 = vmatmul.mubr.bf16.gmra.mrb[0].mxu0 %v520
      %v725 = vpop.f32.mrb[0].mxu0
      %v726 = vadd.f32 %v441, %v725
      %v727 = vpop.f32.mrb[0].mxu0
      %v728 = vpop.f32.mrb[0].mxu0
      %v729 = vadd.f32 %v441, %v728
      %v730 = vpop.f32.mrb[0].mxu0
      %731 = vmatprep.mubr.bf16.mxu0 0
      %732 = vmatmul.mubr.bf16.gmra.mrb[0].mxu0 %v521
      %v733 = vpop.f32.mrb[0].mxu0
      %v734 = vadd.f32 %v441, %v733
      %v735 = vpop.f32.mrb[0].mxu0
      %v736 = vpop.f32.mrb[0].mxu0
      %v737 = vadd.f32 %v441, %v736
      %v738 = vpop.f32.mrb[0].mxu0
      %739 = vmatprep.mubr.bf16.mxu0 0
      %740 = vmatmul.mubr.bf16.gmra.mrb[0].mxu0 %v522
      %v741 = vpop.f32.mrb[0].mxu0
      %v742 = vadd.f32 %v441, %v741
      %v743 = vpop.f32.mrb[0].mxu0
      %v744 = vpop.f32.mrb[0].mxu0
      %v745 = vadd.f32 %v441, %v744
      %v746 = vpop.f32.mrb[0].mxu0
      %747 = vdwg.mxu0
      %v748 = vadd.f32 %v622, 3.0
      %v749 = vadd.f32 %v625, 3.0
      %v750 = vadd.f32 %v630, 3.0
      %v751 = vadd.f32 %v633, 3.0
      %v752 = vadd.f32 %v638, 3.0
      %v753 = vadd.f32 %v641, 3.0
      %v754 = vadd.f32 %v646, 3.0
      %v755 = vadd.f32 %v649, 3.0
      %v756 = vadd.f32 %v654, 3.0
      %v757 = vadd.f32 %v657, 3.0
      %v758 = vadd.f32 %v662, 3.0
      %v759 = vadd.f32 %v665, 3.0
      %v760 = vadd.f32 %v670, 3.0
      %v761 = vadd.f32 %v673, 3.0
      %v762 = vadd.f32 %v678, 3.0
      %v763 = vadd.f32 %v681, 3.0
      %v764 = vadd.f32 %v686, 3.0
      %v765 = vadd.f32 %v689, 3.0
      %v766 = vadd.f32 %v694, 3.0
      %v767 = vadd.f32 %v697, 3.0
      %v768 = vadd.f32 %v702, 3.0
      %v769 = vadd.f32 %v705, 3.0
      %v770 = vadd.f32 %v710, 3.0
      %v771 = vadd.f32 %v713, 3.0
      %v772 = vadd.f32 %v718, 3.0
      %v773 = vadd.f32 %v721, 3.0
      %v774 = vadd.f32 %v726, 3.0
      %v775 = vadd.f32 %v729, 3.0
      %v776 = vadd.f32 %v734, 3.0
      %v777 = vadd.f32 %v737, 3.0
      %v778 = vadd.f32 %v742, 3.0
      %v779 = vadd.f32 %v745, 3.0
      %v780 = vmax.f32 %v748, 0.0
      %v781 = vmax.f32 %v749, 0.0
      %v782 = vmax.f32 %v750, 0.0
      %v783 = vmax.f32 %v751, 0.0
      %v784 = vmax.f32 %v752, 0.0
      %v785 = vmax.f32 %v753, 0.0
      %v786 = vmax.f32 %v754, 0.0
      %v787 = vmax.f32 %v755, 0.0
      %v788 = vmax.f32 %v756, 0.0
      %v789 = vmax.f32 %v757, 0.0
      %v790 = vmax.f32 %v758, 0.0
      %v791 = vmax.f32 %v759, 0.0
      %v792 = vmax.f32 %v760, 0.0
      %v793 = vmax.f32 %v761, 0.0
      %v794 = vmax.f32 %v762, 0.0
      %v795 = vmax.f32 %v763, 0.0
      %v796 = vmax.f32 %v764, 0.0
      %v797 = vmax.f32 %v765, 0.0
      %v798 = vmax.f32 %v766, 0.0
      %v799 = vmax.f32 %v767, 0.0
      %v800 = vmax.f32 %v768, 0.0
      %v801 = vmax.f32 %v769, 0.0
      %v802 = vmax.f32 %v770, 0.0
      %v803 = vmax.f32 %v771, 0.0
      %v804 = vmax.f32 %v772, 0.0
      %v805 = vmax.f32 %v773, 0.0
      %v806 = vmax.f32 %v774, 0.0
      %v807 = vmax.f32 %v775, 0.0
      %v808 = vmax.f32 %v776, 0.0
      %v809 = vmax.f32 %v777, 0.0
      %v810 = vmax.f32 %v778, 0.0
      %v811 = vmax.f32 %v779, 0.0
      %v812 = vmin.f32 %v780, 6.0
      %v813 = vmin.f32 %v781, 6.0
      %v814 = vmin.f32 %v782, 6.0
      %v815 = vmin.f32 %v783, 6.0
      %v816 = vmin.f32 %v784, 6.0
      %v817 = vmin.f32 %v785, 6.0
      %v818 = vmin.f32 %v786, 6.0
      %v819 = vmin.f32 %v787, 6.0
      %v820 = vmin.f32 %v788, 6.0
      %v821 = vmin.f32 %v789, 6.0
      %v822 = vmin.f32 %v790, 6.0
      %v823 = vmin.f32 %v791, 6.0
      %v824 = vmin.f32 %v792, 6.0
      %v825 = vmin.f32 %v793, 6.0
      %v826 = vmin.f32 %v794, 6.0
      %v827 = vmin.f32 %v795, 6.0
      %v828 = vmin.f32 %v796, 6.0
      %v829 = vmin.f32 %v797, 6.0
      %v830 = vmin.f32 %v798, 6.0
      %v831 = vmin.f32 %v799, 6.0
      %v832 = vmin.f32 %v800, 6.0
      %v833 = vmin.f32 %v801, 6.0
      %v834 = vmin.f32 %v802, 6.0
      %v835 = vmin.f32 %v803, 6.0
      %v836 = vmin.f32 %v804, 6.0
      %v837 = vmin.f32 %v805, 6.0
      %v838 = vmin.f32 %v806, 6.0
      %v839 = vmin.f32 %v807, 6.0
      %v840 = vmin.f32 %v808, 6.0
      %v841 = vmin.f32 %v809, 6.0
      %v842 = vmin.f32 %v810, 6.0
      %v843 = vmin.f32 %v811, 6.0
      %v844 = vmul.f32 %v622, %v812
      %v845 = vmul.f32 %v625, %v813
      %v846 = vmul.f32 %v630, %v814
      %v847 = vmul.f32 %v633, %v815
      %v848 = vmul.f32 %v638, %v816
      %v849 = vmul.f32 %v641, %v817
      %v850 = vmul.f32 %v646, %v818
      %v851 = vmul.f32 %v649, %v819
      %v852 = vmul.f32 %v654, %v820
      %v853 = vmul.f32 %v657, %v821
      %v854 = vmul.f32 %v662, %v822
      %v855 = vmul.f32 %v665, %v823
      %v856 = vmul.f32 %v670, %v824
      %v857 = vmul.f32 %v673, %v825
      %v858 = vmul.f32 %v678, %v826
      %v859 = vmul.f32 %v681, %v827
      %v860 = vmul.f32 %v686, %v828
      %v861 = vmul.f32 %v689, %v829
      %v862 = vmul.f32 %v694, %v830
      %v863 = vmul.f32 %v697, %v831
      %v864 = vmul.f32 %v702, %v832
      %v865 = vmul.f32 %v705, %v833
      %v866 = vmul.f32 %v710, %v834
      %v867 = vmul.f32 %v713, %v835
      %v868 = vmul.f32 %v718, %v836
      %v869 = vmul.f32 %v721, %v837
      %v870 = vmul.f32 %v726, %v838
      %v871 = vmul.f32 %v729, %v839
      %v872 = vmul.f32 %v734, %v840
      %v873 = vmul.f32 %v737, %v841
      %v874 = vmul.f32 %v742, %v842
      %v875 = vmul.f32 %v745, %v843
      %v876 = vmul.f32 %v844, 0.16666667
      %v877 = vmul.f32 %v845, 0.16666667
      %v878 = vmul.f32 %v846, 0.16666667
      %v879 = vmul.f32 %v847, 0.16666667
      %v880 = vmul.f32 %v848, 0.16666667
      %v881 = vmul.f32 %v849, 0.16666667
      %v882 = vmul.f32 %v850, 0.16666667
      %v883 = vmul.f32 %v851, 0.16666667
      %v884 = vmul.f32 %v852, 0.16666667
      %v885 = vmul.f32 %v853, 0.16666667
      %v886 = vmul.f32 %v854, 0.16666667
      %v887 = vmul.f32 %v855, 0.16666667
      %v888 = vmul.f32 %v856, 0.16666667
      %v889 = vmul.f32 %v857, 0.16666667
      %v890 = vmul.f32 %v858, 0.16666667
      %v891 = vmul.f32 %v859, 0.16666667
      %v892 = vmul.f32 %v860, 0.16666667
      %v893 = vmul.f32 %v861, 0.16666667
      %v894 = vmul.f32 %v862, 0.16666667
      %v895 = vmul.f32 %v863, 0.16666667
      %v896 = vmul.f32 %v864, 0.16666667
      %v897 = vmul.f32 %v865, 0.16666667
      %v898 = vmul.f32 %v866, 0.16666667
      %v899 = vmul.f32 %v867, 0.16666667
      %v900 = vmul.f32 %v868, 0.16666667
      %v901 = vmul.f32 %v869, 0.16666667
      %v902 = vmul.f32 %v870, 0.16666667
      %v903 = vmul.f32 %v871, 0.16666667
      %v904 = vmul.f32 %v872, 0.16666667
      %v905 = vmul.f32 %v873, 0.16666667
      %v906 = vmul.f32 %v874, 0.16666667
      %v907 = vmul.f32 %v875, 0.16666667
      %v908 = vld [vmem:[%s4] sm:$0xff]
      %v909 = vld [vmem:[%s4 + $0x8] sm:$0xff]
      %v910 = vld [vmem:[%s4 + $0x10] sm:$0xff]
      %v911 = vld [vmem:[%s4 + $0x18] sm:$0xff]
      %v912 = vld [vmem:[%s4 + $0x20] sm:$0xff]
      %v913 = vld [vmem:[%s4 + $0x28] sm:$0xff]
      %v914 = vld [vmem:[%s4 + $0x30] sm:$0xff]
      %v915 = vld [vmem:[%s4 + $0x38] sm:$0xff]
      %v916 = vld [vmem:[%s4 + $0x40] sm:$0xff]
      %v917 = vld [vmem:[%s4 + $0x48] sm:$0xff]
      %v918 = vld [vmem:[%s4 + $0x50] sm:$0xff]
      %v919 = vld [vmem:[%s4 + $0x58] sm:$0xff]
      %v920 = vld [vmem:[%s4 + $0x60] sm:$0xff]
      %v921 = vld [vmem:[%s4 + $0x68] sm:$0xff]
      %v922 = vld [vmem:[%s4 + $0x70] sm:$0xff]
      %v923 = vld [vmem:[%s4 + $0x78] sm:$0xff]
      %v924 = vld [vmem:[%s4 + $0x80] sm:$0xff]
      %v925 = vld [vmem:[%s4 + $0x88] sm:$0xff]
      %v926 = vld [vmem:[%s4 + $0x90] sm:$0xff]
      %v927 = vld [vmem:[%s4 + $0x98] sm:$0xff]
      %v928 = vld [vmem:[%s4 + $0xa0] sm:$0xff]
      %v929 = vld [vmem:[%s4 + $0xa8] sm:$0xff]
      %v930 = vld [vmem:[%s4 + $0xb0] sm:$0xff]
      %v931 = vld [vmem:[%s4 + $0xb8] sm:$0xff]
      %v932 = vld [vmem:[%s4 + $0xc0] sm:$0xff]
      %v933 = vld [vmem:[%s4 + $0xc8] sm:$0xff]
      %v934 = vld [vmem:[%s4 + $0xd0] sm:$0xff]
      %v935 = vld [vmem:[%s4 + $0xd8] sm:$0xff]
      %v936 = vld [vmem:[%s4 + $0xe0] sm:$0xff]
      %v937 = vld [vmem:[%s4 + $0xe8] sm:$0xff]
      %v938 = vld [vmem:[%s4 + $0xf0] sm:$0xff]
      %v939 = vld [vmem:[%s4 + $0xf8] sm:$0xff]
      %v940 = vld [vmem:[%s5] sm:$0xff]
      %v941 = vld [vmem:[%s5 + $0x8] sm:$0xff]
      %v942 = vld [vmem:[%s5 + $0x10] sm:$0xff]
      %v943 = vld [vmem:[%s5 + $0x18] sm:$0xff]
      %v944 = vld [vmem:[%s5 + $0x20] sm:$0xff]
      %v945 = vld [vmem:[%s5 + $0x28] sm:$0xff]
      %v946 = vld [vmem:[%s5 + $0x30] sm:$0xff]
      %v947 = vld [vmem:[%s5 + $0x38] sm:$0xff]
      %v948 = vld [vmem:[%s5 + $0x40] sm:$0xff]
      %v949 = vld [vmem:[%s5 + $0x48] sm:$0xff]
      %v950 = vld [vmem:[%s5 + $0x50] sm:$0xff]
      %v951 = vld [vmem:[%s5 + $0x58] sm:$0xff]
      %v952 = vld [vmem:[%s5 + $0x60] sm:$0xff]
      %v953 = vld [vmem:[%s5 + $0x68] sm:$0xff]
      %v954 = vld [vmem:[%s5 + $0x70] sm:$0xff]
      %v955 = vld [vmem:[%s5 + $0x78] sm:$0xff]
      %v956 = vld [vmem:[%s5 + $0x80] sm:$0xff]
      %v957 = vld [vmem:[%s5 + $0x88] sm:$0xff]
      %v958 = vld [vmem:[%s5 + $0x90] sm:$0xff]
      %v959 = vld [vmem:[%s5 + $0x98] sm:$0xff]
      %v960 = vld [vmem:[%s5 + $0xa0] sm:$0xff]
      %v961 = vld [vmem:[%s5 + $0xa8] sm:$0xff]
      %v962 = vld [vmem:[%s5 + $0xb0] sm:$0xff]
      %v963 = vld [vmem:[%s5 + $0xb8] sm:$0xff]
      %v964 = vld [vmem:[%s5 + $0xc0] sm:$0xff]
      %v965 = vld [vmem:[%s5 + $0xc8] sm:$0xff]
      %v966 = vld [vmem:[%s5 + $0xd0] sm:$0xff]
      %v967 = vld [vmem:[%s5 + $0xd8] sm:$0xff]
      %v968 = vld [vmem:[%s5 + $0xe0] sm:$0xff]
      %v969 = vld [vmem:[%s5 + $0xe8] sm:$0xff]
      %v970 = vld [vmem:[%s5 + $0xf0] sm:$0xff]
      %v971 = vld [vmem:[%s5 + $0xf8] sm:$0xff]
      %v972 = vld [vmem:[%s3] sm:$0x1]
      %v973 = vld [vmem:[%s3 + $0x1] sm:$0x1]
      %v974 = vld [vmem:[%s3 + $0x2] sm:$0x1]
      %v975 = vld [vmem:[%s3 + $0x3] sm:$0x1]
      %v976 = vld [vmem:[%s3 + $0x4] sm:$0x1]
      %v977 = vld [vmem:[%s3 + $0x5] sm:$0x1]
      %v978 = vld [vmem:[%s3 + $0x6] sm:$0x1]
      %v979 = vld [vmem:[%s3 + $0x7] sm:$0x1]
      %v980 = vld [vmem:[%s3 + $0x8] sm:$0x1]
      %v982 = vlaneseq
      %v983 = vshrl.u32 %v982, 7
      %v984 = vsub.s32 0, %v983
      %v985 = vrot.slane %v972, %v984
      %v987 = vmul.f32 %v985, 0.0
      %v988 = vmul.f32 %v876, %v985
      %v989 = vmul.f32 %v877, %v985
      %v990 = vmul.f32 %v878, %v985
      %v991 = vmul.f32 %v879, %v985
      %v992 = vmul.f32 %v880, %v985
      %v993 = vmul.f32 %v881, %v985
      %v994 = vmul.f32 %v882, %v985
      %v995 = vmul.f32 %v883, %v985
      %v996 = vmul.f32 %v884, %v985
      %v997 = vmul.f32 %v885, %v985
      %v998 = vmul.f32 %v886, %v985
      %v999 = vmul.f32 %v887, %v985
      %v1000 = vmul.f32 %v888, %v985
      %v1001 = vmul.f32 %v889, %v985
      %v1002 = vmul.f32 %v890, %v985
      %v1003 = vmul.f32 %v891, %v985
      %v1004 = vmul.f32 %v892, %v985
      %v1005 = vmul.f32 %v893, %v985
      %v1006 = vmul.f32 %v894, %v985
      %v1007 = vmul.f32 %v895, %v985
      %v1008 = vmul.f32 %v896, %v985
      %v1009 = vmul.f32 %v897, %v985
      %v1010 = vmul.f32 %v898, %v985
      %v1011 = vmul.f32 %v899, %v985
      %v1012 = vmul.f32 %v900, %v985
      %v1013 = vmul.f32 %v901, %v985
      %v1014 = vmul.f32 %v902, %v985
      %v1015 = vmul.f32 %v903, %v985
      %v1016 = vmul.f32 %v904, %v985
      %v1017 = vmul.f32 %v905, %v985
      %v1019 = vlaneseq
      %v1020 = vshrl.u32 %v1019, 7
      %v1021 = vsub.s32 0, %v1020
      %v1022 = vrot.slane %v975, %v1021
      %v1024 = vmul.f32 %v876, %v1022
      %v1025 = vmul.f32 %v877, %v1022
      %v1026 = vmul.f32 %v878, %v1022
      %v1027 = vmul.f32 %v879, %v1022
      %v1028 = vmul.f32 %v880, %v1022
      %v1029 = vmul.f32 %v881, %v1022
      %v1030 = vmul.f32 %v882, %v1022
      %v1031 = vmul.f32 %v883, %v1022
      %v1032 = vmul.f32 %v884, %v1022
      %v1033 = vmul.f32 %v885, %v1022
      %v1034 = vmul.f32 %v886, %v1022
      %v1035 = vmul.f32 %v887, %v1022
      %v1036 = vmul.f32 %v888, %v1022
      %v1037 = vmul.f32 %v889, %v1022
      %v1038 = vmul.f32 %v890, %v1022
      %v1039 = vmul.f32 %v891, %v1022
      %v1040 = vmul.f32 %v892, %v1022
      %v1041 = vmul.f32 %v893, %v1022
      %v1042 = vmul.f32 %v894, %v1022
      %v1043 = vmul.f32 %v895, %v1022
      %v1044 = vmul.f32 %v896, %v1022
      %v1045 = vmul.f32 %v897, %v1022
      %v1046 = vmul.f32 %v898, %v1022
      %v1047 = vmul.f32 %v899, %v1022
      %v1048 = vmul.f32 %v900, %v1022
      %v1049 = vmul.f32 %v901, %v1022
      %v1050 = vmul.f32 %v902, %v1022
      %v1051 = vmul.f32 %v903, %v1022
      %v1052 = vmul.f32 %v904, %v1022
      %v1053 = vmul.f32 %v905, %v1022
      %v1054 = vmul.f32 %v906, %v1022
      %v1055 = vmul.f32 %v907, %v1022
      %v1056 = vadd.f32 %v987, %v1024
      %v1057 = vadd.f32 %v987, %v1025
      %v1058 = vadd.f32 %v988, %v1026
      %v1059 = vadd.f32 %v989, %v1027
      %v1060 = vadd.f32 %v990, %v1028
      %v1061 = vadd.f32 %v991, %v1029
      %v1062 = vadd.f32 %v992, %v1030
      %v1063 = vadd.f32 %v993, %v1031
      %v1064 = vadd.f32 %v994, %v1032
      %v1065 = vadd.f32 %v995, %v1033
      %v1066 = vadd.f32 %v996, %v1034
      %v1067 = vadd.f32 %v997, %v1035
      %v1068 = vadd.f32 %v998, %v1036
      %v1069 = vadd.f32 %v999, %v1037
      %v1070 = vadd.f32 %v1000, %v1038
      %v1071 = vadd.f32 %v1001, %v1039
      %v1072 = vadd.f32 %v1002, %v1040
      %v1073 = vadd.f32 %v1003, %v1041
      %v1074 = vadd.f32 %v1004, %v1042
      %v1075 = vadd.f32 %v1005, %v1043
      %v1076 = vadd.f32 %v1006, %v1044
      %v1077 = vadd.f32 %v1007, %v1045
      %v1078 = vadd.f32 %v1008, %v1046
      %v1079 = vadd.f32 %v1009, %v1047
      %v1080 = vadd.f32 %v1010, %v1048
      %v1081 = vadd.f32 %v1011, %v1049
      %v1082 = vadd.f32 %v1012, %v1050
      %v1083 = vadd.f32 %v1013, %v1051
      %v1084 = vadd.f32 %v1014, %v1052
      %v1085 = vadd.f32 %v1015, %v1053
      %v1086 = vadd.f32 %v1016, %v1054
      %v1087 = vadd.f32 %v1017, %v1055
      %v1089 = vlaneseq
      %v1090 = vshrl.u32 %v1089, 7
      %v1091 = vsub.s32 0, %v1090
      %v1092 = vrot.slane %v978, %v1091
      %v1094 = vmul.f32 %v878, %v1092
      %v1095 = vmul.f32 %v879, %v1092
      %v1096 = vmul.f32 %v880, %v1092
      %v1097 = vmul.f32 %v881, %v1092
      %v1098 = vmul.f32 %v882, %v1092
      %v1099 = vmul.f32 %v883, %v1092
      %v1100 = vmul.f32 %v884, %v1092
      %v1101 = vmul.f32 %v885, %v1092
      %v1102 = vmul.f32 %v886, %v1092
      %v1103 = vmul.f32 %v887, %v1092
      %v1104 = vmul.f32 %v888, %v1092
      %v1105 = vmul.f32 %v889, %v1092
      %v1106 = vmul.f32 %v890, %v1092
      %v1107 = vmul.f32 %v891, %v1092
      %v1108 = vmul.f32 %v892, %v1092
      %v1109 = vmul.f32 %v893, %v1092
      %v1110 = vmul.f32 %v894, %v1092
      %v1111 = vmul.f32 %v895, %v1092
      %v1112 = vmul.f32 %v896, %v1092
      %v1113 = vmul.f32 %v897, %v1092
      %v1114 = vmul.f32 %v898, %v1092
      %v1115 = vmul.f32 %v899, %v1092
      %v1116 = vmul.f32 %v900, %v1092
      %v1117 = vmul.f32 %v901, %v1092
      %v1118 = vmul.f32 %v902, %v1092
      %v1119 = vmul.f32 %v903, %v1092
      %v1120 = vmul.f32 %v904, %v1092
      %v1121 = vmul.f32 %v905, %v1092
      %v1122 = vmul.f32 %v906, %v1092
      %v1123 = vmul.f32 %v907, %v1092
      %v1124 = vmul.f32 %v1092, 0.0
      %v1125 = vadd.f32 %v1056, %v1094
      %v1126 = vadd.f32 %v1057, %v1095
      %v1127 = vadd.f32 %v1058, %v1096
      %v1128 = vadd.f32 %v1059, %v1097
      %v1129 = vadd.f32 %v1060, %v1098
      %v1130 = vadd.f32 %v1061, %v1099
      %v1131 = vadd.f32 %v1062, %v1100
      %v1132 = vadd.f32 %v1063, %v1101
      %v1133 = vadd.f32 %v1064, %v1102
      %v1134 = vadd.f32 %v1065, %v1103
      %v1135 = vadd.f32 %v1066, %v1104
      %v1136 = vadd.f32 %v1067, %v1105
      %v1137 = vadd.f32 %v1068, %v1106
      %v1138 = vadd.f32 %v1069, %v1107
      %v1139 = vadd.f32 %v1070, %v1108
      %v1140 = vadd.f32 %v1071, %v1109
      %v1141 = vadd.f32 %v1072, %v1110
      %v1142 = vadd.f32 %v1073, %v1111
      %v1143 = vadd.f32 %v1074, %v1112
      %v1144 = vadd.f32 %v1075, %v1113
      %v1145 = vadd.f32 %v1076, %v1114
      %v1146 = vadd.f32 %v1077, %v1115
      %v1147 = vadd.f32 %v1078, %v1116
      %v1148 = vadd.f32 %v1079, %v1117
      %v1149 = vadd.f32 %v1080, %v1118
      %v1150 = vadd.f32 %v1081, %v1119
      %v1151 = vadd.f32 %v1082, %v1120
      %v1152 = vadd.f32 %v1083, %v1121
      %v1153 = vadd.f32 %v1084, %v1122
      %v1154 = vadd.f32 %v1085, %v1123
      %v1155 = vadd.f32 %v1086, %v1124
      %v1156 = vadd.f32 %v1087, %v1124
      %v1157 = vpack.c.bf16 %v1126, %v1125
      %v1158 = vpack.c.bf16 %v1128, %v1127
      %v1159 = vpack.c.bf16 %v1130, %v1129
      %v1160 = vpack.c.bf16 %v1132, %v1131
      %v1161 = vpack.c.bf16 %v1134, %v1133
      %v1162 = vpack.c.bf16 %v1136, %v1135
      %v1163 = vpack.c.bf16 %v1138, %v1137
      %v1164 = vpack.c.bf16 %v1140, %v1139
      %v1165 = vpack.c.bf16 %v1142, %v1141
      %v1166 = vpack.c.bf16 %v1144, %v1143
      %v1167 = vpack.c.bf16 %v1146, %v1145
      %v1168 = vpack.c.bf16 %v1148, %v1147
      %v1169 = vpack.c.bf16 %v1150, %v1149
      %v1170 = vpack.c.bf16 %v1152, %v1151
      %v1171 = vpack.c.bf16 %v1154, %v1153
      %v1172 = vpack.c.bf16 %v1156, %v1155
      %v1174 = vlaneseq
      %v1175 = vshrl.u32 %v1174, 7
      %v1176 = vsub.s32 0, %v1175
      %v1177 = vrot.slane %v973, %v1176
      %v1179 = vmul.f32 %v1177, 0.0
      %v1180 = vmul.f32 %v876, %v1177
      %v1181 = vmul.f32 %v877, %v1177
      %v1182 = vmul.f32 %v878, %v1177
      %v1183 = vmul.f32 %v879, %v1177
      %v1184 = vmul.f32 %v880, %v1177
      %v1185 = vmul.f32 %v881, %v1177
      %v1186 = vmul.f32 %v882, %v1177
      %v1187 = vmul.f32 %v883, %v1177
      %v1188 = vmul.f32 %v884, %v1177
      %v1189 = vmul.f32 %v885, %v1177
      %v1190 = vmul.f32 %v886, %v1177
      %v1191 = vmul.f32 %v887, %v1177
      %v1192 = vmul.f32 %v888, %v1177
      %v1193 = vmul.f32 %v889, %v1177
      %v1194 = vmul.f32 %v890, %v1177
      %v1195 = vmul.f32 %v891, %v1177
      %v1196 = vmul.f32 %v892, %v1177
      %v1197 = vmul.f32 %v893, %v1177
      %v1198 = vmul.f32 %v894, %v1177
      %v1199 = vmul.f32 %v895, %v1177
      %v1200 = vmul.f32 %v896, %v1177
      %v1201 = vmul.f32 %v897, %v1177
      %v1202 = vmul.f32 %v898, %v1177
      %v1203 = vmul.f32 %v899, %v1177
      %v1204 = vmul.f32 %v900, %v1177
      %v1205 = vmul.f32 %v901, %v1177
      %v1206 = vmul.f32 %v902, %v1177
      %v1207 = vmul.f32 %v903, %v1177
      %v1208 = vmul.f32 %v904, %v1177
      %v1209 = vmul.f32 %v905, %v1177
      %v1211 = vlaneseq
      %v1212 = vshrl.u32 %v1211, 7
      %v1213 = vsub.s32 0, %v1212
      %v1214 = vrot.slane %v976, %v1213
      %v1216 = vmul.f32 %v876, %v1214
      %v1217 = vmul.f32 %v877, %v1214
      %v1218 = vmul.f32 %v878, %v1214
      %v1219 = vmul.f32 %v879, %v1214
      %v1220 = vmul.f32 %v880, %v1214
      %v1221 = vmul.f32 %v881, %v1214
      %v1222 = vmul.f32 %v882, %v1214
      %v1223 = vmul.f32 %v883, %v1214
      %v1224 = vmul.f32 %v884, %v1214
      %v1225 = vmul.f32 %v885, %v1214
      %v1226 = vmul.f32 %v886, %v1214
      %v1227 = vmul.f32 %v887, %v1214
      %v1228 = vmul.f32 %v888, %v1214
      %v1229 = vmul.f32 %v889, %v1214
      %v1230 = vmul.f32 %v890, %v1214
      %v1231 = vmul.f32 %v891, %v1214
      %v1232 = vmul.f32 %v892, %v1214
      %v1233 = vmul.f32 %v893, %v1214
      %v1234 = vmul.f32 %v894, %v1214
      %v1235 = vmul.f32 %v895, %v1214
      %v1236 = vmul.f32 %v896, %v1214
      %v1237 = vmul.f32 %v897, %v1214
      %v1238 = vmul.f32 %v898, %v1214
      %v1239 = vmul.f32 %v899, %v1214
      %v1240 = vmul.f32 %v900, %v1214
      %v1241 = vmul.f32 %v901, %v1214
      %v1242 = vmul.f32 %v902, %v1214
      %v1243 = vmul.f32 %v903, %v1214
      %v1244 = vmul.f32 %v904, %v1214
      %v1245 = vmul.f32 %v905, %v1214
      %v1246 = vmul.f32 %v906, %v1214
      %v1247 = vmul.f32 %v907, %v1214
      %v1248 = vadd.f32 %v1179, %v1216
      %v1249 = vadd.f32 %v1179, %v1217
      %v1250 = vadd.f32 %v1180, %v1218
      %v1251 = vadd.f32 %v1181, %v1219
      %v1252 = vadd.f32 %v1182, %v1220
      %v1253 = vadd.f32 %v1183, %v1221
      %v1254 = vadd.f32 %v1184, %v1222
      %v1255 = vadd.f32 %v1185, %v1223
      %v1256 = vadd.f32 %v1186, %v1224
      %v1257 = vadd.f32 %v1187, %v1225
      %v1258 = vadd.f32 %v1188, %v1226
      %v1259 = vadd.f32 %v1189, %v1227
      %v1260 = vadd.f32 %v1190, %v1228
      %v1261 = vadd.f32 %v1191, %v1229
      %v1262 = vadd.f32 %v1192, %v1230
      %v1263 = vadd.f32 %v1193, %v1231
      %v1264 = vadd.f32 %v1194, %v1232
      %v1265 = vadd.f32 %v1195, %v1233
      %v1266 = vadd.f32 %v1196, %v1234
      %v1267 = vadd.f32 %v1197, %v1235
      %v1268 = vadd.f32 %v1198, %v1236
      %v1269 = vadd.f32 %v1199, %v1237
      %v1270 = vadd.f32 %v1200, %v1238
      %v1271 = vadd.f32 %v1201, %v1239
      %v1272 = vadd.f32 %v1202, %v1240
      %v1273 = vadd.f32 %v1203, %v1241
      %v1274 = vadd.f32 %v1204, %v1242
      %v1275 = vadd.f32 %v1205, %v1243
      %v1276 = vadd.f32 %v1206, %v1244
      %v1277 = vadd.f32 %v1207, %v1245
      %v1278 = vadd.f32 %v1208, %v1246
      %v1279 = vadd.f32 %v1209, %v1247
      %v1281 = vlaneseq
      %v1282 = vshrl.u32 %v1281, 7
      %v1283 = vsub.s32 0, %v1282
      %v1284 = vrot.slane %v979, %v1283
      %v1286 = vmul.f32 %v878, %v1284
      %v1287 = vmul.f32 %v879, %v1284
      %v1288 = vmul.f32 %v880, %v1284
      %v1289 = vmul.f32 %v881, %v1284
      %v1290 = vmul.f32 %v882, %v1284
      %v1291 = vmul.f32 %v883, %v1284
      %v1292 = vmul.f32 %v884, %v1284
      %v1293 = vmul.f32 %v885, %v1284
      %v1294 = vmul.f32 %v886, %v1284
      %v1295 = vmul.f32 %v887, %v1284
      %v1296 = vmul.f32 %v888, %v1284
      %v1297 = vmul.f32 %v889, %v1284
      %v1298 = vmul.f32 %v890, %v1284
      %v1299 = vmul.f32 %v891, %v1284
      %v1300 = vmul.f32 %v892, %v1284
      %v1301 = vmul.f32 %v893, %v1284
      %v1302 = vmul.f32 %v894, %v1284
      %v1303 = vmul.f32 %v895, %v1284
      %v1304 = vmul.f32 %v896, %v1284
      %v1305 = vmul.f32 %v897, %v1284
      %v1306 = vmul.f32 %v898, %v1284
      %v1307 = vmul.f32 %v899, %v1284
      %v1308 = vmul.f32 %v900, %v1284
      %v1309 = vmul.f32 %v901, %v1284
      %v1310 = vmul.f32 %v902, %v1284
      %v1311 = vmul.f32 %v903, %v1284
      %v1312 = vmul.f32 %v904, %v1284
      %v1313 = vmul.f32 %v905, %v1284
      %v1314 = vmul.f32 %v906, %v1284
      %v1315 = vmul.f32 %v907, %v1284
      %v1316 = vmul.f32 %v1284, 0.0
      %v1317 = vadd.f32 %v1248, %v1286
      %v1318 = vadd.f32 %v1249, %v1287
      %v1319 = vadd.f32 %v1250, %v1288
      %v1320 = vadd.f32 %v1251, %v1289
      %v1321 = vadd.f32 %v1252, %v1290
      %v1322 = vadd.f32 %v1253, %v1291
      %v1323 = vadd.f32 %v1254, %v1292
      %v1324 = vadd.f32 %v1255, %v1293
      %v1325 = vadd.f32 %v1256, %v1294
      %v1326 = vadd.f32 %v1257, %v1295
      %v1327 = vadd.f32 %v1258, %v1296
      %v1328 = vadd.f32 %v1259, %v1297
      %v1329 = vadd.f32 %v1260, %v1298
      %v1330 = vadd.f32 %v1261, %v1299
      %v1331 = vadd.f32 %v1262, %v1300
      %v1332 = vadd.f32 %v1263, %v1301
      %v1333 = vadd.f32 %v1264, %v1302
      %v1334 = vadd.f32 %v1265, %v1303
      %v1335 = vadd.f32 %v1266, %v1304
      %v1336 = vadd.f32 %v1267, %v1305
      %v1337 = vadd.f32 %v1268, %v1306
      %v1338 = vadd.f32 %v1269, %v1307
      %v1339 = vadd.f32 %v1270, %v1308
      %v1340 = vadd.f32 %v1271, %v1309
      %v1341 = vadd.f32 %v1272, %v1310
      %v1342 = vadd.f32 %v1273, %v1311
      %v1343 = vadd.f32 %v1274, %v1312
      %v1344 = vadd.f32 %v1275, %v1313
      %v1345 = vadd.f32 %v1276, %v1314
      %v1346 = vadd.f32 %v1277, %v1315
      %v1347 = vadd.f32 %v1278, %v1316
      %v1348 = vadd.f32 %v1279, %v1316
      %v1381 = vunpack.c.l.b16 %v908
      %v1382 = vunpack.c.h.b16 %v908
      %v1383 = vunpack.c.l.b16 %v909
      %v1384 = vunpack.c.h.b16 %v909
      %v1385 = vunpack.c.l.b16 %v910
      %v1386 = vunpack.c.h.b16 %v910
      %v1387 = vunpack.c.l.b16 %v911
      %v1388 = vunpack.c.h.b16 %v911
      %v1389 = vunpack.c.l.b16 %v912
      %v1390 = vunpack.c.h.b16 %v912
      %v1391 = vunpack.c.l.b16 %v913
      %v1392 = vunpack.c.h.b16 %v913
      %v1393 = vunpack.c.l.b16 %v914
      %v1394 = vunpack.c.h.b16 %v914
      %v1395 = vunpack.c.l.b16 %v915
      %v1396 = vunpack.c.h.b16 %v915
      %v1397 = vunpack.c.l.b16 %v916
      %v1398 = vunpack.c.h.b16 %v916
      %v1399 = vunpack.c.l.b16 %v917
      %v1400 = vunpack.c.h.b16 %v917
      %v1401 = vunpack.c.l.b16 %v918
      %v1402 = vunpack.c.h.b16 %v918
      %v1403 = vunpack.c.l.b16 %v919
      %v1404 = vunpack.c.h.b16 %v919
      %v1405 = vunpack.c.l.b16 %v920
      %v1406 = vunpack.c.h.b16 %v920
      %v1407 = vunpack.c.l.b16 %v921
      %v1408 = vunpack.c.h.b16 %v921
      %v1409 = vunpack.c.l.b16 %v922
      %v1410 = vunpack.c.h.b16 %v922
      %v1411 = vunpack.c.l.b16 %v923
      %v1412 = vunpack.c.h.b16 %v923
      %v1413 = vunpack.c.l.b16 %v924
      %v1414 = vunpack.c.h.b16 %v924
      %v1415 = vunpack.c.l.b16 %v925
      %v1416 = vunpack.c.h.b16 %v925
      %v1417 = vunpack.c.l.b16 %v926
      %v1418 = vunpack.c.h.b16 %v926
      %v1419 = vunpack.c.l.b16 %v927
      %v1420 = vunpack.c.h.b16 %v927
      %v1421 = vunpack.c.l.b16 %v928
      %v1422 = vunpack.c.h.b16 %v928
      %v1423 = vunpack.c.l.b16 %v929
      %v1424 = vunpack.c.h.b16 %v929
      %v1425 = vunpack.c.l.b16 %v930
      %v1426 = vunpack.c.h.b16 %v930
      %v1427 = vunpack.c.l.b16 %v931
      %v1428 = vunpack.c.h.b16 %v931
      %v1429 = vunpack.c.l.b16 %v932
      %v1430 = vunpack.c.h.b16 %v932
      %v1431 = vunpack.c.l.b16 %v933
      %v1432 = vunpack.c.h.b16 %v933
      %v1433 = vunpack.c.l.b16 %v934
      %v1434 = vunpack.c.h.b16 %v934
      %v1435 = vunpack.c.l.b16 %v935
      %v1436 = vunpack.c.h.b16 %v935
      %v1437 = vunpack.c.l.b16 %v936
      %v1438 = vunpack.c.h.b16 %v936
      %v1439 = vunpack.c.l.b16 %v937
      %v1440 = vunpack.c.h.b16 %v937
      %v1441 = vunpack.c.l.b16 %v938
      %v1442 = vunpack.c.h.b16 %v938
      %v1443 = vunpack.c.l.b16 %v939
      %v1444 = vunpack.c.h.b16 %v939
      %v1445 = vpack.c.b16 %v1383, %v1381
      %v1446 = vpack.c.b16 %v1384, %v1382
      %v1447 = vpack.c.b16 %v1387, %v1385
      %v1448 = vpack.c.b16 %v1388, %v1386
      %v1449 = vpack.c.b16 %v1391, %v1389
      %v1450 = vpack.c.b16 %v1392, %v1390
      %v1451 = vpack.c.b16 %v1395, %v1393
      %v1452 = vpack.c.b16 %v1396, %v1394
      %v1453 = vpack.c.b16 %v1399, %v1397
      %v1454 = vpack.c.b16 %v1400, %v1398
      %v1455 = vpack.c.b16 %v1403, %v1401
      %v1456 = vpack.c.b16 %v1404, %v1402
      %v1457 = vpack.c.b16 %v1407, %v1405
      %v1458 = vpack.c.b16 %v1408, %v1406
      %v1459 = vpack.c.b16 %v1411, %v1409
      %v1460 = vpack.c.b16 %v1412, %v1410
      %v1461 = vpack.c.b16 %v1415, %v1413
      %v1462 = vpack.c.b16 %v1416, %v1414
      %v1463 = vpack.c.b16 %v1419, %v1417
      %v1464 = vpack.c.b16 %v1420, %v1418
      %v1465 = vpack.c.b16 %v1423, %v1421
      %v1466 = vpack.c.b16 %v1424, %v1422
      %v1467 = vpack.c.b16 %v1427, %v1425
      %v1468 = vpack.c.b16 %v1428, %v1426
      %v1469 = vpack.c.b16 %v1431, %v1429
      %v1470 = vpack.c.b16 %v1432, %v1430
      %v1471 = vpack.c.b16 %v1435, %v1433
      %v1472 = vpack.c.b16 %v1436, %v1434
      %v1473 = vpack.c.b16 %v1439, %v1437
      %v1474 = vpack.c.b16 %v1440, %v1438
      %v1475 = vpack.c.b16 %v1443, %v1441
      %v1476 = vpack.c.b16 %v1444, %v1442
      %1509 = vmatprep.subr.bf16.mxu0 0
      %1510 = vmatpush1.bf16.msra.mxu0 %v1157
      %1511 = vmatprep.subr.bf16.mxu0 0
      %1512 = vmatpush1.bf16.msra.mxu0 %v1158
      %1513 = vmatprep.subr.bf16.mxu0 0
      %1514 = vmatpush1.bf16.msra.mxu0 %v1159
      %1515 = vmatprep.subr.bf16.mxu0 0
      %1516 = vmatpush1.bf16.msra.mxu0 %v1160
      %1517 = vmatprep.subr.bf16.mxu0 0
      %1518 = vmatpush1.bf16.msra.mxu0 %v1161
      %1519 = vmatprep.subr.bf16.mxu0 0
      %1520 = vmatpush1.bf16.msra.mxu0 %v1162
      %1521 = vmatprep.subr.bf16.mxu0 0
      %1522 = vmatpush1.bf16.msra.mxu0 %v1163
      %1523 = vmatprep.subr.bf16.mxu0 0
      %1524 = vmatpush1.bf16.msra.mxu0 %v1164
      %1525 = vmatprep.subr.bf16.mxu0 0
      %1526 = vmatpush1.bf16.msra.mxu0 %v1165
      %1527 = vmatprep.subr.bf16.mxu0 0
      %1528 = vmatpush1.bf16.msra.mxu0 %v1166
      %1529 = vmatprep.subr.bf16.mxu0 0
      %1530 = vmatpush1.bf16.msra.mxu0 %v1167
      %1531 = vmatprep.subr.bf16.mxu0 0
      %1532 = vmatpush1.bf16.msra.mxu0 %v1168
      %1533 = vmatprep.subr.bf16.mxu0 0
      %1534 = vmatpush1.bf16.msra.mxu0 %v1169
      %1535 = vmatprep.subr.bf16.mxu0 0
      %1536 = vmatpush1.bf16.msra.mxu0 %v1170
      %1537 = vmatprep.subr.bf16.mxu0 0
      %1538 = vmatpush1.bf16.msra.mxu0 %v1171
      %1539 = vmatprep.subr.bf16.mxu0 0
      %1540 = vmatpush1.bf16.msra.mxu0 %v1172
      %1541 = vmatprep.mubr.bf16.mxu0 %v1446
      %1542 = vmatmul.mubr.bf16.gmra.mrb[0].mxu0 %v1445
      %v1543 = vpop.f32.mrb[0].mxu0
      %v1544 = vadd.f32 %v1317, %v1543
      %v1545 = vpop.f32.mrb[0].mxu0
      %v1546 = vpop.f32.mrb[0].mxu0
      %v1547 = vadd.f32 %v1318, %v1546
      %v1548 = vpop.f32.mrb[0].mxu0
      %1549 = vmatprep.mubr.bf16.mxu0 %v1448
      %1550 = vmatmul.mubr.bf16.gmra.mrb[0].mxu0 %v1447
      %v1551 = vpop.f32.mrb[0].mxu0
      %v1552 = vadd.f32 %v1319, %v1551
      %v1553 = vpop.f32.mrb[0].mxu0
      %v1554 = vpop.f32.mrb[0].mxu0
      %v1555 = vadd.f32 %v1320, %v1554
      %v1556 = vpop.f32.mrb[0].mxu0
      %1557 = vmatprep.mubr.bf16.mxu0 %v1450
      %1558 = vmatmul.mubr.bf16.gmra.mrb[0].mxu0 %v1449
      %v1559 = vpop.f32.mrb[0].mxu0
      %v1560 = vadd.f32 %v1321, %v1559
      %v1561 = vpop.f32.mrb[0].mxu0
      %v1562 = vpop.f32.mrb[0].mxu0
      %v1563 = vadd.f32 %v1322, %v1562
      %v1564 = vpop.f32.mrb[0].mxu0
      %1565 = vmatprep.mubr.bf16.mxu0 %v1452
      %1566 = vmatmul.mubr.bf16.gmra.mrb[0].mxu0 %v1451
      %v1567 = vpop.f32.mrb[0].mxu0
      %v1568 = vadd.f32 %v1323, %v1567
      %v1569 = vpop.f32.mrb[0].mxu0
      %v1570 = vpop.f32.mrb[0].mxu0
      %v1571 = vadd.f32 %v1324, %v1570
      %v1572 = vpop.f32.mrb[0].mxu0
      %1573 = vmatprep.mubr.bf16.mxu0 %v1454
      %1574 = vmatmul.mubr.bf16.gmra.mrb[0].mxu0 %v1453
      %v1575 = vpop.f32.mrb[0].mxu0
      %v1576 = vadd.f32 %v1325, %v1575
      %v1577 = vpop.f32.mrb[0].mxu0
      %v1578 = vpop.f32.mrb[0].mxu0
      %v1579 = vadd.f32 %v1326, %v1578
      %v1580 = vpop.f32.mrb[0].mxu0
      %1581 = vmatprep.mubr.bf16.mxu0 %v1456
      %1582 = vmatmul.mubr.bf16.gmra.mrb[0].mxu0 %v1455
      %v1583 = vpop.f32.mrb[0].mxu0
      %v1584 = vadd.f32 %v1327, %v1583
      %v1585 = vpop.f32.mrb[0].mxu0
      %v1586 = vpop.f32.mrb[0].mxu0
      %v1587 = vadd.f32 %v1328, %v1586
      %v1588 = vpop.f32.mrb[0].mxu0
      %1589 = vmatprep.mubr.bf16.mxu0 %v1458
      %1590 = vmatmul.mubr.bf16.gmra.mrb[0].mxu0 %v1457
      %v1591 = vpop.f32.mrb[0].mxu0
      %v1592 = vadd.f32 %v1329, %v1591
      %v1593 = vpop.f32.mrb[0].mxu0
      %v1594 = vpop.f32.mrb[0].mxu0
      %v1595 = vadd.f32 %v1330, %v1594
      %v1596 = vpop.f32.mrb[0].mxu0
      %1597 = vmatprep.mubr.bf16.mxu0 %v1460
      %1598 = vmatmul.mubr.bf16.gmra.mrb[0].mxu0 %v1459
      %v1599 = vpop.f32.mrb[0].mxu0
      %v1600 = vadd.f32 %v1331, %v1599
      %v1601 = vpop.f32.mrb[0].mxu0
      %v1602 = vpop.f32.mrb[0].mxu0
      %v1603 = vadd.f32 %v1332, %v1602
      %v1604 = vpop.f32.mrb[0].mxu0
      %1605 = vmatprep.mubr.bf16.mxu0 %v1462
      %1606 = vmatmul.mubr.bf16.gmra.mrb[0].mxu0 %v1461
      %v1607 = vpop.f32.mrb[0].mxu0
      %v1608 = vadd.f32 %v1333, %v1607
      %v1609 = vpop.f32.mrb[0].mxu0
      %v1610 = vpop.f32.mrb[0].mxu0
      %v1611 = vadd.f32 %v1334, %v1610
      %v1612 = vpop.f32.mrb[0].mxu0
      %1613 = vmatprep.mubr.bf16.mxu0 %v1464
      %1614 = vmatmul.mubr.bf16.gmra.mrb[0].mxu0 %v1463
      %v1615 = vpop.f32.mrb[0].mxu0
      %v1616 = vadd.f32 %v1335, %v1615
      %v1617 = vpop.f32.mrb[0].mxu0
      %v1618 = vpop.f32.mrb[0].mxu0
      %v1619 = vadd.f32 %v1336, %v1618
      %v1620 = vpop.f32.mrb[0].mxu0
      %1621 = vmatprep.mubr.bf16.mxu0 %v1466
      %1622 = vmatmul.mubr.bf16.gmra.mrb[0].mxu0 %v1465
      %v1623 = vpop.f32.mrb[0].mxu0
      %v1624 = vadd.f32 %v1337, %v1623
      %v1625 = vpop.f32.mrb[0].mxu0
      %v1626 = vpop.f32.mrb[0].mxu0
      %v1627 = vadd.f32 %v1338, %v1626
      %v1628 = vpop.f32.mrb[0].mxu0
      %1629 = vmatprep.mubr.bf16.mxu0 %v1468
      %1630 = vmatmul.mubr.bf16.gmra.mrb[0].mxu0 %v1467
      %v1631 = vpop.f32.mrb[0].mxu0
      %v1632 = vadd.f32 %v1339, %v1631
      %v1633 = vpop.f32.mrb[0].mxu0
      %v1634 = vpop.f32.mrb[0].mxu0
      %v1635 = vadd.f32 %v1340, %v1634
      %v1636 = vpop.f32.mrb[0].mxu0
      %1637 = vmatprep.mubr.bf16.mxu0 %v1470
      %1638 = vmatmul.mubr.bf16.gmra.mrb[0].mxu0 %v1469
      %v1639 = vpop.f32.mrb[0].mxu0
      %v1640 = vadd.f32 %v1341, %v1639
      %v1641 = vpop.f32.mrb[0].mxu0
      %v1642 = vpop.f32.mrb[0].mxu0
      %v1643 = vadd.f32 %v1342, %v1642
      %v1644 = vpop.f32.mrb[0].mxu0
      %1645 = vmatprep.mubr.bf16.mxu0 %v1472
      %1646 = vmatmul.mubr.bf16.gmra.mrb[0].mxu0 %v1471
      %v1647 = vpop.f32.mrb[0].mxu0
      %v1648 = vadd.f32 %v1343, %v1647
      %v1649 = vpop.f32.mrb[0].mxu0
      %v1650 = vpop.f32.mrb[0].mxu0
      %v1651 = vadd.f32 %v1344, %v1650
      %v1652 = vpop.f32.mrb[0].mxu0
      %1653 = vmatprep.mubr.bf16.mxu0 %v1474
      %1654 = vmatmul.mubr.bf16.gmra.mrb[0].mxu0 %v1473
      %v1655 = vpop.f32.mrb[0].mxu0
      %v1656 = vadd.f32 %v1345, %v1655
      %v1657 = vpop.f32.mrb[0].mxu0
      %v1658 = vpop.f32.mrb[0].mxu0
      %v1659 = vadd.f32 %v1346, %v1658
      %v1660 = vpop.f32.mrb[0].mxu0
      %1661 = vmatprep.mubr.bf16.mxu0 %v1476
      %1662 = vmatmul.mubr.bf16.gmra.mrb[0].mxu0 %v1475
      %v1663 = vpop.f32.mrb[0].mxu0
      %v1664 = vadd.f32 %v1347, %v1663
      %v1665 = vpop.f32.mrb[0].mxu0
      %v1666 = vpop.f32.mrb[0].mxu0
      %v1667 = vadd.f32 %v1348, %v1666
      %v1668 = vpop.f32.mrb[0].mxu0
      %1669 = vdwg.mxu0
      %v1671 = vlaneseq
      %v1672 = vshrl.u32 %v1671, 7
      %v1673 = vsub.s32 0, %v1672
      %v1674 = vrot.slane %v974, %v1673
      %v1676 = vmul.f32 %v1674, 0.0
      %v1677 = vmul.f32 %v876, %v1674
      %v1678 = vmul.f32 %v877, %v1674
      %v1679 = vmul.f32 %v878, %v1674
      %v1680 = vmul.f32 %v879, %v1674
      %v1681 = vmul.f32 %v880, %v1674
      %v1682 = vmul.f32 %v881, %v1674
      %v1683 = vmul.f32 %v882, %v1674
      %v1684 = vmul.f32 %v883, %v1674
      %v1685 = vmul.f32 %v884, %v1674
      %v1686 = vmul.f32 %v885, %v1674
      %v1687 = vmul.f32 %v886, %v1674
      %v1688 = vmul.f32 %v887, %v1674
      %v1689 = vmul.f32 %v888, %v1674
      %v1690 = vmul.f32 %v889, %v1674
      %v1691 = vmul.f32 %v890, %v1674
      %v1692 = vmul.f32 %v891, %v1674
      %v1693 = vmul.f32 %v892, %v1674
      %v1694 = vmul.f32 %v893, %v1674
      %v1695 = vmul.f32 %v894, %v1674
      %v1696 = vmul.f32 %v895, %v1674
      %v1697 = vmul.f32 %v896, %v1674
      %v1698 = vmul.f32 %v897, %v1674
      %v1699 = vmul.f32 %v898, %v1674
      %v1700 = vmul.f32 %v899, %v1674
      %v1701 = vmul.f32 %v900, %v1674
      %v1702 = vmul.f32 %v901, %v1674
      %v1703 = vmul.f32 %v902, %v1674
      %v1704 = vmul.f32 %v903, %v1674
      %v1705 = vmul.f32 %v904, %v1674
      %v1706 = vmul.f32 %v905, %v1674
      %v1708 = vlaneseq
      %v1709 = vshrl.u32 %v1708, 7
      %v1710 = vsub.s32 0, %v1709
      %v1711 = vrot.slane %v977, %v1710
      %v1713 = vmul.f32 %v876, %v1711
      %v1714 = vmul.f32 %v877, %v1711
      %v1715 = vmul.f32 %v878, %v1711
      %v1716 = vmul.f32 %v879, %v1711
      %v1717 = vmul.f32 %v880, %v1711
      %v1718 = vmul.f32 %v881, %v1711
      %v1719 = vmul.f32 %v882, %v1711
      %v1720 = vmul.f32 %v883, %v1711
      %v1721 = vmul.f32 %v884, %v1711
      %v1722 = vmul.f32 %v885, %v1711
      %v1723 = vmul.f32 %v886, %v1711
      %v1724 = vmul.f32 %v887, %v1711
      %v1725 = vmul.f32 %v888, %v1711
      %v1726 = vmul.f32 %v889, %v1711
      %v1727 = vmul.f32 %v890, %v1711
      %v1728 = vmul.f32 %v891, %v1711
      %v1729 = vmul.f32 %v892, %v1711
      %v1730 = vmul.f32 %v893, %v1711
      %v1731 = vmul.f32 %v894, %v1711
      %v1732 = vmul.f32 %v895, %v1711
      %v1733 = vmul.f32 %v896, %v1711
      %v1734 = vmul.f32 %v897, %v1711
      %v1735 = vmul.f32 %v898, %v1711
      %v1736 = vmul.f32 %v899, %v1711
      %v1737 = vmul.f32 %v900, %v1711
      %v1738 = vmul.f32 %v901, %v1711
      %v1739 = vmul.f32 %v902, %v1711
      %v1740 = vmul.f32 %v903, %v1711
      %v1741 = vmul.f32 %v904, %v1711
      %v1742 = vmul.f32 %v905, %v1711
      %v1743 = vmul.f32 %v906, %v1711
      %v1744 = vmul.f32 %v907, %v1711
      %v1745 = vadd.f32 %v1676, %v1713
      %v1746 = vadd.f32 %v1676, %v1714
      %v1747 = vadd.f32 %v1677, %v1715
      %v1748 = vadd.f32 %v1678, %v1716
      %v1749 = vadd.f32 %v1679, %v1717
      %v1750 = vadd.f32 %v1680, %v1718
      %v1751 = vadd.f32 %v1681, %v1719
      %v1752 = vadd.f32 %v1682, %v1720
      %v1753 = vadd.f32 %v1683, %v1721
      %v1754 = vadd.f32 %v1684, %v1722
      %v1755 = vadd.f32 %v1685, %v1723
      %v1756 = vadd.f32 %v1686, %v1724
      %v1757 = vadd.f32 %v1687, %v1725
      %v1758 = vadd.f32 %v1688, %v1726
      %v1759 = vadd.f32 %v1689, %v1727
      %v1760 = vadd.f32 %v1690, %v1728
      %v1761 = vadd.f32 %v1691, %v1729
      %v1762 = vadd.f32 %v1692, %v1730
      %v1763 = vadd.f32 %v1693, %v1731
      %v1764 = vadd.f32 %v1694, %v1732
      %v1765 = vadd.f32 %v1695, %v1733
      %v1766 = vadd.f32 %v1696, %v1734
      %v1767 = vadd.f32 %v1697, %v1735
      %v1768 = vadd.f32 %v1698, %v1736
      %v1769 = vadd.f32 %v1699, %v1737
      %v1770 = vadd.f32 %v1700, %v1738
      %v1771 = vadd.f32 %v1701, %v1739
      %v1772 = vadd.f32 %v1702, %v1740
      %v1773 = vadd.f32 %v1703, %v1741
      %v1774 = vadd.f32 %v1704, %v1742
      %v1775 = vadd.f32 %v1705, %v1743
      %v1776 = vadd.f32 %v1706, %v1744
      %v1778 = vlaneseq
      %v1779 = vshrl.u32 %v1778, 7
      %v1780 = vsub.s32 0, %v1779
      %v1781 = vrot.slane %v980, %v1780
      %v1783 = vmul.f32 %v878, %v1781
      %v1784 = vmul.f32 %v879, %v1781
      %v1785 = vmul.f32 %v880, %v1781
      %v1786 = vmul.f32 %v881, %v1781
      %v1787 = vmul.f32 %v882, %v1781
      %v1788 = vmul.f32 %v883, %v1781
      %v1789 = vmul.f32 %v884, %v1781
      %v1790 = vmul.f32 %v885, %v1781
      %v1791 = vmul.f32 %v886, %v1781
      %v1792 = vmul.f32 %v887, %v1781
      %v1793 = vmul.f32 %v888, %v1781
      %v1794 = vmul.f32 %v889, %v1781
      %v1795 = vmul.f32 %v890, %v1781
      %v1796 = vmul.f32 %v891, %v1781
      %v1797 = vmul.f32 %v892, %v1781
      %v1798 = vmul.f32 %v893, %v1781
      %v1799 = vmul.f32 %v894, %v1781
      %v1800 = vmul.f32 %v895, %v1781
      %v1801 = vmul.f32 %v896, %v1781
      %v1802 = vmul.f32 %v897, %v1781
      %v1803 = vmul.f32 %v898, %v1781
      %v1804 = vmul.f32 %v899, %v1781
      %v1805 = vmul.f32 %v900, %v1781
      %v1806 = vmul.f32 %v901, %v1781
      %v1807 = vmul.f32 %v902, %v1781
      %v1808 = vmul.f32 %v903, %v1781
      %v1809 = vmul.f32 %v904, %v1781
      %v1810 = vmul.f32 %v905, %v1781
      %v1811 = vmul.f32 %v906, %v1781
      %v1812 = vmul.f32 %v907, %v1781
      %v1813 = vmul.f32 %v1781, 0.0
      %v1814 = vadd.f32 %v1745, %v1783
      %v1815 = vadd.f32 %v1746, %v1784
      %v1816 = vadd.f32 %v1747, %v1785
      %v1817 = vadd.f32 %v1748, %v1786
      %v1818 = vadd.f32 %v1749, %v1787
      %v1819 = vadd.f32 %v1750, %v1788
      %v1820 = vadd.f32 %v1751, %v1789
      %v1821 = vadd.f32 %v1752, %v1790
      %v1822 = vadd.f32 %v1753, %v1791
      %v1823 = vadd.f32 %v1754, %v1792
      %v1824 = vadd.f32 %v1755, %v1793
      %v1825 = vadd.f32 %v1756, %v1794
      %v1826 = vadd.f32 %v1757, %v1795
      %v1827 = vadd.f32 %v1758, %v1796
      %v1828 = vadd.f32 %v1759, %v1797
      %v1829 = vadd.f32 %v1760, %v1798
      %v1830 = vadd.f32 %v1761, %v1799
      %v1831 = vadd.f32 %v1762, %v1800
      %v1832 = vadd.f32 %v1763, %v1801
      %v1833 = vadd.f32 %v1764, %v1802
      %v1834 = vadd.f32 %v1765, %v1803
      %v1835 = vadd.f32 %v1766, %v1804
      %v1836 = vadd.f32 %v1767, %v1805
      %v1837 = vadd.f32 %v1768, %v1806
      %v1838 = vadd.f32 %v1769, %v1807
      %v1839 = vadd.f32 %v1770, %v1808
      %v1840 = vadd.f32 %v1771, %v1809
      %v1841 = vadd.f32 %v1772, %v1810
      %v1842 = vadd.f32 %v1773, %v1811
      %v1843 = vadd.f32 %v1774, %v1812
      %v1844 = vadd.f32 %v1775, %v1813
      %v1845 = vadd.f32 %v1776, %v1813
      %v1846 = vpack.c.bf16 %v1815, %v1814
      %v1847 = vpack.c.bf16 %v1817, %v1816
      %v1848 = vpack.c.bf16 %v1819, %v1818
      %v1849 = vpack.c.bf16 %v1821, %v1820
      %v1850 = vpack.c.bf16 %v1823, %v1822
      %v1851 = vpack.c.bf16 %v1825, %v1824
      %v1852 = vpack.c.bf16 %v1827, %v1826
      %v1853 = vpack.c.bf16 %v1829, %v1828
      %v1854 = vpack.c.bf16 %v1831, %v1830
      %v1855 = vpack.c.bf16 %v1833, %v1832
      %v1856 = vpack.c.bf16 %v1835, %v1834
      %v1857 = vpack.c.bf16 %v1837, %v1836
      %v1858 = vpack.c.bf16 %v1839, %v1838
      %v1859 = vpack.c.bf16 %v1841, %v1840
      %v1860 = vpack.c.bf16 %v1843, %v1842
      %v1861 = vpack.c.bf16 %v1845, %v1844
      %v1894 = vunpack.c.l.b16 %v940
      %v1895 = vunpack.c.h.b16 %v940
      %v1896 = vunpack.c.l.b16 %v941
      %v1897 = vunpack.c.h.b16 %v941
      %v1898 = vunpack.c.l.b16 %v942
      %v1899 = vunpack.c.h.b16 %v942
      %v1900 = vunpack.c.l.b16 %v943
      %v1901 = vunpack.c.h.b16 %v943
      %v1902 = vunpack.c.l.b16 %v944
      %v1903 = vunpack.c.h.b16 %v944
      %v1904 = vunpack.c.l.b16 %v945
      %v1905 = vunpack.c.h.b16 %v945
      %v1906 = vunpack.c.l.b16 %v946
      %v1907 = vunpack.c.h.b16 %v946
      %v1908 = vunpack.c.l.b16 %v947
      %v1909 = vunpack.c.h.b16 %v947
      %v1910 = vunpack.c.l.b16 %v948
      %v1911 = vunpack.c.h.b16 %v948
      %v1912 = vunpack.c.l.b16 %v949
      %v1913 = vunpack.c.h.b16 %v949
      %v1914 = vunpack.c.l.b16 %v950
      %v1915 = vunpack.c.h.b16 %v950
      %v1916 = vunpack.c.l.b16 %v951
      %v1917 = vunpack.c.h.b16 %v951
      %v1918 = vunpack.c.l.b16 %v952
      %v1919 = vunpack.c.h.b16 %v952
      %v1920 = vunpack.c.l.b16 %v953
      %v1921 = vunpack.c.h.b16 %v953
      %v1922 = vunpack.c.l.b16 %v954
      %v1923 = vunpack.c.h.b16 %v954
      %v1924 = vunpack.c.l.b16 %v955
      %v1925 = vunpack.c.h.b16 %v955
      %v1926 = vunpack.c.l.b16 %v956
      %v1927 = vunpack.c.h.b16 %v956
      %v1928 = vunpack.c.l.b16 %v957
      %v1929 = vunpack.c.h.b16 %v957
      %v1930 = vunpack.c.l.b16 %v958
      %v1931 = vunpack.c.h.b16 %v958
      %v1932 = vunpack.c.l.b16 %v959
      %v1933 = vunpack.c.h.b16 %v959
      %v1934 = vunpack.c.l.b16 %v960
      %v1935 = vunpack.c.h.b16 %v960
      %v1936 = vunpack.c.l.b16 %v961
      %v1937 = vunpack.c.h.b16 %v961
      %v1938 = vunpack.c.l.b16 %v962
      %v1939 = vunpack.c.h.b16 %v962
      %v1940 = vunpack.c.l.b16 %v963
      %v1941 = vunpack.c.h.b16 %v963
      %v1942 = vunpack.c.l.b16 %v964
      %v1943 = vunpack.c.h.b16 %v964
      %v1944 = vunpack.c.l.b16 %v965
      %v1945 = vunpack.c.h.b16 %v965
      %v1946 = vunpack.c.l.b16 %v966
      %v1947 = vunpack.c.h.b16 %v966
      %v1948 = vunpack.c.l.b16 %v967
      %v1949 = vunpack.c.h.b16 %v967
      %v1950 = vunpack.c.l.b16 %v968
      %v1951 = vunpack.c.h.b16 %v968
      %v1952 = vunpack.c.l.b16 %v969
      %v1953 = vunpack.c.h.b16 %v969
      %v1954 = vunpack.c.l.b16 %v970
      %v1955 = vunpack.c.h.b16 %v970
      %v1956 = vunpack.c.l.b16 %v971
      %v1957 = vunpack.c.h.b16 %v971
      %v1958 = vpack.c.b16 %v1896, %v1894
      %v1959 = vpack.c.b16 %v1897, %v1895
      %v1960 = vpack.c.b16 %v1900, %v1898
      %v1961 = vpack.c.b16 %v1901, %v1899
      %v1962 = vpack.c.b16 %v1904, %v1902
      %v1963 = vpack.c.b16 %v1905, %v1903
      %v1964 = vpack.c.b16 %v1908, %v1906
      %v1965 = vpack.c.b16 %v1909, %v1907
      %v1966 = vpack.c.b16 %v1912, %v1910
      %v1967 = vpack.c.b16 %v1913, %v1911
      %v1968 = vpack.c.b16 %v1916, %v1914
      %v1969 = vpack.c.b16 %v1917, %v1915
      %v1970 = vpack.c.b16 %v1920, %v1918
      %v1971 = vpack.c.b16 %v1921, %v1919
      %v1972 = vpack.c.b16 %v1924, %v1922
      %v1973 = vpack.c.b16 %v1925, %v1923
      %v1974 = vpack.c.b16 %v1928, %v1926
      %v1975 = vpack.c.b16 %v1929, %v1927
      %v1976 = vpack.c.b16 %v1932, %v1930
      %v1977 = vpack.c.b16 %v1933, %v1931
      %v1978 = vpack.c.b16 %v1936, %v1934
      %v1979 = vpack.c.b16 %v1937, %v1935
      %v1980 = vpack.c.b16 %v1940, %v1938
      %v1981 = vpack.c.b16 %v1941, %v1939
      %v1982 = vpack.c.b16 %v1944, %v1942
      %v1983 = vpack.c.b16 %v1945, %v1943
      %v1984 = vpack.c.b16 %v1948, %v1946
      %v1985 = vpack.c.b16 %v1949, %v1947
      %v1986 = vpack.c.b16 %v1952, %v1950
      %v1987 = vpack.c.b16 %v1953, %v1951
      %v1988 = vpack.c.b16 %v1956, %v1954
      %v1989 = vpack.c.b16 %v1957, %v1955
      %2022 = vmatprep.subr.bf16.mxu0 0
      %2023 = vmatpush1.bf16.msra.mxu0 %v1846
      %2024 = vmatprep.subr.bf16.mxu0 0
      %2025 = vmatpush1.bf16.msra.mxu0 %v1847
      %2026 = vmatprep.subr.bf16.mxu0 0
      %2027 = vmatpush1.bf16.msra.mxu0 %v1848
      %2028 = vmatprep.subr.bf16.mxu0 0
      %2029 = vmatpush1.bf16.msra.mxu0 %v1849
      %2030 = vmatprep.subr.bf16.mxu0 0
      %2031 = vmatpush1.bf16.msra.mxu0 %v1850
      %2032 = vmatprep.subr.bf16.mxu0 0
      %2033 = vmatpush1.bf16.msra.mxu0 %v1851
      %2034 = vmatprep.subr.bf16.mxu0 0
      %2035 = vmatpush1.bf16.msra.mxu0 %v1852
      %2036 = vmatprep.subr.bf16.mxu0 0
      %2037 = vmatpush1.bf16.msra.mxu0 %v1853
      %2038 = vmatprep.subr.bf16.mxu0 0
      %2039 = vmatpush1.bf16.msra.mxu0 %v1854
      %2040 = vmatprep.subr.bf16.mxu0 0
      %2041 = vmatpush1.bf16.msra.mxu0 %v1855
      %2042 = vmatprep.subr.bf16.mxu0 0
      %2043 = vmatpush1.bf16.msra.mxu0 %v1856
      %2044 = vmatprep.subr.bf16.mxu0 0
      %2045 = vmatpush1.bf16.msra.mxu0 %v1857
      %2046 = vmatprep.subr.bf16.mxu0 0
      %2047 = vmatpush1.bf16.msra.mxu0 %v1858
      %2048 = vmatprep.subr.bf16.mxu0 0
      %2049 = vmatpush1.bf16.msra.mxu0 %v1859
      %2050 = vmatprep.subr.bf16.mxu0 0
      %2051 = vmatpush1.bf16.msra.mxu0 %v1860
      %2052 = vmatprep.subr.bf16.mxu0 0
      %2053 = vmatpush1.bf16.msra.mxu0 %v1861
      %2054 = vmatprep.mubr.bf16.mxu0 %v1959
      %2055 = vmatmul.mubr.bf16.gmra.mrb[0].mxu0 %v1958
      %v2056 = vpop.f32.mrb[0].mxu0
      %v2057 = vadd.f32 0.0, %v2056
      %v2058 = vpop.f32.mrb[0].mxu0
      %v2059 = vpop.f32.mrb[0].mxu0
      %v2060 = vadd.f32 0.0, %v2059
      %v2061 = vpop.f32.mrb[0].mxu0
      %2062 = vmatprep.mubr.bf16.mxu0 %v1961
      %2063 = vmatmul.mubr.bf16.gmra.mrb[0].mxu0 %v1960
      %v2064 = vpop.f32.mrb[0].mxu0
      %v2065 = vadd.f32 0.0, %v2064
      %v2066 = vpop.f32.mrb[0].mxu0
      %v2067 = vpop.f32.mrb[0].mxu0
      %v2068 = vadd.f32 0.0, %v2067
      %v2069 = vpop.f32.mrb[0].mxu0
      %2070 = vmatprep.mubr.bf16.mxu0 %v1963
      %2071 = vmatmul.mubr.bf16.gmra.mrb[0].mxu0 %v1962
      %v2072 = vpop.f32.mrb[0].mxu0
      %v2073 = vadd.f32 0.0, %v2072
      %v2074 = vpop.f32.mrb[0].mxu0
      %v2075 = vpop.f32.mrb[0].mxu0
      %v2076 = vadd.f32 0.0, %v2075
      %v2077 = vpop.f32.mrb[0].mxu0
      %2078 = vmatprep.mubr.bf16.mxu0 %v1965
      %2079 = vmatmul.mubr.bf16.gmra.mrb[0].mxu0 %v1964
      %v2080 = vpop.f32.mrb[0].mxu0
      %v2081 = vadd.f32 0.0, %v2080
      %v2082 = vpop.f32.mrb[0].mxu0
      %v2083 = vpop.f32.mrb[0].mxu0
      %v2084 = vadd.f32 0.0, %v2083
      %v2085 = vpop.f32.mrb[0].mxu0
      %2086 = vmatprep.mubr.bf16.mxu0 %v1967
      %2087 = vmatmul.mubr.bf16.gmra.mrb[0].mxu0 %v1966
      %v2088 = vpop.f32.mrb[0].mxu0
      %v2089 = vadd.f32 0.0, %v2088
      %v2090 = vpop.f32.mrb[0].mxu0
      %v2091 = vpop.f32.mrb[0].mxu0
      %v2092 = vadd.f32 0.0, %v2091
      %v2093 = vpop.f32.mrb[0].mxu0
      %2094 = vmatprep.mubr.bf16.mxu0 %v1969
      %2095 = vmatmul.mubr.bf16.gmra.mrb[0].mxu0 %v1968
      %v2096 = vpop.f32.mrb[0].mxu0
      %v2097 = vadd.f32 0.0, %v2096
      %v2098 = vpop.f32.mrb[0].mxu0
      %v2099 = vpop.f32.mrb[0].mxu0
      %v2100 = vadd.f32 0.0, %v2099
      %v2101 = vpop.f32.mrb[0].mxu0
      %2102 = vmatprep.mubr.bf16.mxu0 %v1971
      %2103 = vmatmul.mubr.bf16.gmra.mrb[0].mxu0 %v1970
      %v2104 = vpop.f32.mrb[0].mxu0
      %v2105 = vadd.f32 0.0, %v2104
      %v2106 = vpop.f32.mrb[0].mxu0
      %v2107 = vpop.f32.mrb[0].mxu0
      %v2108 = vadd.f32 0.0, %v2107
      %v2109 = vpop.f32.mrb[0].mxu0
      %2110 = vmatprep.mubr.bf16.mxu0 %v1973
      %2111 = vmatmul.mubr.bf16.gmra.mrb[0].mxu0 %v1972
      %v2112 = vpop.f32.mrb[0].mxu0
      %v2113 = vadd.f32 0.0, %v2112
      %v2114 = vpop.f32.mrb[0].mxu0
      %v2115 = vpop.f32.mrb[0].mxu0
      %v2116 = vadd.f32 0.0, %v2115
      %v2117 = vpop.f32.mrb[0].mxu0
      %2118 = vmatprep.mubr.bf16.mxu0 %v1975
      %2119 = vmatmul.mubr.bf16.gmra.mrb[0].mxu0 %v1974
      %v2120 = vpop.f32.mrb[0].mxu0
      %v2121 = vadd.f32 0.0, %v2120
      %v2122 = vpop.f32.mrb[0].mxu0
      %v2123 = vpop.f32.mrb[0].mxu0
      %v2124 = vadd.f32 0.0, %v2123
      %v2125 = vpop.f32.mrb[0].mxu0
      %2126 = vmatprep.mubr.bf16.mxu0 %v1977
      %2127 = vmatmul.mubr.bf16.gmra.mrb[0].mxu0 %v1976
      %v2128 = vpop.f32.mrb[0].mxu0
      %v2129 = vadd.f32 0.0, %v2128
      %v2130 = vpop.f32.mrb[0].mxu0
      %v2131 = vpop.f32.mrb[0].mxu0
      %v2132 = vadd.f32 0.0, %v2131
      %v2133 = vpop.f32.mrb[0].mxu0
      %2134 = vmatprep.mubr.bf16.mxu0 %v1979
      %2135 = vmatmul.mubr.bf16.gmra.mrb[0].mxu0 %v1978
      %v2136 = vpop.f32.mrb[0].mxu0
      %v2137 = vadd.f32 0.0, %v2136
      %v2138 = vpop.f32.mrb[0].mxu0
      %v2139 = vpop.f32.mrb[0].mxu0
      %v2140 = vadd.f32 0.0, %v2139
      %v2141 = vpop.f32.mrb[0].mxu0
      %2142 = vmatprep.mubr.bf16.mxu0 %v1981
      %2143 = vmatmul.mubr.bf16.gmra.mrb[0].mxu0 %v1980
      %v2144 = vpop.f32.mrb[0].mxu0
      %v2145 = vadd.f32 0.0, %v2144
      %v2146 = vpop.f32.mrb[0].mxu0
      %v2147 = vpop.f32.mrb[0].mxu0
      %v2148 = vadd.f32 0.0, %v2147
      %v2149 = vpop.f32.mrb[0].mxu0
      %2150 = vmatprep.mubr.bf16.mxu0 %v1983
      %2151 = vmatmul.mubr.bf16.gmra.mrb[0].mxu0 %v1982
      %v2152 = vpop.f32.mrb[0].mxu0
      %v2153 = vadd.f32 0.0, %v2152
      %v2154 = vpop.f32.mrb[0].mxu0
      %v2155 = vpop.f32.mrb[0].mxu0
      %v2156 = vadd.f32 0.0, %v2155
      %v2157 = vpop.f32.mrb[0].mxu0
      %2158 = vmatprep.mubr.bf16.mxu0 %v1985
      %2159 = vmatmul.mubr.bf16.gmra.mrb[0].mxu0 %v1984
      %v2160 = vpop.f32.mrb[0].mxu0
      %v2161 = vadd.f32 0.0, %v2160
      %v2162 = vpop.f32.mrb[0].mxu0
      %v2163 = vpop.f32.mrb[0].mxu0
      %v2164 = vadd.f32 0.0, %v2163
      %v2165 = vpop.f32.mrb[0].mxu0
      %2166 = vmatprep.mubr.bf16.mxu0 %v1987
      %2167 = vmatmul.mubr.bf16.gmra.mrb[0].mxu0 %v1986
      %v2168 = vpop.f32.mrb[0].mxu0
      %v2169 = vadd.f32 0.0, %v2168
      %v2170 = vpop.f32.mrb[0].mxu0
      %v2171 = vpop.f32.mrb[0].mxu0
      %v2172 = vadd.f32 0.0, %v2171
      %v2173 = vpop.f32.mrb[0].mxu0
      %2174 = vmatprep.mubr.bf16.mxu0 %v1989
      %2175 = vmatmul.mubr.bf16.gmra.mrb[0].mxu0 %v1988
      %v2176 = vpop.f32.mrb[0].mxu0
      %v2177 = vadd.f32 0.0, %v2176
      %v2178 = vpop.f32.mrb[0].mxu0
      %v2179 = vpop.f32.mrb[0].mxu0
      %v2180 = vadd.f32 0.0, %v2179
      %v2181 = vpop.f32.mrb[0].mxu0
      %2182 = vdwg.mxu0
      %v2183 = vadd.f32 %v1544, %v2057
      %v2184 = vadd.f32 %v1547, %v2060
      %v2185 = vadd.f32 %v1552, %v2065
      %v2186 = vadd.f32 %v1555, %v2068
      %v2187 = vadd.f32 %v1560, %v2073
      %v2188 = vadd.f32 %v1563, %v2076
      %v2189 = vadd.f32 %v1568, %v2081
      %v2190 = vadd.f32 %v1571, %v2084
      %v2191 = vadd.f32 %v1576, %v2089
      %v2192 = vadd.f32 %v1579, %v2092
      %v2193 = vadd.f32 %v1584, %v2097
      %v2194 = vadd.f32 %v1587, %v2100
      %v2195 = vadd.f32 %v1592, %v2105
      %v2196 = vadd.f32 %v1595, %v2108
      %v2197 = vadd.f32 %v1600, %v2113
      %v2198 = vadd.f32 %v1603, %v2116
      %v2199 = vadd.f32 %v1608, %v2121
      %v2200 = vadd.f32 %v1611, %v2124
      %v2201 = vadd.f32 %v1616, %v2129
      %v2202 = vadd.f32 %v1619, %v2132
      %v2203 = vadd.f32 %v1624, %v2137
      %v2204 = vadd.f32 %v1627, %v2140
      %v2205 = vadd.f32 %v1632, %v2145
      %v2206 = vadd.f32 %v1635, %v2148
      %v2207 = vadd.f32 %v1640, %v2153
      %v2208 = vadd.f32 %v1643, %v2156
      %v2209 = vadd.f32 %v1648, %v2161
      %v2210 = vadd.f32 %v1651, %v2164
      %v2211 = vadd.f32 %v1656, %v2169
      %v2212 = vadd.f32 %v1659, %v2172
      %v2213 = vadd.f32 %v1664, %v2177
      %v2214 = vadd.f32 %v1667, %v2180
      %s2215 = scalar_lea.vmem %s2, 1
      %v2216 = vld [vmem:[%s2215] sm:$0x1]
      %v2218 = vlaneseq
      %v2219 = vshrl.u32 %v2218, 7
      %v2220 = vsub.s32 0, %v2219
      %v2221 = vrot.slane %v2216, %v2220
      %v2223 = vadd.f32 %v2183, %v2221
      %v2224 = vadd.f32 %v2184, %v2221
      %v2225 = vadd.f32 %v2185, %v2221
      %v2226 = vadd.f32 %v2186, %v2221
      %v2227 = vadd.f32 %v2187, %v2221
      %v2228 = vadd.f32 %v2188, %v2221
      %v2229 = vadd.f32 %v2189, %v2221
      %v2230 = vadd.f32 %v2190, %v2221
      %v2231 = vadd.f32 %v2191, %v2221
      %v2232 = vadd.f32 %v2192, %v2221
      %v2233 = vadd.f32 %v2193, %v2221
      %v2234 = vadd.f32 %v2194, %v2221
      %v2235 = vadd.f32 %v2195, %v2221
      %v2236 = vadd.f32 %v2196, %v2221
      %v2237 = vadd.f32 %v2197, %v2221
      %v2238 = vadd.f32 %v2198, %v2221
      %v2239 = vadd.f32 %v2199, %v2221
      %v2240 = vadd.f32 %v2200, %v2221
      %v2241 = vadd.f32 %v2201, %v2221
      %v2242 = vadd.f32 %v2202, %v2221
      %v2243 = vadd.f32 %v2203, %v2221
      %v2244 = vadd.f32 %v2204, %v2221
      %v2245 = vadd.f32 %v2205, %v2221
      %v2246 = vadd.f32 %v2206, %v2221
      %v2247 = vadd.f32 %v2207, %v2221
      %v2248 = vadd.f32 %v2208, %v2221
      %v2249 = vadd.f32 %v2209, %v2221
      %v2250 = vadd.f32 %v2210, %v2221
      %v2251 = vadd.f32 %v2211, %v2221
      %v2252 = vadd.f32 %v2212, %v2221
      %v2253 = vadd.f32 %v2213, %v2221
      %v2254 = vadd.f32 %v2214, %v2221
      %v2255 = vmax.f32 %v2223, 0.0
      %v2256 = vmax.f32 %v2224, 0.0
      %v2257 = vmax.f32 %v2225, 0.0
      %v2258 = vmax.f32 %v2226, 0.0
      %v2259 = vmax.f32 %v2227, 0.0
      %v2260 = vmax.f32 %v2228, 0.0
      %v2261 = vmax.f32 %v2229, 0.0
      %v2262 = vmax.f32 %v2230, 0.0
      %v2263 = vmax.f32 %v2231, 0.0
      %v2264 = vmax.f32 %v2232, 0.0
      %v2265 = vmax.f32 %v2233, 0.0
      %v2266 = vmax.f32 %v2234, 0.0
      %v2267 = vmax.f32 %v2235, 0.0
      %v2268 = vmax.f32 %v2236, 0.0
      %v2269 = vmax.f32 %v2237, 0.0
      %v2270 = vmax.f32 %v2238, 0.0
      %v2271 = vmax.f32 %v2239, 0.0
      %v2272 = vmax.f32 %v2240, 0.0
      %v2273 = vmax.f32 %v2241, 0.0
      %v2274 = vmax.f32 %v2242, 0.0
      %v2275 = vmax.f32 %v2243, 0.0
      %v2276 = vmax.f32 %v2244, 0.0
      %v2277 = vmax.f32 %v2245, 0.0
      %v2278 = vmax.f32 %v2246, 0.0
      %v2279 = vmax.f32 %v2247, 0.0
      %v2280 = vmax.f32 %v2248, 0.0
      %v2281 = vmax.f32 %v2249, 0.0
      %v2282 = vmax.f32 %v2250, 0.0
      %v2283 = vmax.f32 %v2251, 0.0
      %v2284 = vmax.f32 %v2252, 0.0
      %v2285 = vmax.f32 %v2253, 0.0
      %v2286 = vmax.f32 %v2254, 0.0
      %v2287 = vpack.c.bf16 %v2256, %v2255
      %v2288 = vpack.c.bf16 %v2258, %v2257
      %v2289 = vpack.c.bf16 %v2260, %v2259
      %v2290 = vpack.c.bf16 %v2262, %v2261
      %v2291 = vpack.c.bf16 %v2264, %v2263
      %v2292 = vpack.c.bf16 %v2266, %v2265
      %v2293 = vpack.c.bf16 %v2268, %v2267
      %v2294 = vpack.c.bf16 %v2270, %v2269
      %v2295 = vpack.c.bf16 %v2272, %v2271
      %v2296 = vpack.c.bf16 %v2274, %v2273
      %v2297 = vpack.c.bf16 %v2276, %v2275
      %v2298 = vpack.c.bf16 %v2278, %v2277
      %v2299 = vpack.c.bf16 %v2280, %v2279
      %v2300 = vpack.c.bf16 %v2282, %v2281
      %v2301 = vpack.c.bf16 %v2284, %v2283
      %v2302 = vpack.c.bf16 %v2286, %v2285
      %s2303 = scalar_lea.vmem %s1, 64
      %v2304 = vld [vmem:[%s2303] sm:$0xf]
      %v2305 = vld [vmem:[%s2303 + $0x4] sm:$0xf]
      %v2306 = vld [vmem:[%s2303 + $0x8] sm:$0xf]
      %v2307 = vld [vmem:[%s2303 + $0xc] sm:$0xf]
      %v2308 = vld [vmem:[%s2303 + $0x10] sm:$0xf]
      %v2309 = vld [vmem:[%s2303 + $0x14] sm:$0xf]
      %v2310 = vld [vmem:[%s2303 + $0x18] sm:$0xf]
      %v2311 = vld [vmem:[%s2303 + $0x1c] sm:$0xf]
      %v2312 = vld [vmem:[%s2303 + $0x20] sm:$0xf]
      %v2313 = vld [vmem:[%s2303 + $0x24] sm:$0xf]
      %v2314 = vld [vmem:[%s2303 + $0x28] sm:$0xf]
      %v2315 = vld [vmem:[%s2303 + $0x2c] sm:$0xf]
      %v2316 = vld [vmem:[%s2303 + $0x30] sm:$0xf]
      %v2317 = vld [vmem:[%s2303 + $0x34] sm:$0xf]
      %v2318 = vld [vmem:[%s2303 + $0x38] sm:$0xf]
      %v2319 = vld [vmem:[%s2303 + $0x3c] sm:$0xf]
      %s2320 = scalar_lea.vmem %s2, 2
      %v2321 = vld [vmem:[%s2320] sm:$0x1]
      %v2323 = vlaneseq
      %v2324 = vshrl.u32 %v2323, 7
      %v2325 = vsub.s32 0, %v2324
      %v2326 = vrot.slane %v2321, %v2325
      %v2344 = vunpack.c.l.b16 %v2304
      %v2345 = vunpack.c.l.b16 %v2305
      %v2346 = vunpack.c.l.b16 %v2306
      %v2347 = vunpack.c.l.b16 %v2307
      %v2348 = vunpack.c.l.b16 %v2308
      %v2349 = vunpack.c.l.b16 %v2309
      %v2350 = vunpack.c.l.b16 %v2310
      %v2351 = vunpack.c.l.b16 %v2311
      %v2352 = vunpack.c.l.b16 %v2312
      %v2353 = vunpack.c.l.b16 %v2313
      %v2354 = vunpack.c.l.b16 %v2314
      %v2355 = vunpack.c.l.b16 %v2315
      %v2356 = vunpack.c.l.b16 %v2316
      %v2357 = vunpack.c.l.b16 %v2317
      %v2358 = vunpack.c.l.b16 %v2318
      %v2359 = vunpack.c.l.b16 %v2319
      %v2360 = vpack.c.b16 %v2345, %v2344
      %v2361 = vpack.c.b16 %v2347, %v2346
      %v2362 = vpack.c.b16 %v2349, %v2348
      %v2363 = vpack.c.b16 %v2351, %v2350
      %v2364 = vpack.c.b16 %v2353, %v2352
      %v2365 = vpack.c.b16 %v2355, %v2354
      %v2366 = vpack.c.b16 %v2357, %v2356
      %v2367 = vpack.c.b16 %v2359, %v2358
      %2376 = vmatprep.subr.bf16.mxu0 0
      %2377 = vmatpush1.bf16.msra.mxu0 %v2360
      %2378 = vmatprep.subr.bf16.mxu0 0
      %2379 = vmatpush1.bf16.msra.mxu0 %v2361
      %2380 = vmatprep.subr.bf16.mxu0 0
      %2381 = vmatpush1.bf16.msra.mxu0 %v2362
      %2382 = vmatprep.subr.bf16.mxu0 0
      %2383 = vmatpush1.bf16.msra.mxu0 %v2363
      %2384 = vmatprep.subr.bf16.mxu0 0
      %2385 = vmatpush1.bf16.msra.mxu0 %v2364
      %2386 = vmatprep.subr.bf16.mxu0 0
      %2387 = vmatpush1.bf16.msra.mxu0 %v2365
      %2388 = vmatprep.subr.bf16.mxu0 0
      %2389 = vmatpush1.bf16.msra.mxu0 %v2366
      %2390 = vmatprep.subr.bf16.mxu0 0
      %2391 = vmatpush1.bf16.msra.mxu0 %v2367
      %2392 = vmatprep.subr.bf16.mxu0 0
      %2393 = vmatpush1.bf16.msra.mxu0 0
      %2394 = vmatprep.subr.bf16.mxu0 0
      %2395 = vmatpush1.bf16.msra.mxu0 0
      %2396 = vmatprep.subr.bf16.mxu0 0
      %2397 = vmatpush1.bf16.msra.mxu0 0
      %2398 = vmatprep.subr.bf16.mxu0 0
      %2399 = vmatpush1.bf16.msra.mxu0 0
      %2400 = vmatprep.subr.bf16.mxu0 0
      %2401 = vmatpush1.bf16.msra.mxu0 0
      %2402 = vmatprep.subr.bf16.mxu0 0
      %2403 = vmatpush1.bf16.msra.mxu0 0
      %2404 = vmatprep.subr.bf16.mxu0 0
      %2405 = vmatpush1.bf16.msra.mxu0 0
      %2406 = vmatprep.subr.bf16.mxu0 0
      %2407 = vmatpush1.bf16.msra.mxu0 0
      %2408 = vmatprep.mubr.bf16.mxu0 0
      %2409 = vmatmul.mubr.bf16.gmra.mrb[0].mxu0 %v2287
      %v2410 = vpop.f32.mrb[0].mxu0
      %v2411 = vadd.f32 %v2326, %v2410
      %v2412 = vpop.f32.mrb[0].mxu0
      %v2413 = vpop.f32.mrb[0].mxu0
      %v2414 = vadd.f32 %v2326, %v2413
      %v2415 = vpop.f32.mrb[0].mxu0
      %2416 = vmatprep.mubr.bf16.mxu0 0
      %2417 = vmatmul.mubr.bf16.gmra.mrb[0].mxu0 %v2288
      %v2418 = vpop.f32.mrb[0].mxu0
      %v2419 = vadd.f32 %v2326, %v2418
      %v2420 = vpop.f32.mrb[0].mxu0
      %v2421 = vpop.f32.mrb[0].mxu0
      %v2422 = vadd.f32 %v2326, %v2421
      %v2423 = vpop.f32.mrb[0].mxu0
      %2424 = vmatprep.mubr.bf16.mxu0 0
      %2425 = vmatmul.mubr.bf16.gmra.mrb[0].mxu0 %v2289
      %v2426 = vpop.f32.mrb[0].mxu0
      %v2427 = vadd.f32 %v2326, %v2426
      %v2428 = vpop.f32.mrb[0].mxu0
      %v2429 = vpop.f32.mrb[0].mxu0
      %v2430 = vadd.f32 %v2326, %v2429
      %v2431 = vpop.f32.mrb[0].mxu0
      %2432 = vmatprep.mubr.bf16.mxu0 0
      %2433 = vmatmul.mubr.bf16.gmra.mrb[0].mxu0 %v2290
      %v2434 = vpop.f32.mrb[0].mxu0
      %v2435 = vadd.f32 %v2326, %v2434
      %v2436 = vpop.f32.mrb[0].mxu0
      %v2437 = vpop.f32.mrb[0].mxu0
      %v2438 = vadd.f32 %v2326, %v2437
      %v2439 = vpop.f32.mrb[0].mxu0
      %2440 = vmatprep.mubr.bf16.mxu0 0
      %2441 = vmatmul.mubr.bf16.gmra.mrb[0].mxu0 %v2291
      %v2442 = vpop.f32.mrb[0].mxu0
      %v2443 = vadd.f32 %v2326, %v2442
      %v2444 = vpop.f32.mrb[0].mxu0
      %v2445 = vpop.f32.mrb[0].mxu0
      %v2446 = vadd.f32 %v2326, %v2445
      %v2447 = vpop.f32.mrb[0].mxu0
      %2448 = vmatprep.mubr.bf16.mxu0 0
      %2449 = vmatmul.mubr.bf16.gmra.mrb[0].mxu0 %v2292
      %v2450 = vpop.f32.mrb[0].mxu0
      %v2451 = vadd.f32 %v2326, %v2450
      %v2452 = vpop.f32.mrb[0].mxu0
      %v2453 = vpop.f32.mrb[0].mxu0
      %v2454 = vadd.f32 %v2326, %v2453
      %v2455 = vpop.f32.mrb[0].mxu0
      %2456 = vmatprep.mubr.bf16.mxu0 0
      %2457 = vmatmul.mubr.bf16.gmra.mrb[0].mxu0 %v2293
      %v2458 = vpop.f32.mrb[0].mxu0
      %v2459 = vadd.f32 %v2326, %v2458
      %v2460 = vpop.f32.mrb[0].mxu0
      %v2461 = vpop.f32.mrb[0].mxu0
      %v2462 = vadd.f32 %v2326, %v2461
      %v2463 = vpop.f32.mrb[0].mxu0
      %2464 = vmatprep.mubr.bf16.mxu0 0
      %2465 = vmatmul.mubr.bf16.gmra.mrb[0].mxu0 %v2294
      %v2466 = vpop.f32.mrb[0].mxu0
      %v2467 = vadd.f32 %v2326, %v2466
      %v2468 = vpop.f32.mrb[0].mxu0
      %v2469 = vpop.f32.mrb[0].mxu0
      %v2470 = vadd.f32 %v2326, %v2469
      %v2471 = vpop.f32.mrb[0].mxu0
      %2472 = vmatprep.mubr.bf16.mxu0 0
      %2473 = vmatmul.mubr.bf16.gmra.mrb[0].mxu0 %v2295
      %v2474 = vpop.f32.mrb[0].mxu0
      %v2475 = vadd.f32 %v2326, %v2474
      %v2476 = vpop.f32.mrb[0].mxu0
      %v2477 = vpop.f32.mrb[0].mxu0
      %v2478 = vadd.f32 %v2326, %v2477
      %v2479 = vpop.f32.mrb[0].mxu0
      %2480 = vmatprep.mubr.bf16.mxu0 0
      %2481 = vmatmul.mubr.bf16.gmra.mrb[0].mxu0 %v2296
      %v2482 = vpop.f32.mrb[0].mxu0
      %v2483 = vadd.f32 %v2326, %v2482
      %v2484 = vpop.f32.mrb[0].mxu0
      %v2485 = vpop.f32.mrb[0].mxu0
      %v2486 = vadd.f32 %v2326, %v2485
      %v2487 = vpop.f32.mrb[0].mxu0
      %2488 = vmatprep.mubr.bf16.mxu0 0
      %2489 = vmatmul.mubr.bf16.gmra.mrb[0].mxu0 %v2297
      %v2490 = vpop.f32.mrb[0].mxu0
      %v2491 = vadd.f32 %v2326, %v2490
      %v2492 = vpop.f32.mrb[0].mxu0
      %v2493 = vpop.f32.mrb[0].mxu0
      %v2494 = vadd.f32 %v2326, %v2493
      %v2495 = vpop.f32.mrb[0].mxu0
      %2496 = vmatprep.mubr.bf16.mxu0 0
      %2497 = vmatmul.mubr.bf16.gmra.mrb[0].mxu0 %v2298
      %v2498 = vpop.f32.mrb[0].mxu0
      %v2499 = vadd.f32 %v2326, %v2498
      %v2500 = vpop.f32.mrb[0].mxu0
      %v2501 = vpop.f32.mrb[0].mxu0
      %v2502 = vadd.f32 %v2326, %v2501
      %v2503 = vpop.f32.mrb[0].mxu0
      %2504 = vmatprep.mubr.bf16.mxu0 0
      %2505 = vmatmul.mubr.bf16.gmra.mrb[0].mxu0 %v2299
      %v2506 = vpop.f32.mrb[0].mxu0
      %v2507 = vadd.f32 %v2326, %v2506
      %v2508 = vpop.f32.mrb[0].mxu0
      %v2509 = vpop.f32.mrb[0].mxu0
      %v2510 = vadd.f32 %v2326, %v2509
      %v2511 = vpop.f32.mrb[0].mxu0
      %2512 = vmatprep.mubr.bf16.mxu0 0
      %2513 = vmatmul.mubr.bf16.gmra.mrb[0].mxu0 %v2300
      %v2514 = vpop.f32.mrb[0].mxu0
      %v2515 = vadd.f32 %v2326, %v2514
      %v2516 = vpop.f32.mrb[0].mxu0
      %v2517 = vpop.f32.mrb[0].mxu0
      %v2518 = vadd.f32 %v2326, %v2517
      %v2519 = vpop.f32.mrb[0].mxu0
      %2520 = vmatprep.mubr.bf16.mxu0 0
      %2521 = vmatmul.mubr.bf16.gmra.mrb[0].mxu0 %v2301
      %v2522 = vpop.f32.mrb[0].mxu0
      %v2523 = vadd.f32 %v2326, %v2522
      %v2524 = vpop.f32.mrb[0].mxu0
      %v2525 = vpop.f32.mrb[0].mxu0
      %v2526 = vadd.f32 %v2326, %v2525
      %v2527 = vpop.f32.mrb[0].mxu0
      %2528 = vmatprep.mubr.bf16.mxu0 0
      %2529 = vmatmul.mubr.bf16.gmra.mrb[0].mxu0 %v2302
      %v2530 = vpop.f32.mrb[0].mxu0
      %v2531 = vadd.f32 %v2326, %v2530
      %v2532 = vpop.f32.mrb[0].mxu0
      %v2533 = vpop.f32.mrb[0].mxu0
      %v2534 = vadd.f32 %v2326, %v2533
      %v2535 = vpop.f32.mrb[0].mxu0
      %2536 = vdwg.mxu0
      %v2537 = vadd.f32 %v2411, %v876
      %v2538 = vadd.f32 %v2414, %v877
      %v2539 = vadd.f32 %v2419, %v878
      %v2540 = vadd.f32 %v2422, %v879
      %v2541 = vadd.f32 %v2427, %v880
      %v2542 = vadd.f32 %v2430, %v881
      %v2543 = vadd.f32 %v2435, %v882
      %v2544 = vadd.f32 %v2438, %v883
      %v2545 = vadd.f32 %v2443, %v884
      %v2546 = vadd.f32 %v2446, %v885
      %v2547 = vadd.f32 %v2451, %v886
      %v2548 = vadd.f32 %v2454, %v887
      %v2549 = vadd.f32 %v2459, %v888
      %v2550 = vadd.f32 %v2462, %v889
      %v2551 = vadd.f32 %v2467, %v890
      %v2552 = vadd.f32 %v2470, %v891
      %v2553 = vadd.f32 %v2475, %v892
      %v2554 = vadd.f32 %v2478, %v893
      %v2555 = vadd.f32 %v2483, %v894
      %v2556 = vadd.f32 %v2486, %v895
      %v2557 = vadd.f32 %v2491, %v896
      %v2558 = vadd.f32 %v2494, %v897
      %v2559 = vadd.f32 %v2499, %v898
      %v2560 = vadd.f32 %v2502, %v899
      %v2561 = vadd.f32 %v2507, %v900
      %v2562 = vadd.f32 %v2510, %v901
      %v2563 = vadd.f32 %v2515, %v902
      %v2564 = vadd.f32 %v2518, %v903
      %v2565 = vadd.f32 %v2523, %v904
      %v2566 = vadd.f32 %v2526, %v905
      %v2567 = vadd.f32 %v2531, %v906
      %v2568 = vadd.f32 %v2534, %v907
      %v2569 = vpack.c.bf16 %v2538, %v2537
      %v2570 = vpack.c.bf16 %v2540, %v2539
      %v2571 = vpack.c.bf16 %v2542, %v2541
      %v2572 = vpack.c.bf16 %v2544, %v2543
      %v2573 = vpack.c.bf16 %v2546, %v2545
      %v2574 = vpack.c.bf16 %v2548, %v2547
      %v2575 = vpack.c.bf16 %v2550, %v2549
      %v2576 = vpack.c.bf16 %v2552, %v2551
      %v2577 = vpack.c.bf16 %v2554, %v2553
      %v2578 = vpack.c.bf16 %v2556, %v2555
      %v2579 = vpack.c.bf16 %v2558, %v2557
      %v2580 = vpack.c.bf16 %v2560, %v2559
      %v2581 = vpack.c.bf16 %v2562, %v2561
      %v2582 = vpack.c.bf16 %v2564, %v2563
      %v2583 = vpack.c.bf16 %v2566, %v2565
      %v2584 = vpack.c.bf16 %v2568, %v2567
      %s2585 = scalar_lea.vmem %s1, 128
      %v2586 = vld [vmem:[%s2585] sm:$0xf]
      %v2587 = vld [vmem:[%s2585 + $0x4] sm:$0xf]
      %v2588 = vld [vmem:[%s2585 + $0x8] sm:$0xf]
      %v2589 = vld [vmem:[%s2585 + $0xc] sm:$0xf]
      %v2590 = vld [vmem:[%s2585 + $0x10] sm:$0xf]
      %v2591 = vld [vmem:[%s2585 + $0x14] sm:$0xf]
      %v2592 = vld [vmem:[%s2585 + $0x18] sm:$0xf]
      %v2593 = vld [vmem:[%s2585 + $0x1c] sm:$0xf]
      %v2594 = vld [vmem:[%s2585 + $0x20] sm:$0xf]
      %v2595 = vld [vmem:[%s2585 + $0x24] sm:$0xf]
      %v2596 = vld [vmem:[%s2585 + $0x28] sm:$0xf]
      %v2597 = vld [vmem:[%s2585 + $0x2c] sm:$0xf]
      %v2598 = vld [vmem:[%s2585 + $0x30] sm:$0xf]
      %v2599 = vld [vmem:[%s2585 + $0x34] sm:$0xf]
      %v2600 = vld [vmem:[%s2585 + $0x38] sm:$0xf]
      %v2601 = vld [vmem:[%s2585 + $0x3c] sm:$0xf]
      %s2602 = scalar_lea.vmem %s2, 3
      %v2603 = vld [vmem:[%s2602] sm:$0x1]
      %v2605 = vlaneseq
      %v2606 = vshrl.u32 %v2605, 7
      %v2607 = vsub.s32 0, %v2606
      %v2608 = vrot.slane %v2603, %v2607
      %v2626 = vunpack.c.l.b16 %v2586
      %v2627 = vunpack.c.l.b16 %v2587
      %v2628 = vunpack.c.l.b16 %v2588
      %v2629 = vunpack.c.l.b16 %v2589
      %v2630 = vunpack.c.l.b16 %v2590
      %v2631 = vunpack.c.l.b16 %v2591
      %v2632 = vunpack.c.l.b16 %v2592
      %v2633 = vunpack.c.l.b16 %v2593
      %v2634 = vunpack.c.l.b16 %v2594
      %v2635 = vunpack.c.l.b16 %v2595
      %v2636 = vunpack.c.l.b16 %v2596
      %v2637 = vunpack.c.l.b16 %v2597
      %v2638 = vunpack.c.l.b16 %v2598
      %v2639 = vunpack.c.l.b16 %v2599
      %v2640 = vunpack.c.l.b16 %v2600
      %v2641 = vunpack.c.l.b16 %v2601
      %v2642 = vpack.c.b16 %v2627, %v2626
      %v2643 = vpack.c.b16 %v2629, %v2628
      %v2644 = vpack.c.b16 %v2631, %v2630
      %v2645 = vpack.c.b16 %v2633, %v2632
      %v2646 = vpack.c.b16 %v2635, %v2634
      %v2647 = vpack.c.b16 %v2637, %v2636
      %v2648 = vpack.c.b16 %v2639, %v2638
      %v2649 = vpack.c.b16 %v2641, %v2640
      %2658 = vmatprep.subr.bf16.mxu0 0
      %2659 = vmatpush1.bf16.msra.mxu0 %v2642
      %2660 = vmatprep.subr.bf16.mxu0 0
      %2661 = vmatpush1.bf16.msra.mxu0 %v2643
      %2662 = vmatprep.subr.bf16.mxu0 0
      %2663 = vmatpush1.bf16.msra.mxu0 %v2644
      %2664 = vmatprep.subr.bf16.mxu0 0
      %2665 = vmatpush1.bf16.msra.mxu0 %v2645
      %2666 = vmatprep.subr.bf16.mxu0 0
      %2667 = vmatpush1.bf16.msra.mxu0 %v2646
      %2668 = vmatprep.subr.bf16.mxu0 0
      %2669 = vmatpush1.bf16.msra.mxu0 %v2647
      %2670 = vmatprep.subr.bf16.mxu0 0
      %2671 = vmatpush1.bf16.msra.mxu0 %v2648
      %2672 = vmatprep.subr.bf16.mxu0 0
      %2673 = vmatpush1.bf16.msra.mxu0 %v2649
      %2674 = vmatprep.subr.bf16.mxu0 0
      %2675 = vmatpush1.bf16.msra.mxu0 0
      %2676 = vmatprep.subr.bf16.mxu0 0
      %2677 = vmatpush1.bf16.msra.mxu0 0
      %2678 = vmatprep.subr.bf16.mxu0 0
      %2679 = vmatpush1.bf16.msra.mxu0 0
      %2680 = vmatprep.subr.bf16.mxu0 0
      %2681 = vmatpush1.bf16.msra.mxu0 0
      %2682 = vmatprep.subr.bf16.mxu0 0
      %2683 = vmatpush1.bf16.msra.mxu0 0
      %2684 = vmatprep.subr.bf16.mxu0 0
      %2685 = vmatpush1.bf16.msra.mxu0 0
      %2686 = vmatprep.subr.bf16.mxu0 0
      %2687 = vmatpush1.bf16.msra.mxu0 0
      %2688 = vmatprep.subr.bf16.mxu0 0
      %2689 = vmatpush1.bf16.msra.mxu0 0
      %2690 = vmatprep.mubr.bf16.mxu0 0
      %2691 = vmatmul.mubr.bf16.gmra.mrb[0].mxu0 %v2569
      %v2692 = vpop.f32.mrb[0].mxu0
      %v2693 = vadd.f32 %v2608, %v2692
      %v2694 = vpop.f32.mrb[0].mxu0
      %v2695 = vpop.f32.mrb[0].mxu0
      %v2696 = vadd.f32 %v2608, %v2695
      %v2697 = vpop.f32.mrb[0].mxu0
      %2698 = vmatprep.mubr.bf16.mxu0 0
      %2699 = vmatmul.mubr.bf16.gmra.mrb[0].mxu0 %v2570
      %v2700 = vpop.f32.mrb[0].mxu0
      %v2701 = vadd.f32 %v2608, %v2700
      %v2702 = vpop.f32.mrb[0].mxu0
      %v2703 = vpop.f32.mrb[0].mxu0
      %v2704 = vadd.f32 %v2608, %v2703
      %v2705 = vpop.f32.mrb[0].mxu0
      %2706 = vmatprep.mubr.bf16.mxu0 0
      %2707 = vmatmul.mubr.bf16.gmra.mrb[0].mxu0 %v2571
      %v2708 = vpop.f32.mrb[0].mxu0
      %v2709 = vadd.f32 %v2608, %v2708
      %v2710 = vpop.f32.mrb[0].mxu0
      %v2711 = vpop.f32.mrb[0].mxu0
      %v2712 = vadd.f32 %v2608, %v2711
      %v2713 = vpop.f32.mrb[0].mxu0
      %2714 = vmatprep.mubr.bf16.mxu0 0
      %2715 = vmatmul.mubr.bf16.gmra.mrb[0].mxu0 %v2572
      %v2716 = vpop.f32.mrb[0].mxu0
      %v2717 = vadd.f32 %v2608, %v2716
      %v2718 = vpop.f32.mrb[0].mxu0
      %v2719 = vpop.f32.mrb[0].mxu0
      %v2720 = vadd.f32 %v2608, %v2719
      %v2721 = vpop.f32.mrb[0].mxu0
      %2722 = vmatprep.mubr.bf16.mxu0 0
      %2723 = vmatmul.mubr.bf16.gmra.mrb[0].mxu0 %v2573
      %v2724 = vpop.f32.mrb[0].mxu0
      %v2725 = vadd.f32 %v2608, %v2724
      %v2726 = vpop.f32.mrb[0].mxu0
      %v2727 = vpop.f32.mrb[0].mxu0
      %v2728 = vadd.f32 %v2608, %v2727
      %v2729 = vpop.f32.mrb[0].mxu0
      %2730 = vmatprep.mubr.bf16.mxu0 0
      %2731 = vmatmul.mubr.bf16.gmra.mrb[0].mxu0 %v2574
      %v2732 = vpop.f32.mrb[0].mxu0
      %v2733 = vadd.f32 %v2608, %v2732
      %v2734 = vpop.f32.mrb[0].mxu0
      %v2735 = vpop.f32.mrb[0].mxu0
      %v2736 = vadd.f32 %v2608, %v2735
      %v2737 = vpop.f32.mrb[0].mxu0
      %2738 = vmatprep.mubr.bf16.mxu0 0
      %2739 = vmatmul.mubr.bf16.gmra.mrb[0].mxu0 %v2575
      %v2740 = vpop.f32.mrb[0].mxu0
      %v2741 = vadd.f32 %v2608, %v2740
      %v2742 = vpop.f32.mrb[0].mxu0
      %v2743 = vpop.f32.mrb[0].mxu0
      %v2744 = vadd.f32 %v2608, %v2743
      %v2745 = vpop.f32.mrb[0].mxu0
      %2746 = vmatprep.mubr.bf16.mxu0 0
      %2747 = vmatmul.mubr.bf16.gmra.mrb[0].mxu0 %v2576
      %v2748 = vpop.f32.mrb[0].mxu0
      %v2749 = vadd.f32 %v2608, %v2748
      %v2750 = vpop.f32.mrb[0].mxu0
      %v2751 = vpop.f32.mrb[0].mxu0
      %v2752 = vadd.f32 %v2608, %v2751
      %v2753 = vpop.f32.mrb[0].mxu0
      %2754 = vmatprep.mubr.bf16.mxu0 0
      %2755 = vmatmul.mubr.bf16.gmra.mrb[0].mxu0 %v2577
      %v2756 = vpop.f32.mrb[0].mxu0
      %v2757 = vadd.f32 %v2608, %v2756
      %v2758 = vpop.f32.mrb[0].mxu0
      %v2759 = vpop.f32.mrb[0].mxu0
      %v2760 = vadd.f32 %v2608, %v2759
      %v2761 = vpop.f32.mrb[0].mxu0
      %2762 = vmatprep.mubr.bf16.mxu0 0
      %2763 = vmatmul.mubr.bf16.gmra.mrb[0].mxu0 %v2578
      %v2764 = vpop.f32.mrb[0].mxu0
      %v2765 = vadd.f32 %v2608, %v2764
      %v2766 = vpop.f32.mrb[0].mxu0
      %v2767 = vpop.f32.mrb[0].mxu0
      %v2768 = vadd.f32 %v2608, %v2767
      %v2769 = vpop.f32.mrb[0].mxu0
      %2770 = vmatprep.mubr.bf16.mxu0 0
      %2771 = vmatmul.mubr.bf16.gmra.mrb[0].mxu0 %v2579
      %v2772 = vpop.f32.mrb[0].mxu0
      %v2773 = vadd.f32 %v2608, %v2772
      %v2774 = vpop.f32.mrb[0].mxu0
      %v2775 = vpop.f32.mrb[0].mxu0
      %v2776 = vadd.f32 %v2608, %v2775
      %v2777 = vpop.f32.mrb[0].mxu0
      %2778 = vmatprep.mubr.bf16.mxu0 0
      %2779 = vmatmul.mubr.bf16.gmra.mrb[0].mxu0 %v2580
      %v2780 = vpop.f32.mrb[0].mxu0
      %v2781 = vadd.f32 %v2608, %v2780
      %v2782 = vpop.f32.mrb[0].mxu0
      %v2783 = vpop.f32.mrb[0].mxu0
      %v2784 = vadd.f32 %v2608, %v2783
      %v2785 = vpop.f32.mrb[0].mxu0
      %2786 = vmatprep.mubr.bf16.mxu0 0
      %2787 = vmatmul.mubr.bf16.gmra.mrb[0].mxu0 %v2581
      %v2788 = vpop.f32.mrb[0].mxu0
      %v2789 = vadd.f32 %v2608, %v2788
      %v2790 = vpop.f32.mrb[0].mxu0
      %v2791 = vpop.f32.mrb[0].mxu0
      %v2792 = vadd.f32 %v2608, %v2791
      %v2793 = vpop.f32.mrb[0].mxu0
      %2794 = vmatprep.mubr.bf16.mxu0 0
      %2795 = vmatmul.mubr.bf16.gmra.mrb[0].mxu0 %v2582
      %v2796 = vpop.f32.mrb[0].mxu0
      %v2797 = vadd.f32 %v2608, %v2796
      %v2798 = vpop.f32.mrb[0].mxu0
      %v2799 = vpop.f32.mrb[0].mxu0
      %v2800 = vadd.f32 %v2608, %v2799
      %v2801 = vpop.f32.mrb[0].mxu0
      %2802 = vmatprep.mubr.bf16.mxu0 0
      %2803 = vmatmul.mubr.bf16.gmra.mrb[0].mxu0 %v2583
      %v2804 = vpop.f32.mrb[0].mxu0
      %v2805 = vadd.f32 %v2608, %v2804
      %v2806 = vpop.f32.mrb[0].mxu0
      %v2807 = vpop.f32.mrb[0].mxu0
      %v2808 = vadd.f32 %v2608, %v2807
      %v2809 = vpop.f32.mrb[0].mxu0
      %2810 = vmatprep.mubr.bf16.mxu0 0
      %2811 = vmatmul.mubr.bf16.gmra.mrb[0].mxu0 %v2584
      %v2812 = vpop.f32.mrb[0].mxu0
      %v2813 = vadd.f32 %v2608, %v2812
      %v2814 = vpop.f32.mrb[0].mxu0
      %v2815 = vpop.f32.mrb[0].mxu0
      %v2816 = vadd.f32 %v2608, %v2815
      %v2817 = vpop.f32.mrb[0].mxu0
      %2818 = vdwg.mxu0
      %v2819 = vmax.f32 %v2693, 0.0
      %v2820 = vmax.f32 %v2696, 0.0
      %v2821 = vmax.f32 %v2701, 0.0
      %v2822 = vmax.f32 %v2704, 0.0
      %v2823 = vmax.f32 %v2709, 0.0
      %v2824 = vmax.f32 %v2712, 0.0
      %v2825 = vmax.f32 %v2717, 0.0
      %v2826 = vmax.f32 %v2720, 0.0
      %v2827 = vmax.f32 %v2725, 0.0
      %v2828 = vmax.f32 %v2728, 0.0
      %v2829 = vmax.f32 %v2733, 0.0
      %v2830 = vmax.f32 %v2736, 0.0
      %v2831 = vmax.f32 %v2741, 0.0
      %v2832 = vmax.f32 %v2744, 0.0
      %v2833 = vmax.f32 %v2749, 0.0
      %v2834 = vmax.f32 %v2752, 0.0
      %v2835 = vmax.f32 %v2757, 0.0
      %v2836 = vmax.f32 %v2760, 0.0
      %v2837 = vmax.f32 %v2765, 0.0
      %v2838 = vmax.f32 %v2768, 0.0
      %v2839 = vmax.f32 %v2773, 0.0
      %v2840 = vmax.f32 %v2776, 0.0
      %v2841 = vmax.f32 %v2781, 0.0
      %v2842 = vmax.f32 %v2784, 0.0
      %v2843 = vmax.f32 %v2789, 0.0
      %v2844 = vmax.f32 %v2792, 0.0
      %v2845 = vmax.f32 %v2797, 0.0
      %v2846 = vmax.f32 %v2800, 0.0
      %v2847 = vmax.f32 %v2805, 0.0
      %v2848 = vmax.f32 %v2808, 0.0
      %v2849 = vmax.f32 %v2813, 0.0
      %v2850 = vmax.f32 %v2816, 0.0
      %s2851 = scalar_lea.vmem %s3, 9
      %v2852 = vld [vmem:[%s2851] sm:$0x1]
      %v2853 = vld [vmem:[%s2851 + $0x1] sm:$0x1]
      %v2854 = vld [vmem:[%s2851 + $0x2] sm:$0x1]
      %v2855 = vld [vmem:[%s2851 + $0x3] sm:$0x1]
      %v2856 = vld [vmem:[%s2851 + $0x4] sm:$0x1]
      %v2857 = vld [vmem:[%s2851 + $0x5] sm:$0x1]
      %v2858 = vld [vmem:[%s2851 + $0x6] sm:$0x1]
      %v2859 = vld [vmem:[%s2851 + $0x7] sm:$0x1]
      %v2860 = vld [vmem:[%s2851 + $0x8] sm:$0x1]
      %v2861 = vld [vmem:[%s6] sm:$0xf]
      %v2862 = vld [vmem:[%s6 + $0x4] sm:$0xf]
      %v2863 = vld [vmem:[%s6 + $0x8] sm:$0xf]
      %v2864 = vld [vmem:[%s6 + $0xc] sm:$0xf]
      %v2865 = vld [vmem:[%s6 + $0x10] sm:$0xf]
      %v2866 = vld [vmem:[%s6 + $0x14] sm:$0xf]
      %v2867 = vld [vmem:[%s6 + $0x18] sm:$0xf]
      %v2868 = vld [vmem:[%s6 + $0x1c] sm:$0xf]
      %v2869 = vld [vmem:[%s7] sm:$0xf]
      %v2870 = vld [vmem:[%s7 + $0x4] sm:$0xf]
      %v2871 = vld [vmem:[%s7 + $0x8] sm:$0xf]
      %v2872 = vld [vmem:[%s7 + $0xc] sm:$0xf]
      %v2873 = vld [vmem:[%s7 + $0x10] sm:$0xf]
      %v2874 = vld [vmem:[%s7 + $0x14] sm:$0xf]
      %v2875 = vld [vmem:[%s7 + $0x18] sm:$0xf]
      %v2876 = vld [vmem:[%s7 + $0x1c] sm:$0xf]
      %v2877 = vld [vmem:[%s8] sm:$0xf]
      %v2878 = vld [vmem:[%s8 + $0x4] sm:$0xf]
      %v2879 = vld [vmem:[%s8 + $0x8] sm:$0xf]
      %v2880 = vld [vmem:[%s8 + $0xc] sm:$0xf]
      %v2881 = vld [vmem:[%s8 + $0x10] sm:$0xf]
      %v2882 = vld [vmem:[%s8 + $0x14] sm:$0xf]
      %v2883 = vld [vmem:[%s8 + $0x18] sm:$0xf]
      %v2884 = vld [vmem:[%s8 + $0x1c] sm:$0xf]
      %v2886 = vlaneseq
      %v2887 = vshrl.u32 %v2886, 7
      %v2888 = vsub.s32 0, %v2887
      %v2889 = vrot.slane %v2852, %v2888
      %v2891 = vmul.f32 %v2889, 0.0
      %v2892 = vmul.f32 %v2821, %v2889
      %v2893 = vmul.f32 %v2822, %v2889
      %v2894 = vmul.f32 %v2825, %v2889
      %v2895 = vmul.f32 %v2826, %v2889
      %v2896 = vmul.f32 %v2829, %v2889
      %v2897 = vmul.f32 %v2830, %v2889
      %v2898 = vmul.f32 %v2833, %v2889
      %v2899 = vmul.f32 %v2834, %v2889
      %v2900 = vmul.f32 %v2837, %v2889
      %v2901 = vmul.f32 %v2838, %v2889
      %v2902 = vmul.f32 %v2841, %v2889
      %v2903 = vmul.f32 %v2842, %v2889
      %v2904 = vmul.f32 %v2845, %v2889
      %v2905 = vmul.f32 %v2846, %v2889
      %v2907 = vlaneseq
      %v2908 = vshrl.u32 %v2907, 7
      %v2909 = vsub.s32 0, %v2908
      %v2910 = vrot.slane %v2855, %v2909
      %v2912 = vmul.f32 %v2819, %v2910
      %v2913 = vmul.f32 %v2820, %v2910
      %v2914 = vmul.f32 %v2823, %v2910
      %v2915 = vmul.f32 %v2824, %v2910
      %v2916 = vmul.f32 %v2827, %v2910
      %v2917 = vmul.f32 %v2828, %v2910
      %v2918 = vmul.f32 %v2831, %v2910
      %v2919 = vmul.f32 %v2832, %v2910
      %v2920 = vmul.f32 %v2835, %v2910
      %v2921 = vmul.f32 %v2836, %v2910
      %v2922 = vmul.f32 %v2839, %v2910
      %v2923 = vmul.f32 %v2840, %v2910
      %v2924 = vmul.f32 %v2843, %v2910
      %v2925 = vmul.f32 %v2844, %v2910
      %v2926 = vmul.f32 %v2847, %v2910
      %v2927 = vmul.f32 %v2848, %v2910
      %v2928 = vadd.f32 %v2891, %v2912
      %v2929 = vadd.f32 %v2891, %v2913
      %v2930 = vadd.f32 %v2892, %v2914
      %v2931 = vadd.f32 %v2893, %v2915
      %v2932 = vadd.f32 %v2894, %v2916
      %v2933 = vadd.f32 %v2895, %v2917
      %v2934 = vadd.f32 %v2896, %v2918
      %v2935 = vadd.f32 %v2897, %v2919
      %v2936 = vadd.f32 %v2898, %v2920
      %v2937 = vadd.f32 %v2899, %v2921
      %v2938 = vadd.f32 %v2900, %v2922
      %v2939 = vadd.f32 %v2901, %v2923
      %v2940 = vadd.f32 %v2902, %v2924
      %v2941 = vadd.f32 %v2903, %v2925
      %v2942 = vadd.f32 %v2904, %v2926
      %v2943 = vadd.f32 %v2905, %v2927
      %v2945 = vlaneseq
      %v2946 = vshrl.u32 %v2945, 7
      %v2947 = vsub.s32 0, %v2946
      %v2948 = vrot.slane %v2858, %v2947
      %v2950 = vmul.f32 %v2821, %v2948
      %v2951 = vmul.f32 %v2822, %v2948
      %v2952 = vmul.f32 %v2825, %v2948
      %v2953 = vmul.f32 %v2826, %v2948
      %v2954 = vmul.f32 %v2829, %v2948
      %v2955 = vmul.f32 %v2830, %v2948
      %v2956 = vmul.f32 %v2833, %v2948
      %v2957 = vmul.f32 %v2834, %v2948
      %v2958 = vmul.f32 %v2837, %v2948
      %v2959 = vmul.f32 %v2838, %v2948
      %v2960 = vmul.f32 %v2841, %v2948
      %v2961 = vmul.f32 %v2842, %v2948
      %v2962 = vmul.f32 %v2845, %v2948
      %v2963 = vmul.f32 %v2846, %v2948
      %v2964 = vmul.f32 %v2849, %v2948
      %v2965 = vmul.f32 %v2850, %v2948
      %v2966 = vadd.f32 %v2928, %v2950
      %v2967 = vadd.f32 %v2929, %v2951
      %v2968 = vadd.f32 %v2930, %v2952
      %v2969 = vadd.f32 %v2931, %v2953
      %v2970 = vadd.f32 %v2932, %v2954
      %v2971 = vadd.f32 %v2933, %v2955
      %v2972 = vadd.f32 %v2934, %v2956
      %v2973 = vadd.f32 %v2935, %v2957
      %v2974 = vadd.f32 %v2936, %v2958
      %v2975 = vadd.f32 %v2937, %v2959
      %v2976 = vadd.f32 %v2938, %v2960
      %v2977 = vadd.f32 %v2939, %v2961
      %v2978 = vadd.f32 %v2940, %v2962
      %v2979 = vadd.f32 %v2941, %v2963
      %v2980 = vadd.f32 %v2942, %v2964
      %v2981 = vadd.f32 %v2943, %v2965
      %v2982 = vpack.c.bf16 %v2967, %v2966
      %v2983 = vpack.c.bf16 %v2969, %v2968
      %v2984 = vpack.c.bf16 %v2971, %v2970
      %v2985 = vpack.c.bf16 %v2973, %v2972
      %v2986 = vpack.c.bf16 %v2975, %v2974
      %v2987 = vpack.c.bf16 %v2977, %v2976
      %v2988 = vpack.c.bf16 %v2979, %v2978
      %v2989 = vpack.c.bf16 %v2981, %v2980
      %v2991 = vlaneseq
      %v2992 = vshrl.u32 %v2991, 7
      %v2993 = vsub.s32 0, %v2992
      %v2994 = vrot.slane %v2853, %v2993
      %v2996 = vmul.f32 %v2994, 0.0
      %v2997 = vmul.f32 %v2821, %v2994
      %v2998 = vmul.f32 %v2822, %v2994
      %v2999 = vmul.f32 %v2825, %v2994
      %v3000 = vmul.f32 %v2826, %v2994
      %v3001 = vmul.f32 %v2829, %v2994
      %v3002 = vmul.f32 %v2830, %v2994
      %v3003 = vmul.f32 %v2833, %v2994
      %v3004 = vmul.f32 %v2834, %v2994
      %v3005 = vmul.f32 %v2837, %v2994
      %v3006 = vmul.f32 %v2838, %v2994
      %v3007 = vmul.f32 %v2841, %v2994
      %v3008 = vmul.f32 %v2842, %v2994
      %v3009 = vmul.f32 %v2845, %v2994
      %v3010 = vmul.f32 %v2846, %v2994
      %v3012 = vlaneseq
      %v3013 = vshrl.u32 %v3012, 7
      %v3014 = vsub.s32 0, %v3013
      %v3015 = vrot.slane %v2856, %v3014
      %v3017 = vmul.f32 %v2819, %v3015
      %v3018 = vmul.f32 %v2820, %v3015
      %v3019 = vmul.f32 %v2823, %v3015
      %v3020 = vmul.f32 %v2824, %v3015
      %v3021 = vmul.f32 %v2827, %v3015
      %v3022 = vmul.f32 %v2828, %v3015
      %v3023 = vmul.f32 %v2831, %v3015
      %v3024 = vmul.f32 %v2832, %v3015
      %v3025 = vmul.f32 %v2835, %v3015
      %v3026 = vmul.f32 %v2836, %v3015
      %v3027 = vmul.f32 %v2839, %v3015
      %v3028 = vmul.f32 %v2840, %v3015
      %v3029 = vmul.f32 %v2843, %v3015
      %v3030 = vmul.f32 %v2844, %v3015
      %v3031 = vmul.f32 %v2847, %v3015
      %v3032 = vmul.f32 %v2848, %v3015
      %v3033 = vadd.f32 %v2996, %v3017
      %v3034 = vadd.f32 %v2996, %v3018
      %v3035 = vadd.f32 %v2997, %v3019
      %v3036 = vadd.f32 %v2998, %v3020
      %v3037 = vadd.f32 %v2999, %v3021
      %v3038 = vadd.f32 %v3000, %v3022
      %v3039 = vadd.f32 %v3001, %v3023
      %v3040 = vadd.f32 %v3002, %v3024
      %v3041 = vadd.f32 %v3003, %v3025
      %v3042 = vadd.f32 %v3004, %v3026
      %v3043 = vadd.f32 %v3005, %v3027
      %v3044 = vadd.f32 %v3006, %v3028
      %v3045 = vadd.f32 %v3007, %v3029
      %v3046 = vadd.f32 %v3008, %v3030
      %v3047 = vadd.f32 %v3009, %v3031
      %v3048 = vadd.f32 %v3010, %v3032
      %v3050 = vlaneseq
      %v3051 = vshrl.u32 %v3050, 7
      %v3052 = vsub.s32 0, %v3051
      %v3053 = vrot.slane %v2859, %v3052
      %v3055 = vmul.f32 %v2821, %v3053
      %v3056 = vmul.f32 %v2822, %v3053
      %v3057 = vmul.f32 %v2825, %v3053
      %v3058 = vmul.f32 %v2826, %v3053
      %v3059 = vmul.f32 %v2829, %v3053
      %v3060 = vmul.f32 %v2830, %v3053
      %v3061 = vmul.f32 %v2833, %v3053
      %v3062 = vmul.f32 %v2834, %v3053
      %v3063 = vmul.f32 %v2837, %v3053
      %v3064 = vmul.f32 %v2838, %v3053
      %v3065 = vmul.f32 %v2841, %v3053
      %v3066 = vmul.f32 %v2842, %v3053
      %v3067 = vmul.f32 %v2845, %v3053
      %v3068 = vmul.f32 %v2846, %v3053
      %v3069 = vmul.f32 %v2849, %v3053
      %v3070 = vmul.f32 %v2850, %v3053
      %v3071 = vadd.f32 %v3033, %v3055
      %v3072 = vadd.f32 %v3034, %v3056
      %v3073 = vadd.f32 %v3035, %v3057
      %v3074 = vadd.f32 %v3036, %v3058
      %v3075 = vadd.f32 %v3037, %v3059
      %v3076 = vadd.f32 %v3038, %v3060
      %v3077 = vadd.f32 %v3039, %v3061
      %v3078 = vadd.f32 %v3040, %v3062
      %v3079 = vadd.f32 %v3041, %v3063
      %v3080 = vadd.f32 %v3042, %v3064
      %v3081 = vadd.f32 %v3043, %v3065
      %v3082 = vadd.f32 %v3044, %v3066
      %v3083 = vadd.f32 %v3045, %v3067
      %v3084 = vadd.f32 %v3046, %v3068
      %v3085 = vadd.f32 %v3047, %v3069
      %v3086 = vadd.f32 %v3048, %v3070
      %v3087 = vpack.c.bf16 %v3072, %v3071
      %v3088 = vpack.c.bf16 %v3074, %v3073
      %v3089 = vpack.c.bf16 %v3076, %v3075
      %v3090 = vpack.c.bf16 %v3078, %v3077
      %v3091 = vpack.c.bf16 %v3080, %v3079
      %v3092 = vpack.c.bf16 %v3082, %v3081
      %v3093 = vpack.c.bf16 %v3084, %v3083
      %v3094 = vpack.c.bf16 %v3086, %v3085
      %v3103 = vunpack.c.l.b16 %v2869
      %v3104 = vunpack.c.l.b16 %v2870
      %v3105 = vunpack.c.l.b16 %v2871
      %v3106 = vunpack.c.l.b16 %v2872
      %v3107 = vunpack.c.l.b16 %v2873
      %v3108 = vunpack.c.l.b16 %v2874
      %v3109 = vunpack.c.l.b16 %v2875
      %v3110 = vunpack.c.l.b16 %v2876
      %v3111 = vpack.c.b16 %v3104, %v3103
      %v3112 = vpack.c.b16 %v3106, %v3105
      %v3113 = vpack.c.b16 %v3108, %v3107
      %v3114 = vpack.c.b16 %v3110, %v3109
      %3119 = vmatprep.subr.bf16.mxu0 0
      %3120 = vmatpush1.bf16.msra.mxu0 %v3087
      %3121 = vmatprep.subr.bf16.mxu0 0
      %3122 = vmatpush1.bf16.msra.mxu0 %v3088
      %3123 = vmatprep.subr.bf16.mxu0 0
      %3124 = vmatpush1.bf16.msra.mxu0 %v3089
      %3125 = vmatprep.subr.bf16.mxu0 0
      %3126 = vmatpush1.bf16.msra.mxu0 %v3090
      %3127 = vmatprep.subr.bf16.mxu0 0
      %3128 = vmatpush1.bf16.msra.mxu0 %v3091
      %3129 = vmatprep.subr.bf16.mxu0 0
      %3130 = vmatpush1.bf16.msra.mxu0 %v3092
      %3131 = vmatprep.subr.bf16.mxu0 0
      %3132 = vmatpush1.bf16.msra.mxu0 %v3093
      %3133 = vmatprep.subr.bf16.mxu0 0
      %3134 = vmatpush1.bf16.msra.mxu0 %v3094
      %3135 = vmatprep.subr.bf16.mxu0 0
      %3136 = vmatpush1.bf16.msra.mxu0 0
      %3137 = vmatprep.subr.bf16.mxu0 0
      %3138 = vmatpush1.bf16.msra.mxu0 0
      %3139 = vmatprep.subr.bf16.mxu0 0
      %3140 = vmatpush1.bf16.msra.mxu0 0
      %3141 = vmatprep.subr.bf16.mxu0 0
      %3142 = vmatpush1.bf16.msra.mxu0 0
      %3143 = vmatprep.subr.bf16.mxu0 0
      %3144 = vmatpush1.bf16.msra.mxu0 0
      %3145 = vmatprep.subr.bf16.mxu0 0
      %3146 = vmatpush1.bf16.msra.mxu0 0
      %3147 = vmatprep.subr.bf16.mxu0 0
      %3148 = vmatpush1.bf16.msra.mxu0 0
      %3149 = vmatprep.subr.bf16.mxu0 0
      %3150 = vmatpush1.bf16.msra.mxu0 0
      %3151 = vmatprep.mubr.bf16.mxu0 0
      %3152 = vmatmul.mubr.bf16.gmra.mrb[0].mxu0 %v3111
      %v3153 = vpop.f32.mrb[0].mxu0
      %v3154 = vadd.f32 0.0, %v3153
      %v3155 = vpop.f32.mrb[0].mxu0
      %v3156 = vpop.f32.mrb[0].mxu0
      %v3157 = vadd.f32 0.0, %v3156
      %v3158 = vpop.f32.mrb[0].mxu0
      %3159 = vmatprep.mubr.bf16.mxu0 0
      %3160 = vmatmul.mubr.bf16.gmra.mrb[0].mxu0 %v3112
      %v3161 = vpop.f32.mrb[0].mxu0
      %v3162 = vadd.f32 0.0, %v3161
      %v3163 = vpop.f32.mrb[0].mxu0
      %v3164 = vpop.f32.mrb[0].mxu0
      %v3165 = vadd.f32 0.0, %v3164
      %v3166 = vpop.f32.mrb[0].mxu0
      %3167 = vmatprep.mubr.bf16.mxu0 0
      %3168 = vmatmul.mubr.bf16.gmra.mrb[0].mxu0 %v3113
      %v3169 = vpop.f32.mrb[0].mxu0
      %v3170 = vadd.f32 0.0, %v3169
      %v3171 = vpop.f32.mrb[0].mxu0
      %v3172 = vpop.f32.mrb[0].mxu0
      %v3173 = vadd.f32 0.0, %v3172
      %v3174 = vpop.f32.mrb[0].mxu0
      %3175 = vmatprep.mubr.bf16.mxu0 0
      %3176 = vmatmul.mubr.bf16.gmra.mrb[0].mxu0 %v3114
      %v3177 = vpop.f32.mrb[0].mxu0
      %v3178 = vadd.f32 0.0, %v3177
      %v3179 = vpop.f32.mrb[0].mxu0
      %v3180 = vpop.f32.mrb[0].mxu0
      %v3181 = vadd.f32 0.0, %v3180
      %v3182 = vpop.f32.mrb[0].mxu0
      %3183 = vdwg.mxu0
      %v3192 = vunpack.c.l.b16 %v2861
      %v3193 = vunpack.c.l.b16 %v2862
      %v3194 = vunpack.c.l.b16 %v2863
      %v3195 = vunpack.c.l.b16 %v2864
      %v3196 = vunpack.c.l.b16 %v2865
      %v3197 = vunpack.c.l.b16 %v2866
      %v3198 = vunpack.c.l.b16 %v2867
      %v3199 = vunpack.c.l.b16 %v2868
      %v3200 = vpack.c.b16 %v3193, %v3192
      %v3201 = vpack.c.b16 %v3195, %v3194
      %v3202 = vpack.c.b16 %v3197, %v3196
      %v3203 = vpack.c.b16 %v3199, %v3198
      %3208 = vmatprep.subr.bf16.mxu0 0
      %3209 = vmatpush1.bf16.msra.mxu0 %v2982
      %3210 = vmatprep.subr.bf16.mxu0 0
      %3211 = vmatpush1.bf16.msra.mxu0 %v2983
      %3212 = vmatprep.subr.bf16.mxu0 0
      %3213 = vmatpush1.bf16.msra.mxu0 %v2984
      %3214 = vmatprep.subr.bf16.mxu0 0
      %3215 = vmatpush1.bf16.msra.mxu0 %v2985
      %3216 = vmatprep.subr.bf16.mxu0 0
      %3217 = vmatpush1.bf16.msra.mxu0 %v2986
      %3218 = vmatprep.subr.bf16.mxu0 0
      %3219 = vmatpush1.bf16.msra.mxu0 %v2987
      %3220 = vmatprep.subr.bf16.mxu0 0
      %3221 = vmatpush1.bf16.msra.mxu0 %v2988
      %3222 = vmatprep.subr.bf16.mxu0 0
      %3223 = vmatpush1.bf16.msra.mxu0 %v2989
      %3224 = vmatprep.subr.bf16.mxu0 0
      %3225 = vmatpush1.bf16.msra.mxu0 0
      %3226 = vmatprep.subr.bf16.mxu0 0
      %3227 = vmatpush1.bf16.msra.mxu0 0
      %3228 = vmatprep.subr.bf16.mxu0 0
      %3229 = vmatpush1.bf16.msra.mxu0 0
      %3230 = vmatprep.subr.bf16.mxu0 0
      %3231 = vmatpush1.bf16.msra.mxu0 0
      %3232 = vmatprep.subr.bf16.mxu0 0
      %3233 = vmatpush1.bf16.msra.mxu0 0
      %3234 = vmatprep.subr.bf16.mxu0 0
      %3235 = vmatpush1.bf16.msra.mxu0 0
      %3236 = vmatprep.subr.bf16.mxu0 0
      %3237 = vmatpush1.bf16.msra.mxu0 0
      %3238 = vmatprep.subr.bf16.mxu0 0
      %3239 = vmatpush1.bf16.msra.mxu0 0
      %3240 = vmatprep.mubr.bf16.mxu0 0
      %3241 = vmatmul.mubr.bf16.gmra.mrb[0].mxu0 %v3200
      %v3242 = vpop.f32.mrb[0].mxu0
      %v3243 = vadd.f32 %v3154, %v3242
      %v3244 = vpop.f32.mrb[0].mxu0
      %v3245 = vpop.f32.mrb[0].mxu0
      %v3246 = vadd.f32 %v3157, %v3245
      %v3247 = vpop.f32.mrb[0].mxu0
      %3248 = vmatprep.mubr.bf16.mxu0 0
      %3249 = vmatmul.mubr.bf16.gmra.mrb[0].mxu0 %v3201
      %v3250 = vpop.f32.mrb[0].mxu0
      %v3251 = vadd.f32 %v3162, %v3250
      %v3252 = vpop.f32.mrb[0].mxu0
      %v3253 = vpop.f32.mrb[0].mxu0
      %v3254 = vadd.f32 %v3165, %v3253
      %v3255 = vpop.f32.mrb[0].mxu0
      %3256 = vmatprep.mubr.bf16.mxu0 0
      %3257 = vmatmul.mubr.bf16.gmra.mrb[0].mxu0 %v3202
      %v3258 = vpop.f32.mrb[0].mxu0
      %v3259 = vadd.f32 %v3170, %v3258
      %v3260 = vpop.f32.mrb[0].mxu0
      %v3261 = vpop.f32.mrb[0].mxu0
      %v3262 = vadd.f32 %v3173, %v3261
      %v3263 = vpop.f32.mrb[0].mxu0
      %3264 = vmatprep.mubr.bf16.mxu0 0
      %3265 = vmatmul.mubr.bf16.gmra.mrb[0].mxu0 %v3203
      %v3266 = vpop.f32.mrb[0].mxu0
      %v3267 = vadd.f32 %v3178, %v3266
      %v3268 = vpop.f32.mrb[0].mxu0
      %v3269 = vpop.f32.mrb[0].mxu0
      %v3270 = vadd.f32 %v3181, %v3269
      %v3271 = vpop.f32.mrb[0].mxu0
      %3272 = vdwg.mxu0
      %v3274 = vlaneseq
      %v3275 = vshrl.u32 %v3274, 7
      %v3276 = vsub.s32 0, %v3275
      %v3277 = vrot.slane %v2854, %v3276
      %v3279 = vmul.f32 %v3277, 0.0
      %v3280 = vmul.f32 %v2821, %v3277
      %v3281 = vmul.f32 %v2822, %v3277
      %v3282 = vmul.f32 %v2825, %v3277
      %v3283 = vmul.f32 %v2826, %v3277
      %v3284 = vmul.f32 %v2829, %v3277
      %v3285 = vmul.f32 %v2830, %v3277
      %v3286 = vmul.f32 %v2833, %v3277
      %v3287 = vmul.f32 %v2834, %v3277
      %v3288 = vmul.f32 %v2837, %v3277
      %v3289 = vmul.f32 %v2838, %v3277
      %v3290 = vmul.f32 %v2841, %v3277
      %v3291 = vmul.f32 %v2842, %v3277
      %v3292 = vmul.f32 %v2845, %v3277
      %v3293 = vmul.f32 %v2846, %v3277
      %v3295 = vlaneseq
      %v3296 = vshrl.u32 %v3295, 7
      %v3297 = vsub.s32 0, %v3296
      %v3298 = vrot.slane %v2857, %v3297
      %v3300 = vmul.f32 %v2819, %v3298
      %v3301 = vmul.f32 %v2820, %v3298
      %v3302 = vmul.f32 %v2823, %v3298
      %v3303 = vmul.f32 %v2824, %v3298
      %v3304 = vmul.f32 %v2827, %v3298
      %v3305 = vmul.f32 %v2828, %v3298
      %v3306 = vmul.f32 %v2831, %v3298
      %v3307 = vmul.f32 %v2832, %v3298
      %v3308 = vmul.f32 %v2835, %v3298
      %v3309 = vmul.f32 %v2836, %v3298
      %v3310 = vmul.f32 %v2839, %v3298
      %v3311 = vmul.f32 %v2840, %v3298
      %v3312 = vmul.f32 %v2843, %v3298
      %v3313 = vmul.f32 %v2844, %v3298
      %v3314 = vmul.f32 %v2847, %v3298
      %v3315 = vmul.f32 %v2848, %v3298
      %v3316 = vadd.f32 %v3279, %v3300
      %v3317 = vadd.f32 %v3279, %v3301
      %v3318 = vadd.f32 %v3280, %v3302
      %v3319 = vadd.f32 %v3281, %v3303
      %v3320 = vadd.f32 %v3282, %v3304
      %v3321 = vadd.f32 %v3283, %v3305
      %v3322 = vadd.f32 %v3284, %v3306
      %v3323 = vadd.f32 %v3285, %v3307
      %v3324 = vadd.f32 %v3286, %v3308
      %v3325 = vadd.f32 %v3287, %v3309
      %v3326 = vadd.f32 %v3288, %v3310
      %v3327 = vadd.f32 %v3289, %v3311
      %v3328 = vadd.f32 %v3290, %v3312
      %v3329 = vadd.f32 %v3291, %v3313
      %v3330 = vadd.f32 %v3292, %v3314
      %v3331 = vadd.f32 %v3293, %v3315
      %v3333 = vlaneseq
      %v3334 = vshrl.u32 %v3333, 7
      %v3335 = vsub.s32 0, %v3334
      %v3336 = vrot.slane %v2860, %v3335
      %v3338 = vmul.f32 %v2821, %v3336
      %v3339 = vmul.f32 %v2822, %v3336
      %v3340 = vmul.f32 %v2825, %v3336
      %v3341 = vmul.f32 %v2826, %v3336
      %v3342 = vmul.f32 %v2829, %v3336
      %v3343 = vmul.f32 %v2830, %v3336
      %v3344 = vmul.f32 %v2833, %v3336
      %v3345 = vmul.f32 %v2834, %v3336
      %v3346 = vmul.f32 %v2837, %v3336
      %v3347 = vmul.f32 %v2838, %v3336
      %v3348 = vmul.f32 %v2841, %v3336
      %v3349 = vmul.f32 %v2842, %v3336
      %v3350 = vmul.f32 %v2845, %v3336
      %v3351 = vmul.f32 %v2846, %v3336
      %v3352 = vmul.f32 %v2849, %v3336
      %v3353 = vmul.f32 %v2850, %v3336
      %v3354 = vadd.f32 %v3316, %v3338
      %v3355 = vadd.f32 %v3317, %v3339
      %v3356 = vadd.f32 %v3318, %v3340
      %v3357 = vadd.f32 %v3319, %v3341
      %v3358 = vadd.f32 %v3320, %v3342
      %v3359 = vadd.f32 %v3321, %v3343
      %v3360 = vadd.f32 %v3322, %v3344
      %v3361 = vadd.f32 %v3323, %v3345
      %v3362 = vadd.f32 %v3324, %v3346
      %v3363 = vadd.f32 %v3325, %v3347
      %v3364 = vadd.f32 %v3326, %v3348
      %v3365 = vadd.f32 %v3327, %v3349
      %v3366 = vadd.f32 %v3328, %v3350
      %v3367 = vadd.f32 %v3329, %v3351
      %v3368 = vadd.f32 %v3330, %v3352
      %v3369 = vadd.f32 %v3331, %v3353
      %v3370 = vpack.c.bf16 %v3355, %v3354
      %v3371 = vpack.c.bf16 %v3357, %v3356
      %v3372 = vpack.c.bf16 %v3359, %v3358
      %v3373 = vpack.c.bf16 %v3361, %v3360
      %v3374 = vpack.c.bf16 %v3363, %v3362
      %v3375 = vpack.c.bf16 %v3365, %v3364
      %v3376 = vpack.c.bf16 %v3367, %v3366
      %v3377 = vpack.c.bf16 %v3369, %v3368
      %v3386 = vunpack.c.l.b16 %v2877
      %v3387 = vunpack.c.l.b16 %v2878
      %v3388 = vunpack.c.l.b16 %v2879
      %v3389 = vunpack.c.l.b16 %v2880
      %v3390 = vunpack.c.l.b16 %v2881
      %v3391 = vunpack.c.l.b16 %v2882
      %v3392 = vunpack.c.l.b16 %v2883
      %v3393 = vunpack.c.l.b16 %v2884
      %v3394 = vpack.c.b16 %v3387, %v3386
      %v3395 = vpack.c.b16 %v3389, %v3388
      %v3396 = vpack.c.b16 %v3391, %v3390
      %v3397 = vpack.c.b16 %v3393, %v3392
      %3402 = vmatprep.subr.bf16.mxu0 0
      %3403 = vmatpush1.bf16.msra.mxu0 %v3370
      %3404 = vmatprep.subr.bf16.mxu0 0
      %3405 = vmatpush1.bf16.msra.mxu0 %v3371
      %3406 = vmatprep.subr.bf16.mxu0 0
      %3407 = vmatpush1.bf16.msra.mxu0 %v3372
      %3408 = vmatprep.subr.bf16.mxu0 0
      %3409 = vmatpush1.bf16.msra.mxu0 %v3373
      %3410 = vmatprep.subr.bf16.mxu0 0
      %3411 = vmatpush1.bf16.msra.mxu0 %v3374
      %3412 = vmatprep.subr.bf16.mxu0 0
      %3413 = vmatpush1.bf16.msra.mxu0 %v3375
      %3414 = vmatprep.subr.bf16.mxu0 0
      %3415 = vmatpush1.bf16.msra.mxu0 %v3376
      %3416 = vmatprep.subr.bf16.mxu0 0
      %3417 = vmatpush1.bf16.msra.mxu0 %v3377
      %3418 = vmatprep.subr.bf16.mxu0 0
      %3419 = vmatpush1.bf16.msra.mxu0 0
      %3420 = vmatprep.subr.bf16.mxu0 0
      %3421 = vmatpush1.bf16.msra.mxu0 0
      %3422 = vmatprep.subr.bf16.mxu0 0
      %3423 = vmatpush1.bf16.msra.mxu0 0
      %3424 = vmatprep.subr.bf16.mxu0 0
      %3425 = vmatpush1.bf16.msra.mxu0 0
      %3426 = vmatprep.subr.bf16.mxu0 0
      %3427 = vmatpush1.bf16.msra.mxu0 0
      %3428 = vmatprep.subr.bf16.mxu0 0
      %3429 = vmatpush1.bf16.msra.mxu0 0
      %3430 = vmatprep.subr.bf16.mxu0 0
      %3431 = vmatpush1.bf16.msra.mxu0 0
      %3432 = vmatprep.subr.bf16.mxu0 0
      %3433 = vmatpush1.bf16.msra.mxu0 0
      %3434 = vmatprep.mubr.bf16.mxu0 0
      %3435 = vmatmul.mubr.bf16.gmra.mrb[0].mxu0 %v3394
      %v3436 = vpop.f32.mrb[0].mxu0
      %v3437 = vadd.f32 0.0, %v3436
      %v3438 = vpop.f32.mrb[0].mxu0
      %v3439 = vpop.f32.mrb[0].mxu0
      %v3440 = vadd.f32 0.0, %v3439
      %v3441 = vpop.f32.mrb[0].mxu0
      %3442 = vmatprep.mubr.bf16.mxu0 0
      %3443 = vmatmul.mubr.bf16.gmra.mrb[0].mxu0 %v3395
      %v3444 = vpop.f32.mrb[0].mxu0
      %v3445 = vadd.f32 0.0, %v3444
      %v3446 = vpop.f32.mrb[0].mxu0
      %v3447 = vpop.f32.mrb[0].mxu0
      %v3448 = vadd.f32 0.0, %v3447
      %v3449 = vpop.f32.mrb[0].mxu0
      %3450 = vmatprep.mubr.bf16.mxu0 0
      %3451 = vmatmul.mubr.bf16.gmra.mrb[0].mxu0 %v3396
      %v3452 = vpop.f32.mrb[0].mxu0
      %v3453 = vadd.f32 0.0, %v3452
      %v3454 = vpop.f32.mrb[0].mxu0
      %v3455 = vpop.f32.mrb[0].mxu0
      %v3456 = vadd.f32 0.0, %v3455
      %v3457 = vpop.f32.mrb[0].mxu0
      %3458 = vmatprep.mubr.bf16.mxu0 0
      %3459 = vmatmul.mubr.bf16.gmra.mrb[0].mxu0 %v3397
      %v3460 = vpop.f32.mrb[0].mxu0
      %v3461 = vadd.f32 0.0, %v3460
      %v3462 = vpop.f32.mrb[0].mxu0
      %v3463 = vpop.f32.mrb[0].mxu0
      %v3464 = vadd.f32 0.0, %v3463
      %v3465 = vpop.f32.mrb[0].mxu0
      %3466 = vdwg.mxu0
      %v3467 = vadd.f32 %v3243, %v3437
      %v3468 = vadd.f32 %v3246, %v3440
      %v3469 = vadd.f32 %v3251, %v3445
      %v3470 = vadd.f32 %v3254, %v3448
      %v3471 = vadd.f32 %v3259, %v3453
      %v3472 = vadd.f32 %v3262, %v3456
      %v3473 = vadd.f32 %v3267, %v3461
      %v3474 = vadd.f32 %v3270, %v3464
      %s3475 = scalar_lea.vmem %s2, 4
      %v3476 = vld [vmem:[%s3475] sm:$0x1]
      %v3478 = vlaneseq
      %v3479 = vshrl.u32 %v3478, 7
      %v3480 = vsub.s32 0, %v3479
      %v3481 = vrot.slane %v3476, %v3480
      %v3483 = vadd.f32 %v3467, %v3481
      %v3484 = vadd.f32 %v3468, %v3481
      %v3485 = vadd.f32 %v3469, %v3481
      %v3486 = vadd.f32 %v3470, %v3481
      %v3487 = vadd.f32 %v3471, %v3481
      %v3488 = vadd.f32 %v3472, %v3481
      %v3489 = vadd.f32 %v3473, %v3481
      %v3490 = vadd.f32 %v3474, %v3481
      %v3491 = vmax.f32 %v3483, 0.0
      %v3492 = vmax.f32 %v3484, 0.0
      %v3493 = vmax.f32 %v3485, 0.0
      %v3494 = vmax.f32 %v3486, 0.0
      %v3495 = vmax.f32 %v3487, 0.0
      %v3496 = vmax.f32 %v3488, 0.0
      %v3497 = vmax.f32 %v3489, 0.0
      %v3498 = vmax.f32 %v3490, 0.0
      %v3499 = vadd.f32 %v3491, %v3492
      %v3500 = vadd.f32 %v3499, %v3493
      %v3501 = vadd.f32 %v3500, %v3494
      %v3502 = vadd.f32 %v3501, %v3495
      %v3503 = vadd.f32 %v3502, %v3496
      %v3504 = vadd.f32 %v3503, %v3497
      %v3505 = vadd.f32 %v3504, %v3498
      %v3506 = vrot.slane %v3505, 4
      %v3507 = vadd.f32 %v3505, %v3506
      %v3508 = vrot.slane %v3507, 2
      %v3509 = vadd.f32 %v3507, %v3508
      %v3510 = vrot.slane %v3509, 1
      %v3511 = vadd.f32 %v3509, %v3510
      %v3512 = vrcp.pop 64.0
      %v3513 = vmul.f32 %v3511, %v3512
      %v3514 = vpack.c.bf16 %v3513, %v3513
      %s3515 = scalar_lea.vmem %s1, 192
      %v3516 = vld [vmem:[%s3515] sm:$0xf]
      %v3517 = vld [vmem:[%s3515 + $0x4] sm:$0xf]
      %v3518 = vld [vmem:[%s3515 + $0x8] sm:$0xf]
      %v3519 = vld [vmem:[%s3515 + $0xc] sm:$0xf]
      %v3520 = vld [vmem:[%s3515 + $0x10] sm:$0xf]
      %v3521 = vld [vmem:[%s3515 + $0x14] sm:$0xf]
      %v3522 = vld [vmem:[%s3515 + $0x18] sm:$0xf]
      %v3523 = vld [vmem:[%s3515 + $0x1c] sm:$0xf]
      %v3524 = vld [vmem:[%s3515 + $0x20] sm:$0xf]
      %v3525 = vld [vmem:[%s3515 + $0x24] sm:$0xf]
      %v3526 = vld [vmem:[%s3515 + $0x28] sm:$0xf]
      %v3527 = vld [vmem:[%s3515 + $0x2c] sm:$0xf]
      %v3528 = vld [vmem:[%s3515 + $0x30] sm:$0xf]
      %v3529 = vld [vmem:[%s3515 + $0x34] sm:$0xf]
      %v3530 = vld [vmem:[%s3515 + $0x38] sm:$0xf]
      %v3531 = vld [vmem:[%s3515 + $0x3c] sm:$0xf]
      %s3532 = scalar_lea.vmem %s2, 5
      %v3533 = vld [vmem:[%s3532] sm:$0x1]
      %v3550 = vunpack.c.l.b16 %v3516
      %v3551 = vunpack.c.l.b16 %v3517
      %v3552 = vunpack.c.l.b16 %v3518
      %v3553 = vunpack.c.l.b16 %v3519
      %v3554 = vunpack.c.l.b16 %v3520
      %v3555 = vunpack.c.l.b16 %v3521
      %v3556 = vunpack.c.l.b16 %v3522
      %v3557 = vunpack.c.l.b16 %v3523
      %v3558 = vunpack.c.l.b16 %v3524
      %v3559 = vunpack.c.l.b16 %v3525
      %v3560 = vunpack.c.l.b16 %v3526
      %v3561 = vunpack.c.l.b16 %v3527
      %v3562 = vunpack.c.l.b16 %v3528
      %v3563 = vunpack.c.l.b16 %v3529
      %v3564 = vunpack.c.l.b16 %v3530
      %v3565 = vunpack.c.l.b16 %v3531
      %v3566 = vpack.c.b16 %v3551, %v3550
      %v3567 = vpack.c.b16 %v3553, %v3552
      %v3568 = vpack.c.b16 %v3555, %v3554
      %v3569 = vpack.c.b16 %v3557, %v3556
      %v3570 = vpack.c.b16 %v3559, %v3558
      %v3571 = vpack.c.b16 %v3561, %v3560
      %v3572 = vpack.c.b16 %v3563, %v3562
      %v3573 = vpack.c.b16 %v3565, %v3564
      %3582 = vmatprep.subr.bf16.mxu0 0
      %3583 = vmatpush1.bf16.msra.mxu0 %v3566
      %3584 = vmatprep.subr.bf16.mxu0 0
      %3585 = vmatpush1.bf16.msra.mxu0 %v3567
      %3586 = vmatprep.subr.bf16.mxu0 0
      %3587 = vmatpush1.bf16.msra.mxu0 %v3568
      %3588 = vmatprep.subr.bf16.mxu0 0
      %3589 = vmatpush1.bf16.msra.mxu0 %v3569
      %3590 = vmatprep.subr.bf16.mxu0 0
      %3591 = vmatpush1.bf16.msra.mxu0 %v3570
      %3592 = vmatprep.subr.bf16.mxu0 0
      %3593 = vmatpush1.bf16.msra.mxu0 %v3571
      %3594 = vmatprep.subr.bf16.mxu0 0
      %3595 = vmatpush1.bf16.msra.mxu0 %v3572
      %3596 = vmatprep.subr.bf16.mxu0 0
      %3597 = vmatpush1.bf16.msra.mxu0 %v3573
      %3598 = vmatprep.subr.bf16.mxu0 0
      %3599 = vmatpush1.bf16.msra.mxu0 0
      %3600 = vmatprep.subr.bf16.mxu0 0
      %3601 = vmatpush1.bf16.msra.mxu0 0
      %3602 = vmatprep.subr.bf16.mxu0 0
      %3603 = vmatpush1.bf16.msra.mxu0 0
      %3604 = vmatprep.subr.bf16.mxu0 0
      %3605 = vmatpush1.bf16.msra.mxu0 0
      %3606 = vmatprep.subr.bf16.mxu0 0
      %3607 = vmatpush1.bf16.msra.mxu0 0
      %3608 = vmatprep.subr.bf16.mxu0 0
      %3609 = vmatpush1.bf16.msra.mxu0 0
      %3610 = vmatprep.subr.bf16.mxu0 0
      %3611 = vmatpush1.bf16.msra.mxu0 0
      %3612 = vmatprep.subr.bf16.mxu0 0
      %3613 = vmatpush1.bf16.msra.mxu0 0
      %3614 = vmatprep.mubr.bf16.mxu0 0
      %3615 = vmatmul.mubr.bf16.gmra.mrb[0].mxu0 %v3514
      %v3616 = vpop.f32.mrb[0].mxu0
      %v3617 = vadd.f32 %v3533, %v3616
      %v3618 = vpop.f32.mrb[0].mxu0
      %v3619 = vpop.f32.mrb[0].mxu0
      %v3620 = vpop.f32.mrb[0].mxu0
      %3621 = vdwg.mxu0
      %v3622 = vmax.f32 %v3617, 0.0
      %v3623 = vpack.c.bf16 %v3622, %v3622
      %s3624 = scalar_lea.vmem %s1, 256
      %v3625 = vld [vmem:[%s3624] sm:$0xf]
      %v3626 = vld [vmem:[%s3624 + $0x4] sm:$0xf]
      %v3627 = vld [vmem:[%s3624 + $0x8] sm:$0xf]
      %v3628 = vld [vmem:[%s3624 + $0xc] sm:$0xf]
      %v3629 = vld [vmem:[%s3624 + $0x10] sm:$0xf]
      %v3630 = vld [vmem:[%s3624 + $0x14] sm:$0xf]
      %v3631 = vld [vmem:[%s3624 + $0x18] sm:$0xf]
      %v3632 = vld [vmem:[%s3624 + $0x1c] sm:$0xf]
      %v3633 = vld [vmem:[%s3624 + $0x20] sm:$0xf]
      %v3634 = vld [vmem:[%s3624 + $0x24] sm:$0xf]
      %v3635 = vld [vmem:[%s3624 + $0x28] sm:$0xf]
      %v3636 = vld [vmem:[%s3624 + $0x2c] sm:$0xf]
      %v3637 = vld [vmem:[%s3624 + $0x30] sm:$0xf]
      %v3638 = vld [vmem:[%s3624 + $0x34] sm:$0xf]
      %v3639 = vld [vmem:[%s3624 + $0x38] sm:$0xf]
      %v3640 = vld [vmem:[%s3624 + $0x3c] sm:$0xf]
      %s3641 = scalar_lea.vmem %s2, 6
      %v3642 = vld [vmem:[%s3641] sm:$0x1]
      %v3659 = vunpack.c.l.b16 %v3625
      %v3660 = vunpack.c.l.b16 %v3626
      %v3661 = vunpack.c.l.b16 %v3627
      %v3662 = vunpack.c.l.b16 %v3628
      %v3663 = vunpack.c.l.b16 %v3629
      %v3664 = vunpack.c.l.b16 %v3630
      %v3665 = vunpack.c.l.b16 %v3631
      %v3666 = vunpack.c.l.b16 %v3632
      %v3667 = vunpack.c.l.b16 %v3633
      %v3668 = vunpack.c.l.b16 %v3634
      %v3669 = vunpack.c.l.b16 %v3635
      %v3670 = vunpack.c.l.b16 %v3636
      %v3671 = vunpack.c.l.b16 %v3637
      %v3672 = vunpack.c.l.b16 %v3638
      %v3673 = vunpack.c.l.b16 %v3639
      %v3674 = vunpack.c.l.b16 %v3640
      %v3675 = vpack.c.b16 %v3660, %v3659
      %v3676 = vpack.c.b16 %v3662, %v3661
      %v3677 = vpack.c.b16 %v3664, %v3663
      %v3678 = vpack.c.b16 %v3666, %v3665
      %v3679 = vpack.c.b16 %v3668, %v3667
      %v3680 = vpack.c.b16 %v3670, %v3669
      %v3681 = vpack.c.b16 %v3672, %v3671
      %v3682 = vpack.c.b16 %v3674, %v3673
      %3691 = vmatprep.subr.bf16.mxu0 0
      %3692 = vmatpush1.bf16.msra.mxu0 %v3675
      %3693 = vmatprep.subr.bf16.mxu0 0
      %3694 = vmatpush1.bf16.msra.mxu0 %v3676
      %3695 = vmatprep.subr.bf16.mxu0 0
      %3696 = vmatpush1.bf16.msra.mxu0 %v3677
      %3697 = vmatprep.subr.bf16.mxu0 0
      %3698 = vmatpush1.bf16.msra.mxu0 %v3678
      %3699 = vmatprep.subr.bf16.mxu0 0
      %3700 = vmatpush1.bf16.msra.mxu0 %v3679
      %3701 = vmatprep.subr.bf16.mxu0 0
      %3702 = vmatpush1.bf16.msra.mxu0 %v3680
      %3703 = vmatprep.subr.bf16.mxu0 0
      %3704 = vmatpush1.bf16.msra.mxu0 %v3681
      %3705 = vmatprep.subr.bf16.mxu0 0
      %3706 = vmatpush1.bf16.msra.mxu0 %v3682
      %3707 = vmatprep.subr.bf16.mxu0 0
      %3708 = vmatpush1.bf16.msra.mxu0 0
      %3709 = vmatprep.subr.bf16.mxu0 0
      %3710 = vmatpush1.bf16.msra.mxu0 0
      %3711 = vmatprep.subr.bf16.mxu0 0
      %3712 = vmatpush1.bf16.msra.mxu0 0
      %3713 = vmatprep.subr.bf16.mxu0 0
      %3714 = vmatpush1.bf16.msra.mxu0 0
      %3715 = vmatprep.subr.bf16.mxu0 0
      %3716 = vmatpush1.bf16.msra.mxu0 0
      %3717 = vmatprep.subr.bf16.mxu0 0
      %3718 = vmatpush1.bf16.msra.mxu0 0
      %3719 = vmatprep.subr.bf16.mxu0 0
      %3720 = vmatpush1.bf16.msra.mxu0 0
      %3721 = vmatprep.subr.bf16.mxu0 0
      %3722 = vmatpush1.bf16.msra.mxu0 0
      %3723 = vmatprep.mubr.bf16.mxu0 0
      %3724 = vmatmul.mubr.bf16.gmra.mrb[0].mxu0 %v3623
      %v3725 = vpop.f32.mrb[0].mxu0
      %v3726 = vadd.f32 %v3642, %v3725
      %v3727 = vpop.f32.mrb[0].mxu0
      %v3728 = vpop.f32.mrb[0].mxu0
      %v3729 = vpop.f32.mrb[0].mxu0
      %3730 = vdwg.mxu0
      %v3731 = vadd.f32 %v3726, 3.0
      %v3732 = vmax.f32 %v3731, 0.0
      %v3733 = vmin.f32 %v3732, 6.0
      %v3734 = vmul.f32 %v3733, 0.16666667
      %v3735 = vlaneseq
      %v3736 = vshrl.u32 %v3735, 7
      %v3737 = vsub.s32 0, %v3736
      %v3738 = vrot.slane %v3734, %v3737
      %v3739 = vmul.f32 %v3491, %v3738
      %v3740 = vmul.f32 %v3492, %v3738
      %v3741 = vmul.f32 %v3493, %v3738
      %v3742 = vmul.f32 %v3494, %v3738
      %v3743 = vmul.f32 %v3495, %v3738
      %v3744 = vmul.f32 %v3496, %v3738
      %v3745 = vmul.f32 %v3497, %v3738
      %v3746 = vmul.f32 %v3498, %v3738
      %v3747 = vpack.c.bf16 %v3740, %v3739
      %v3748 = vpack.c.bf16 %v3742, %v3741
      %v3749 = vpack.c.bf16 %v3744, %v3743
      %v3750 = vpack.c.bf16 %v3746, %v3745
      %s3751 = scalar_lea.vmem %s1, 320
      %v3752 = vld [vmem:[%s3751] sm:$0xf]
      %v3753 = vld [vmem:[%s3751 + $0x4] sm:$0xf]
      %v3754 = vld [vmem:[%s3751 + $0x8] sm:$0xf]
      %v3755 = vld [vmem:[%s3751 + $0xc] sm:$0xf]
      %v3756 = vld [vmem:[%s3751 + $0x10] sm:$0xf]
      %v3757 = vld [vmem:[%s3751 + $0x14] sm:$0xf]
      %v3758 = vld [vmem:[%s3751 + $0x18] sm:$0xf]
      %v3759 = vld [vmem:[%s3751 + $0x1c] sm:$0xf]
      %v3760 = vld [vmem:[%s3751 + $0x20] sm:$0xf]
      %v3761 = vld [vmem:[%s3751 + $0x24] sm:$0xf]
      %v3762 = vld [vmem:[%s3751 + $0x28] sm:$0xf]
      %v3763 = vld [vmem:[%s3751 + $0x2c] sm:$0xf]
      %v3764 = vld [vmem:[%s3751 + $0x30] sm:$0xf]
      %v3765 = vld [vmem:[%s3751 + $0x34] sm:$0xf]
      %v3766 = vld [vmem:[%s3751 + $0x38] sm:$0xf]
      %v3767 = vld [vmem:[%s3751 + $0x3c] sm:$0xf]
      %s3768 = scalar_lea.vmem %s2, 7
      %v3769 = vld [vmem:[%s3768] sm:$0x1]
      %v3771 = vlaneseq
      %v3772 = vshrl.u32 %v3771, 7
      %v3773 = vsub.s32 0, %v3772
      %v3774 = vrot.slane %v3769, %v3773
      %v3792 = vunpack.c.l.b16 %v3752
      %v3793 = vunpack.c.l.b16 %v3753
      %v3794 = vunpack.c.l.b16 %v3754
      %v3795 = vunpack.c.l.b16 %v3755
      %v3796 = vunpack.c.l.b16 %v3756
      %v3797 = vunpack.c.l.b16 %v3757
      %v3798 = vunpack.c.l.b16 %v3758
      %v3799 = vunpack.c.l.b16 %v3759
      %v3800 = vunpack.c.l.b16 %v3760
      %v3801 = vunpack.c.l.b16 %v3761
      %v3802 = vunpack.c.l.b16 %v3762
      %v3803 = vunpack.c.l.b16 %v3763
      %v3804 = vunpack.c.l.b16 %v3764
      %v3805 = vunpack.c.l.b16 %v3765
      %v3806 = vunpack.c.l.b16 %v3766
      %v3807 = vunpack.c.l.b16 %v3767
      %v3808 = vpack.c.b16 %v3793, %v3792
      %v3809 = vpack.c.b16 %v3795, %v3794
      %v3810 = vpack.c.b16 %v3797, %v3796
      %v3811 = vpack.c.b16 %v3799, %v3798
      %v3812 = vpack.c.b16 %v3801, %v3800
      %v3813 = vpack.c.b16 %v3803, %v3802
      %v3814 = vpack.c.b16 %v3805, %v3804
      %v3815 = vpack.c.b16 %v3807, %v3806
      %3824 = vmatprep.subr.bf16.mxu0 0
      %3825 = vmatpush1.bf16.msra.mxu0 %v3808
      %3826 = vmatprep.subr.bf16.mxu0 0
      %3827 = vmatpush1.bf16.msra.mxu0 %v3809
      %3828 = vmatprep.subr.bf16.mxu0 0
      %3829 = vmatpush1.bf16.msra.mxu0 %v3810
      %3830 = vmatprep.subr.bf16.mxu0 0
      %3831 = vmatpush1.bf16.msra.mxu0 %v3811
      %3832 = vmatprep.subr.bf16.mxu0 0
      %3833 = vmatpush1.bf16.msra.mxu0 %v3812
      %3834 = vmatprep.subr.bf16.mxu0 0
      %3835 = vmatpush1.bf16.msra.mxu0 %v3813
      %3836 = vmatprep.subr.bf16.mxu0 0
      %3837 = vmatpush1.bf16.msra.mxu0 %v3814
      %3838 = vmatprep.subr.bf16.mxu0 0
      %3839 = vmatpush1.bf16.msra.mxu0 %v3815
      %3840 = vmatprep.subr.bf16.mxu0 0
      %3841 = vmatpush1.bf16.msra.mxu0 0
      %3842 = vmatprep.subr.bf16.mxu0 0
      %3843 = vmatpush1.bf16.msra.mxu0 0
      %3844 = vmatprep.subr.bf16.mxu0 0
      %3845 = vmatpush1.bf16.msra.mxu0 0
      %3846 = vmatprep.subr.bf16.mxu0 0
      %3847 = vmatpush1.bf16.msra.mxu0 0
      %3848 = vmatprep.subr.bf16.mxu0 0
      %3849 = vmatpush1.bf16.msra.mxu0 0
      %3850 = vmatprep.subr.bf16.mxu0 0
      %3851 = vmatpush1.bf16.msra.mxu0 0
      %3852 = vmatprep.subr.bf16.mxu0 0
      %3853 = vmatpush1.bf16.msra.mxu0 0
      %3854 = vmatprep.subr.bf16.mxu0 0
      %3855 = vmatpush1.bf16.msra.mxu0 0
      %3856 = vmatprep.mubr.bf16.mxu0 0
      %3857 = vmatmul.mubr.bf16.gmra.mrb[0].mxu0 %v3747
      %v3858 = vpop.f32.mrb[0].mxu0
      %v3859 = vadd.f32 %v3774, %v3858
      %v3860 = vpop.f32.mrb[0].mxu0
      %v3861 = vpop.f32.mrb[0].mxu0
      %v3862 = vadd.f32 %v3774, %v3861
      %v3863 = vpop.f32.mrb[0].mxu0
      %3864 = vmatprep.mubr.bf16.mxu0 0
      %3865 = vmatmul.mubr.bf16.gmra.mrb[0].mxu0 %v3748
      %v3866 = vpop.f32.mrb[0].mxu0
      %v3867 = vadd.f32 %v3774, %v3866
      %v3868 = vpop.f32.mrb[0].mxu0
      %v3869 = vpop.f32.mrb[0].mxu0
      %v3870 = vadd.f32 %v3774, %v3869
      %v3871 = vpop.f32.mrb[0].mxu0
      %3872 = vmatprep.mubr.bf16.mxu0 0
      %3873 = vmatmul.mubr.bf16.gmra.mrb[0].mxu0 %v3749
      %v3874 = vpop.f32.mrb[0].mxu0
      %v3875 = vadd.f32 %v3774, %v3874
      %v3876 = vpop.f32.mrb[0].mxu0
      %v3877 = vpop.f32.mrb[0].mxu0
      %v3878 = vadd.f32 %v3774, %v3877
      %v3879 = vpop.f32.mrb[0].mxu0
      %3880 = vmatprep.mubr.bf16.mxu0 0
      %3881 = vmatmul.mubr.bf16.gmra.mrb[0].mxu0 %v3750
      %v3882 = vpop.f32.mrb[0].mxu0
      %v3883 = vadd.f32 %v3774, %v3882
      %v3884 = vpop.f32.mrb[0].mxu0
      %v3885 = vpop.f32.mrb[0].mxu0
      %v3886 = vadd.f32 %v3774, %v3885
      %v3887 = vpop.f32.mrb[0].mxu0
      %3888 = vdwg.mxu0
      %v3889 = vpack.c.bf16 %v3862, %v3859
      %v3890 = vpack.c.bf16 %v3870, %v3867
      %v3891 = vpack.c.bf16 %v3878, %v3875
      %v3892 = vpack.c.bf16 %v3886, %v3883
      %s3893 = scalar_lea.vmem %s1, 384
      %v3894 = vld [vmem:[%s3893] sm:$0xf]
      %v3895 = vld [vmem:[%s3893 + $0x4] sm:$0xf]
      %v3896 = vld [vmem:[%s3893 + $0x8] sm:$0xf]
      %v3897 = vld [vmem:[%s3893 + $0xc] sm:$0xf]
      %v3898 = vld [vmem:[%s3893 + $0x10] sm:$0xf]
      %v3899 = vld [vmem:[%s3893 + $0x14] sm:$0xf]
      %v3900 = vld [vmem:[%s3893 + $0x18] sm:$0xf]
      %v3901 = vld [vmem:[%s3893 + $0x1c] sm:$0xf]
      %v3902 = vld [vmem:[%s3893 + $0x20] sm:$0xf]
      %v3903 = vld [vmem:[%s3893 + $0x24] sm:$0xf]
      %v3904 = vld [vmem:[%s3893 + $0x28] sm:$0xf]
      %v3905 = vld [vmem:[%s3893 + $0x2c] sm:$0xf]
      %v3906 = vld [vmem:[%s3893 + $0x30] sm:$0xf]
      %v3907 = vld [vmem:[%s3893 + $0x34] sm:$0xf]
      %v3908 = vld [vmem:[%s3893 + $0x38] sm:$0xf]
      %v3909 = vld [vmem:[%s3893 + $0x3c] sm:$0xf]
      %s3910 = scalar_lea.vmem %s2, 8
      %v3911 = vld [vmem:[%s3910] sm:$0x1]
      %v3913 = vlaneseq
      %v3914 = vshrl.u32 %v3913, 7
      %v3915 = vsub.s32 0, %v3914
      %v3916 = vrot.slane %v3911, %v3915
      %v3934 = vunpack.c.l.b16 %v3894
      %v3935 = vunpack.c.l.b16 %v3895
      %v3936 = vunpack.c.l.b16 %v3896
      %v3937 = vunpack.c.l.b16 %v3897
      %v3938 = vunpack.c.l.b16 %v3898
      %v3939 = vunpack.c.l.b16 %v3899
      %v3940 = vunpack.c.l.b16 %v3900
      %v3941 = vunpack.c.l.b16 %v3901
      %v3942 = vunpack.c.l.b16 %v3902
      %v3943 = vunpack.c.l.b16 %v3903
      %v3944 = vunpack.c.l.b16 %v3904
      %v3945 = vunpack.c.l.b16 %v3905
      %v3946 = vunpack.c.l.b16 %v3906
      %v3947 = vunpack.c.l.b16 %v3907
      %v3948 = vunpack.c.l.b16 %v3908
      %v3949 = vunpack.c.l.b16 %v3909
      %v3950 = vpack.c.b16 %v3935, %v3934
      %v3951 = vpack.c.b16 %v3937, %v3936
      %v3952 = vpack.c.b16 %v3939, %v3938
      %v3953 = vpack.c.b16 %v3941, %v3940
      %v3954 = vpack.c.b16 %v3943, %v3942
      %v3955 = vpack.c.b16 %v3945, %v3944
      %v3956 = vpack.c.b16 %v3947, %v3946
      %v3957 = vpack.c.b16 %v3949, %v3948
      %3966 = vmatprep.subr.bf16.mxu0 0
      %3967 = vmatpush1.bf16.msra.mxu0 %v3950
      %3968 = vmatprep.subr.bf16.mxu0 0
      %3969 = vmatpush1.bf16.msra.mxu0 %v3951
      %3970 = vmatprep.subr.bf16.mxu0 0
      %3971 = vmatpush1.bf16.msra.mxu0 %v3952
      %3972 = vmatprep.subr.bf16.mxu0 0
      %3973 = vmatpush1.bf16.msra.mxu0 %v3953
      %3974 = vmatprep.subr.bf16.mxu0 0
      %3975 = vmatpush1.bf16.msra.mxu0 %v3954
      %3976 = vmatprep.subr.bf16.mxu0 0
      %3977 = vmatpush1.bf16.msra.mxu0 %v3955
      %3978 = vmatprep.subr.bf16.mxu0 0
      %3979 = vmatpush1.bf16.msra.mxu0 %v3956
      %3980 = vmatprep.subr.bf16.mxu0 0
      %3981 = vmatpush1.bf16.msra.mxu0 %v3957
      %3982 = vmatprep.subr.bf16.mxu0 0
      %3983 = vmatpush1.bf16.msra.mxu0 0
      %3984 = vmatprep.subr.bf16.mxu0 0
      %3985 = vmatpush1.bf16.msra.mxu0 0
      %3986 = vmatprep.subr.bf16.mxu0 0
      %3987 = vmatpush1.bf16.msra.mxu0 0
      %3988 = vmatprep.subr.bf16.mxu0 0
      %3989 = vmatpush1.bf16.msra.mxu0 0
      %3990 = vmatprep.subr.bf16.mxu0 0
      %3991 = vmatpush1.bf16.msra.mxu0 0
      %3992 = vmatprep.subr.bf16.mxu0 0
      %3993 = vmatpush1.bf16.msra.mxu0 0
      %3994 = vmatprep.subr.bf16.mxu0 0
      %3995 = vmatpush1.bf16.msra.mxu0 0
      %3996 = vmatprep.subr.bf16.mxu0 0
      %3997 = vmatpush1.bf16.msra.mxu0 0
      %3998 = vmatprep.mubr.bf16.mxu0 0
      %3999 = vmatmul.mubr.bf16.gmra.mrb[0].mxu0 %v3889
      %v4000 = vpop.f32.mrb[0].mxu0
      %v4001 = vadd.f32 %v3916, %v4000
      %v4002 = vpop.f32.mrb[0].mxu0
      %v4003 = vpop.f32.mrb[0].mxu0
      %v4004 = vadd.f32 %v3916, %v4003
      %v4005 = vpop.f32.mrb[0].mxu0
      %4006 = vmatprep.mubr.bf16.mxu0 0
      %4007 = vmatmul.mubr.bf16.gmra.mrb[0].mxu0 %v3890
      %v4008 = vpop.f32.mrb[0].mxu0
      %v4009 = vadd.f32 %v3916, %v4008
      %v4010 = vpop.f32.mrb[0].mxu0
      %v4011 = vpop.f32.mrb[0].mxu0
      %v4012 = vadd.f32 %v3916, %v4011
      %v4013 = vpop.f32.mrb[0].mxu0
      %4014 = vmatprep.mubr.bf16.mxu0 0
      %4015 = vmatmul.mubr.bf16.gmra.mrb[0].mxu0 %v3891
      %v4016 = vpop.f32.mrb[0].mxu0
      %v4017 = vadd.f32 %v3916, %v4016
      %v4018 = vpop.f32.mrb[0].mxu0
      %v4019 = vpop.f32.mrb[0].mxu0
      %v4020 = vadd.f32 %v3916, %v4019
      %v4021 = vpop.f32.mrb[0].mxu0
      %4022 = vmatprep.mubr.bf16.mxu0 0
      %4023 = vmatmul.mubr.bf16.gmra.mrb[0].mxu0 %v3892
      %v4024 = vpop.f32.mrb[0].mxu0
      %v4025 = vadd.f32 %v3916, %v4024
      %v4026 = vpop.f32.mrb[0].mxu0
      %v4027 = vpop.f32.mrb[0].mxu0
      %v4028 = vadd.f32 %v3916, %v4027
      %v4029 = vpop.f32.mrb[0].mxu0
      %4030 = vdwg.mxu0
      %v4031 = vadd.f32 %v4001, 3.0
      %v4032 = vadd.f32 %v4004, 3.0
      %v4033 = vadd.f32 %v4009, 3.0
      %v4034 = vadd.f32 %v4012, 3.0
      %v4035 = vadd.f32 %v4017, 3.0
      %v4036 = vadd.f32 %v4020, 3.0
      %v4037 = vadd.f32 %v4025, 3.0
      %v4038 = vadd.f32 %v4028, 3.0
      %v4039 = vmax.f32 %v4031, 0.0
      %v4040 = vmax.f32 %v4032, 0.0
      %v4041 = vmax.f32 %v4033, 0.0
      %v4042 = vmax.f32 %v4034, 0.0
      %v4043 = vmax.f32 %v4035, 0.0
      %v4044 = vmax.f32 %v4036, 0.0
      %v4045 = vmax.f32 %v4037, 0.0
      %v4046 = vmax.f32 %v4038, 0.0
      %v4047 = vmin.f32 %v4039, 6.0
      %v4048 = vmin.f32 %v4040, 6.0
      %v4049 = vmin.f32 %v4041, 6.0
      %v4050 = vmin.f32 %v4042, 6.0
      %v4051 = vmin.f32 %v4043, 6.0
      %v4052 = vmin.f32 %v4044, 6.0
      %v4053 = vmin.f32 %v4045, 6.0
      %v4054 = vmin.f32 %v4046, 6.0
      %v4055 = vmul.f32 %v4001, %v4047
      %v4056 = vmul.f32 %v4004, %v4048
      %v4057 = vmul.f32 %v4009, %v4049
      %v4058 = vmul.f32 %v4012, %v4050
      %v4059 = vmul.f32 %v4017, %v4051
      %v4060 = vmul.f32 %v4020, %v4052
      %v4061 = vmul.f32 %v4025, %v4053
      %v4062 = vmul.f32 %v4028, %v4054
      %v4063 = vmul.f32 %v4055, 0.16666667
      %v4064 = vmul.f32 %v4056, 0.16666667
      %v4065 = vmul.f32 %v4057, 0.16666667
      %v4066 = vmul.f32 %v4058, 0.16666667
      %v4067 = vmul.f32 %v4059, 0.16666667
      %v4068 = vmul.f32 %v4060, 0.16666667
      %v4069 = vmul.f32 %v4061, 0.16666667
      %v4070 = vmul.f32 %v4062, 0.16666667
      %v4071 = vld [vmem:[%s9] sm:$0xf]
      %v4072 = vld [vmem:[%s9 + $0x4] sm:$0xf]
      %v4073 = vld [vmem:[%s9 + $0x8] sm:$0xf]
      %v4074 = vld [vmem:[%s9 + $0xc] sm:$0xf]
      %v4075 = vld [vmem:[%s9 + $0x10] sm:$0xf]
      %v4076 = vld [vmem:[%s9 + $0x14] sm:$0xf]
      %v4077 = vld [vmem:[%s9 + $0x18] sm:$0xf]
      %v4078 = vld [vmem:[%s9 + $0x1c] sm:$0xf]
      %v4079 = vld [vmem:[%s10] sm:$0xf]
      %v4080 = vld [vmem:[%s10 + $0x4] sm:$0xf]
      %v4081 = vld [vmem:[%s10 + $0x8] sm:$0xf]
      %v4082 = vld [vmem:[%s10 + $0xc] sm:$0xf]
      %v4083 = vld [vmem:[%s10 + $0x10] sm:$0xf]
      %v4084 = vld [vmem:[%s10 + $0x14] sm:$0xf]
      %v4085 = vld [vmem:[%s10 + $0x18] sm:$0xf]
      %v4086 = vld [vmem:[%s10 + $0x1c] sm:$0xf]
      %s4087 = scalar_lea.vmem %s3, 18
      %v4088 = vld [vmem:[%s4087] sm:$0x1]
      %v4089 = vld [vmem:[%s4087 + $0x1] sm:$0x1]
      %v4090 = vld [vmem:[%s4087 + $0x2] sm:$0x1]
      %v4091 = vld [vmem:[%s4087 + $0x3] sm:$0x1]
      %v4092 = vld [vmem:[%s4087 + $0x4] sm:$0x1]
      %v4093 = vld [vmem:[%s4087 + $0x5] sm:$0x1]
      %v4094 = vld [vmem:[%s4087 + $0x6] sm:$0x1]
      %v4095 = vld [vmem:[%s4087 + $0x7] sm:$0x1]
      %v4096 = vld [vmem:[%s4087 + $0x8] sm:$0x1]
      %v4098 = vlaneseq
      %v4099 = vshrl.u32 %v4098, 7
      %v4100 = vsub.s32 0, %v4099
      %v4101 = vrot.slane %v4088, %v4100
      %v4103 = vmul.f32 %v4101, 0.0
      %v4104 = vmul.f32 %v4063, %v4101
      %v4105 = vmul.f32 %v4064, %v4101
      %v4106 = vmul.f32 %v4065, %v4101
      %v4107 = vmul.f32 %v4066, %v4101
      %v4108 = vmul.f32 %v4067, %v4101
      %v4109 = vmul.f32 %v4068, %v4101
      %v4110 = vmul.f32 %v4069, %v4101
      %v4112 = vlaneseq
      %v4113 = vshrl.u32 %v4112, 7
      %v4114 = vsub.s32 0, %v4113
      %v4115 = vrot.slane %v4091, %v4114
      %v4117 = vmul.f32 %v4063, %v4115
      %v4118 = vmul.f32 %v4064, %v4115
      %v4119 = vmul.f32 %v4065, %v4115
      %v4120 = vmul.f32 %v4066, %v4115
      %v4121 = vmul.f32 %v4067, %v4115
      %v4122 = vmul.f32 %v4068, %v4115
      %v4123 = vmul.f32 %v4069, %v4115
      %v4124 = vmul.f32 %v4070, %v4115
      %v4125 = vadd.f32 %v4103, %v4117
      %v4126 = vadd.f32 %v4104, %v4118
      %v4127 = vadd.f32 %v4105, %v4119
      %v4128 = vadd.f32 %v4106, %v4120
      %v4129 = vadd.f32 %v4107, %v4121
      %v4130 = vadd.f32 %v4108, %v4122
      %v4131 = vadd.f32 %v4109, %v4123
      %v4132 = vadd.f32 %v4110, %v4124
      %v4134 = vlaneseq
      %v4135 = vshrl.u32 %v4134, 7
      %v4136 = vsub.s32 0, %v4135
      %v4137 = vrot.slane %v4094, %v4136
      %v4139 = vmul.f32 %v4064, %v4137
      %v4140 = vmul.f32 %v4065, %v4137
      %v4141 = vmul.f32 %v4066, %v4137
      %v4142 = vmul.f32 %v4067, %v4137
      %v4143 = vmul.f32 %v4068, %v4137
      %v4144 = vmul.f32 %v4069, %v4137
      %v4145 = vmul.f32 %v4070, %v4137
      %v4146 = vmul.f32 %v4137, 0.0
      %v4147 = vadd.f32 %v4125, %v4139
      %v4148 = vadd.f32 %v4126, %v4140
      %v4149 = vadd.f32 %v4127, %v4141
      %v4150 = vadd.f32 %v4128, %v4142
      %v4151 = vadd.f32 %v4129, %v4143
      %v4152 = vadd.f32 %v4130, %v4144
      %v4153 = vadd.f32 %v4131, %v4145
      %v4154 = vadd.f32 %v4132, %v4146
      %v4155 = vpack.c.bf16 %v4148, %v4147
      %v4156 = vpack.c.bf16 %v4150, %v4149
      %v4157 = vpack.c.bf16 %v4152, %v4151
      %v4158 = vpack.c.bf16 %v4154, %v4153
      %v4160 = vlaneseq
      %v4161 = vshrl.u32 %v4160, 7
      %v4162 = vsub.s32 0, %v4161
      %v4163 = vrot.slane %v4089, %v4162
      %v4165 = vmul.f32 %v4163, 0.0
      %v4166 = vmul.f32 %v4063, %v4163
      %v4167 = vmul.f32 %v4064, %v4163
      %v4168 = vmul.f32 %v4065, %v4163
      %v4169 = vmul.f32 %v4066, %v4163
      %v4170 = vmul.f32 %v4067, %v4163
      %v4171 = vmul.f32 %v4068, %v4163
      %v4172 = vmul.f32 %v4069, %v4163
      %v4174 = vlaneseq
      %v4175 = vshrl.u32 %v4174, 7
      %v4176 = vsub.s32 0, %v4175
      %v4177 = vrot.slane %v4092, %v4176
      %v4179 = vmul.f32 %v4063, %v4177
      %v4180 = vmul.f32 %v4064, %v4177
      %v4181 = vmul.f32 %v4065, %v4177
      %v4182 = vmul.f32 %v4066, %v4177
      %v4183 = vmul.f32 %v4067, %v4177
      %v4184 = vmul.f32 %v4068, %v4177
      %v4185 = vmul.f32 %v4069, %v4177
      %v4186 = vmul.f32 %v4070, %v4177
      %v4187 = vadd.f32 %v4165, %v4179
      %v4188 = vadd.f32 %v4166, %v4180
      %v4189 = vadd.f32 %v4167, %v4181
      %v4190 = vadd.f32 %v4168, %v4182
      %v4191 = vadd.f32 %v4169, %v4183
      %v4192 = vadd.f32 %v4170, %v4184
      %v4193 = vadd.f32 %v4171, %v4185
      %v4194 = vadd.f32 %v4172, %v4186
      %v4196 = vlaneseq
      %v4197 = vshrl.u32 %v4196, 7
      %v4198 = vsub.s32 0, %v4197
      %v4199 = vrot.slane %v4095, %v4198
      %v4201 = vmul.f32 %v4064, %v4199
      %v4202 = vmul.f32 %v4065, %v4199
      %v4203 = vmul.f32 %v4066, %v4199
      %v4204 = vmul.f32 %v4067, %v4199
      %v4205 = vmul.f32 %v4068, %v4199
      %v4206 = vmul.f32 %v4069, %v4199
      %v4207 = vmul.f32 %v4070, %v4199
      %v4208 = vmul.f32 %v4199, 0.0
      %v4209 = vadd.f32 %v4187, %v4201
      %v4210 = vadd.f32 %v4188, %v4202
      %v4211 = vadd.f32 %v4189, %v4203
      %v4212 = vadd.f32 %v4190, %v4204
      %v4213 = vadd.f32 %v4191, %v4205
      %v4214 = vadd.f32 %v4192, %v4206
      %v4215 = vadd.f32 %v4193, %v4207
      %v4216 = vadd.f32 %v4194, %v4208
      %v4225 = vunpack.c.l.b16 %v4071
      %v4226 = vunpack.c.l.b16 %v4072
      %v4227 = vunpack.c.l.b16 %v4073
      %v4228 = vunpack.c.l.b16 %v4074
      %v4229 = vunpack.c.l.b16 %v4075
      %v4230 = vunpack.c.l.b16 %v4076
      %v4231 = vunpack.c.l.b16 %v4077
      %v4232 = vunpack.c.l.b16 %v4078
      %v4233 = vpack.c.b16 %v4226, %v4225
      %v4234 = vpack.c.b16 %v4228, %v4227
      %v4235 = vpack.c.b16 %v4230, %v4229
      %v4236 = vpack.c.b16 %v4232, %v4231
      %vm4237 = vcmask 523264
      %v4239 = vsel %vm4237, %v4233, 0
      %v4242 = vsel %vm4237, %v4234, 0
      %v4245 = vsel %vm4237, %v4235, 0
      %v4248 = vsel %vm4237, %v4236, 0
      %4250 = vmatprep.subr.bf16.mxu0 0
      %4251 = vmatpush1.bf16.msra.mxu0 %v4155
      %4252 = vmatprep.subr.bf16.mxu0 0
      %4253 = vmatpush1.bf16.msra.mxu0 %v4156
      %4254 = vmatprep.subr.bf16.mxu0 0
      %4255 = vmatpush1.bf16.msra.mxu0 %v4157
      %4256 = vmatprep.subr.bf16.mxu0 0
      %4257 = vmatpush1.bf16.msra.mxu0 %v4158
      %4258 = vmatprep.subr.bf16.mxu0 0
      %4259 = vmatpush1.bf16.msra.mxu0 0
      %4260 = vmatprep.subr.bf16.mxu0 0
      %4261 = vmatpush1.bf16.msra.mxu0 0
      %4262 = vmatprep.subr.bf16.mxu0 0
      %4263 = vmatpush1.bf16.msra.mxu0 0
      %4264 = vmatprep.subr.bf16.mxu0 0
      %4265 = vmatpush1.bf16.msra.mxu0 0
      %4266 = vmatprep.subr.bf16.mxu0 0
      %4267 = vmatpush1.bf16.msra.mxu0 0
      %4268 = vmatprep.subr.bf16.mxu0 0
      %4269 = vmatpush1.bf16.msra.mxu0 0
      %4270 = vmatprep.subr.bf16.mxu0 0
      %4271 = vmatpush1.bf16.msra.mxu0 0
      %4272 = vmatprep.subr.bf16.mxu0 0
      %4273 = vmatpush1.bf16.msra.mxu0 0
      %4274 = vmatprep.subr.bf16.mxu0 0
      %4275 = vmatpush1.bf16.msra.mxu0 0
      %4276 = vmatprep.subr.bf16.mxu0 0
      %4277 = vmatpush1.bf16.msra.mxu0 0
      %4278 = vmatprep.subr.bf16.mxu0 0
      %4279 = vmatpush1.bf16.msra.mxu0 0
      %4280 = vmatprep.subr.bf16.mxu0 0
      %4281 = vmatpush1.bf16.msra.mxu0 0
      %4282 = vmatprep.mubr.bf16.mxu0 0
      %4283 = vmatmul.mubr.bf16.gmra.mrb[0].mxu0 %v4239
      %v4284 = vpop.f32.mrb[0].mxu0
      %v4285 = vadd.f32 %v4209, %v4284
      %v4286 = vpop.f32.mrb[0].mxu0
      %v4287 = vpop.f32.mrb[0].mxu0
      %v4288 = vadd.f32 %v4210, %v4287
      %v4289 = vpop.f32.mrb[0].mxu0
      %4290 = vmatprep.mubr.bf16.mxu0 0
      %4291 = vmatmul.mubr.bf16.gmra.mrb[0].mxu0 %v4242
      %v4292 = vpop.f32.mrb[0].mxu0
      %v4293 = vadd.f32 %v4211, %v4292
      %v4294 = vpop.f32.mrb[0].mxu0
      %v4295 = vpop.f32.mrb[0].mxu0
      %v4296 = vadd.f32 %v4212, %v4295
      %v4297 = vpop.f32.mrb[0].mxu0
      %4298 = vmatprep.mubr.bf16.mxu0 0
      %4299 = vmatmul.mubr.bf16.gmra.mrb[0].mxu0 %v4245
      %v4300 = vpop.f32.mrb[0].mxu0
      %v4301 = vadd.f32 %v4213, %v4300
      %v4302 = vpop.f32.mrb[0].mxu0
      %v4303 = vpop.f32.mrb[0].mxu0
      %v4304 = vadd.f32 %v4214, %v4303
      %v4305 = vpop.f32.mrb[0].mxu0
      %4306 = vmatprep.mubr.bf16.mxu0 0
      %4307 = vmatmul.mubr.bf16.gmra.mrb[0].mxu0 %v4248
      %v4308 = vpop.f32.mrb[0].mxu0
      %v4309 = vadd.f32 %v4215, %v4308
      %v4310 = vpop.f32.mrb[0].mxu0
      %v4311 = vpop.f32.mrb[0].mxu0
      %v4312 = vadd.f32 %v4216, %v4311
      %v4313 = vpop.f32.mrb[0].mxu0
      %4314 = vdwg.mxu0
      %v4316 = vlaneseq
      %v4317 = vshrl.u32 %v4316, 7
      %v4318 = vsub.s32 0, %v4317
      %v4319 = vrot.slane %v4090, %v4318
      %v4321 = vmul.f32 %v4319, 0.0
      %v4322 = vmul.f32 %v4063, %v4319
      %v4323 = vmul.f32 %v4064, %v4319
      %v4324 = vmul.f32 %v4065, %v4319
      %v4325 = vmul.f32 %v4066, %v4319
      %v4326 = vmul.f32 %v4067, %v4319
      %v4327 = vmul.f32 %v4068, %v4319
      %v4328 = vmul.f32 %v4069, %v4319
      %v4330 = vlaneseq
      %v4331 = vshrl.u32 %v4330, 7
      %v4332 = vsub.s32 0, %v4331
      %v4333 = vrot.slane %v4093, %v4332
      %v4335 = vmul.f32 %v4063, %v4333
      %v4336 = vmul.f32 %v4064, %v4333
      %v4337 = vmul.f32 %v4065, %v4333
      %v4338 = vmul.f32 %v4066, %v4333
      %v4339 = vmul.f32 %v4067, %v4333
      %v4340 = vmul.f32 %v4068, %v4333
      %v4341 = vmul.f32 %v4069, %v4333
      %v4342 = vmul.f32 %v4070, %v4333
      %v4343 = vadd.f32 %v4321, %v4335
      %v4344 = vadd.f32 %v4322, %v4336
      %v4345 = vadd.f32 %v4323, %v4337
      %v4346 = vadd.f32 %v4324, %v4338
      %v4347 = vadd.f32 %v4325, %v4339
      %v4348 = vadd.f32 %v4326, %v4340
      %v4349 = vadd.f32 %v4327, %v4341
      %v4350 = vadd.f32 %v4328, %v4342
      %v4352 = vlaneseq
      %v4353 = vshrl.u32 %v4352, 7
      %v4354 = vsub.s32 0, %v4353
      %v4355 = vrot.slane %v4096, %v4354
      %v4357 = vmul.f32 %v4064, %v4355
      %v4358 = vmul.f32 %v4065, %v4355
      %v4359 = vmul.f32 %v4066, %v4355
      %v4360 = vmul.f32 %v4067, %v4355
      %v4361 = vmul.f32 %v4068, %v4355
      %v4362 = vmul.f32 %v4069, %v4355
      %v4363 = vmul.f32 %v4070, %v4355
      %v4364 = vmul.f32 %v4355, 0.0
      %v4365 = vadd.f32 %v4343, %v4357
      %v4366 = vadd.f32 %v4344, %v4358
      %v4367 = vadd.f32 %v4345, %v4359
      %v4368 = vadd.f32 %v4346, %v4360
      %v4369 = vadd.f32 %v4347, %v4361
      %v4370 = vadd.f32 %v4348, %v4362
      %v4371 = vadd.f32 %v4349, %v4363
      %v4372 = vadd.f32 %v4350, %v4364
      %v4373 = vpack.c.bf16 %v4366, %v4365
      %v4374 = vpack.c.bf16 %v4368, %v4367
      %v4375 = vpack.c.bf16 %v4370, %v4369
      %v4376 = vpack.c.bf16 %v4372, %v4371
      %v4385 = vunpack.c.l.b16 %v4079
      %v4386 = vunpack.c.l.b16 %v4080
      %v4387 = vunpack.c.l.b16 %v4081
      %v4388 = vunpack.c.l.b16 %v4082
      %v4389 = vunpack.c.l.b16 %v4083
      %v4390 = vunpack.c.l.b16 %v4084
      %v4391 = vunpack.c.l.b16 %v4085
      %v4392 = vunpack.c.l.b16 %v4086
      %v4393 = vpack.c.b16 %v4386, %v4385
      %v4394 = vpack.c.b16 %v4388, %v4387
      %v4395 = vpack.c.b16 %v4390, %v4389
      %v4396 = vpack.c.b16 %v4392, %v4391
      %v4398 = vsel %vm4237, %v4393, 0
      %v4401 = vsel %vm4237, %v4394, 0
      %v4404 = vsel %vm4237, %v4395, 0
      %v4407 = vsel %vm4237, %v4396, 0
      %4409 = vmatprep.subr.bf16.mxu0 0
      %4410 = vmatpush1.bf16.msra.mxu0 %v4373
      %4411 = vmatprep.subr.bf16.mxu0 0
      %4412 = vmatpush1.bf16.msra.mxu0 %v4374
      %4413 = vmatprep.subr.bf16.mxu0 0
      %4414 = vmatpush1.bf16.msra.mxu0 %v4375
      %4415 = vmatprep.subr.bf16.mxu0 0
      %4416 = vmatpush1.bf16.msra.mxu0 %v4376
      %4417 = vmatprep.subr.bf16.mxu0 0
      %4418 = vmatpush1.bf16.msra.mxu0 0
      %4419 = vmatprep.subr.bf16.mxu0 0
      %4420 = vmatpush1.bf16.msra.mxu0 0
      %4421 = vmatprep.subr.bf16.mxu0 0
      %4422 = vmatpush1.bf16.msra.mxu0 0
      %4423 = vmatprep.subr.bf16.mxu0 0
      %4424 = vmatpush1.bf16.msra.mxu0 0
      %4425 = vmatprep.subr.bf16.mxu0 0
      %4426 = vmatpush1.bf16.msra.mxu0 0
      %4427 = vmatprep.subr.bf16.mxu0 0
      %4428 = vmatpush1.bf16.msra.mxu0 0
      %4429 = vmatprep.subr.bf16.mxu0 0
      %4430 = vmatpush1.bf16.msra.mxu0 0
      %4431 = vmatprep.subr.bf16.mxu0 0
      %4432 = vmatpush1.bf16.msra.mxu0 0
      %4433 = vmatprep.subr.bf16.mxu0 0
      %4434 = vmatpush1.bf16.msra.mxu0 0
      %4435 = vmatprep.subr.bf16.mxu0 0
      %4436 = vmatpush1.bf16.msra.mxu0 0
      %4437 = vmatprep.subr.bf16.mxu0 0
      %4438 = vmatpush1.bf16.msra.mxu0 0
      %4439 = vmatprep.subr.bf16.mxu0 0
      %4440 = vmatpush1.bf16.msra.mxu0 0
      %4441 = vmatprep.mubr.bf16.mxu0 0
      %4442 = vmatmul.mubr.bf16.gmra.mrb[0].mxu0 %v4398
      %v4443 = vpop.f32.mrb[0].mxu0
      %v4444 = vadd.f32 0.0, %v4443
      %v4445 = vpop.f32.mrb[0].mxu0
      %v4446 = vpop.f32.mrb[0].mxu0
      %v4447 = vadd.f32 0.0, %v4446
      %v4448 = vpop.f32.mrb[0].mxu0
      %4449 = vmatprep.mubr.bf16.mxu0 0
      %4450 = vmatmul.mubr.bf16.gmra.mrb[0].mxu0 %v4401
      %v4451 = vpop.f32.mrb[0].mxu0
      %v4452 = vadd.f32 0.0, %v4451
      %v4453 = vpop.f32.mrb[0].mxu0
      %v4454 = vpop.f32.mrb[0].mxu0
      %v4455 = vadd.f32 0.0, %v4454
      %v4456 = vpop.f32.mrb[0].mxu0
      %4457 = vmatprep.mubr.bf16.mxu0 0
      %4458 = vmatmul.mubr.bf16.gmra.mrb[0].mxu0 %v4404
      %v4459 = vpop.f32.mrb[0].mxu0
      %v4460 = vadd.f32 0.0, %v4459
      %v4461 = vpop.f32.mrb[0].mxu0
      %v4462 = vpop.f32.mrb[0].mxu0
      %v4463 = vadd.f32 0.0, %v4462
      %v4464 = vpop.f32.mrb[0].mxu0
      %4465 = vmatprep.mubr.bf16.mxu0 0
      %4466 = vmatmul.mubr.bf16.gmra.mrb[0].mxu0 %v4407
      %v4467 = vpop.f32.mrb[0].mxu0
      %v4468 = vadd.f32 0.0, %v4467
      %v4469 = vpop.f32.mrb[0].mxu0
      %v4470 = vpop.f32.mrb[0].mxu0
      %v4471 = vadd.f32 0.0, %v4470
      %v4472 = vpop.f32.mrb[0].mxu0
      %4473 = vdwg.mxu0
      %v4474 = vadd.f32 %v4285, %v4444
      %v4475 = vadd.f32 %v4288, %v4447
      %v4476 = vadd.f32 %v4293, %v4452
      %v4477 = vadd.f32 %v4296, %v4455
      %v4478 = vadd.f32 %v4301, %v4460
      %v4479 = vadd.f32 %v4304, %v4463
      %v4480 = vadd.f32 %v4309, %v4468
      %v4481 = vadd.f32 %v4312, %v4471
      %s4482 = scalar_lea.vmem %s2, 9
      %v4483 = vld [vmem:[%s4482] sm:$0x1]
      %v4485 = vlaneseq
      %v4486 = vshrl.u32 %v4485, 7
      %v4487 = vsub.s32 0, %v4486
      %v4488 = vrot.slane %v4483, %v4487
      %v4490 = vadd.f32 %v4474, %v4488
      %v4491 = vadd.f32 %v4475, %v4488
      %v4492 = vadd.f32 %v4476, %v4488
      %v4493 = vadd.f32 %v4477, %v4488
      %v4494 = vadd.f32 %v4478, %v4488
      %v4495 = vadd.f32 %v4479, %v4488
      %v4496 = vadd.f32 %v4480, %v4488
      %v4497 = vadd.f32 %v4481, %v4488
      %v4498 = vadd.f32 %v4490, 3.0
      %v4499 = vadd.f32 %v4491, 3.0
      %v4500 = vadd.f32 %v4492, 3.0
      %v4501 = vadd.f32 %v4493, 3.0
      %v4502 = vadd.f32 %v4494, 3.0
      %v4503 = vadd.f32 %v4495, 3.0
      %v4504 = vadd.f32 %v4496, 3.0
      %v4505 = vadd.f32 %v4497, 3.0
      %v4506 = vmax.f32 %v4498, 0.0
      %v4507 = vmax.f32 %v4499, 0.0
      %v4508 = vmax.f32 %v4500, 0.0
      %v4509 = vmax.f32 %v4501, 0.0
      %v4510 = vmax.f32 %v4502, 0.0
      %v4511 = vmax.f32 %v4503, 0.0
      %v4512 = vmax.f32 %v4504, 0.0
      %v4513 = vmax.f32 %v4505, 0.0
      %v4514 = vmin.f32 %v4506, 6.0
      %v4515 = vmin.f32 %v4507, 6.0
      %v4516 = vmin.f32 %v4508, 6.0
      %v4517 = vmin.f32 %v4509, 6.0
      %v4518 = vmin.f32 %v4510, 6.0
      %v4519 = vmin.f32 %v4511, 6.0
      %v4520 = vmin.f32 %v4512, 6.0
      %v4521 = vmin.f32 %v4513, 6.0
      %v4522 = vmul.f32 %v4490, %v4514
      %v4523 = vmul.f32 %v4491, %v4515
      %v4524 = vmul.f32 %v4492, %v4516
      %v4525 = vmul.f32 %v4493, %v4517
      %v4526 = vmul.f32 %v4494, %v4518
      %v4527 = vmul.f32 %v4495, %v4519
      %v4528 = vmul.f32 %v4496, %v4520
      %v4529 = vmul.f32 %v4497, %v4521
      %v4530 = vmul.f32 %v4522, 0.16666667
      %v4531 = vmul.f32 %v4523, 0.16666667
      %v4532 = vmul.f32 %v4524, 0.16666667
      %v4533 = vmul.f32 %v4525, 0.16666667
      %v4534 = vmul.f32 %v4526, 0.16666667
      %v4535 = vmul.f32 %v4527, 0.16666667
      %v4536 = vmul.f32 %v4528, 0.16666667
      %v4537 = vmul.f32 %v4529, 0.16666667
      %v4538 = vadd.f32 %v4530, %v4531
      %v4539 = vadd.f32 %v4538, %v4532
      %v4540 = vadd.f32 %v4539, %v4533
      %v4541 = vadd.f32 %v4540, %v4534
      %v4542 = vadd.f32 %v4541, %v4535
      %v4543 = vadd.f32 %v4542, %v4536
      %v4544 = vadd.f32 %v4543, %v4537
      %v4545 = vrot.slane %v4544, 4
      %v4546 = vadd.f32 %v4544, %v4545
      %v4547 = vrot.slane %v4546, 2
      %v4548 = vadd.f32 %v4546, %v4547
      %v4549 = vrot.slane %v4548, 1
      %v4550 = vadd.f32 %v4548, %v4549
      %v4551 = vmul.f32 %v4550, %v3512
      %v4552 = vpack.c.bf16 %v4551, %v4551
      %s4553 = scalar_lea.vmem %s1, 448
      %v4554 = vld [vmem:[%s4553] sm:$0xf]
      %v4555 = vld [vmem:[%s4553 + $0x4] sm:$0xf]
      %v4556 = vld [vmem:[%s4553 + $0x8] sm:$0xf]
      %v4557 = vld [vmem:[%s4553 + $0xc] sm:$0xf]
      %v4558 = vld [vmem:[%s4553 + $0x10] sm:$0xf]
      %v4559 = vld [vmem:[%s4553 + $0x14] sm:$0xf]
      %v4560 = vld [vmem:[%s4553 + $0x18] sm:$0xf]
      %v4561 = vld [vmem:[%s4553 + $0x1c] sm:$0xf]
      %v4562 = vld [vmem:[%s4553 + $0x20] sm:$0xf]
      %v4563 = vld [vmem:[%s4553 + $0x24] sm:$0xf]
      %v4564 = vld [vmem:[%s4553 + $0x28] sm:$0xf]
      %v4565 = vld [vmem:[%s4553 + $0x2c] sm:$0xf]
      %v4566 = vld [vmem:[%s4553 + $0x30] sm:$0xf]
      %v4567 = vld [vmem:[%s4553 + $0x34] sm:$0xf]
      %v4568 = vld [vmem:[%s4553 + $0x38] sm:$0xf]
      %v4569 = vld [vmem:[%s4553 + $0x3c] sm:$0xf]
      %s4570 = scalar_lea.vmem %s2, 10
      %v4571 = vld [vmem:[%s4570] sm:$0x1]
      %v4588 = vunpack.c.l.b16 %v4554
      %v4589 = vunpack.c.l.b16 %v4555
      %v4590 = vunpack.c.l.b16 %v4556
      %v4591 = vunpack.c.l.b16 %v4557
      %v4592 = vunpack.c.l.b16 %v4558
      %v4593 = vunpack.c.l.b16 %v4559
      %v4594 = vunpack.c.l.b16 %v4560
      %v4595 = vunpack.c.l.b16 %v4561
      %v4596 = vunpack.c.l.b16 %v4562
      %v4597 = vunpack.c.l.b16 %v4563
      %v4598 = vunpack.c.l.b16 %v4564
      %v4599 = vunpack.c.l.b16 %v4565
      %v4600 = vunpack.c.l.b16 %v4566
      %v4601 = vunpack.c.l.b16 %v4567
      %v4602 = vunpack.c.l.b16 %v4568
      %v4603 = vunpack.c.l.b16 %v4569
      %v4604 = vpack.c.b16 %v4589, %v4588
      %v4605 = vpack.c.b16 %v4591, %v4590
      %v4606 = vpack.c.b16 %v4593, %v4592
      %v4607 = vpack.c.b16 %v4595, %v4594
      %v4608 = vpack.c.b16 %v4597, %v4596
      %v4609 = vpack.c.b16 %v4599, %v4598
      %v4610 = vpack.c.b16 %v4601, %v4600
      %v4611 = vpack.c.b16 %v4603, %v4602
      %4620 = vmatprep.subr.bf16.mxu0 0
      %4621 = vmatpush1.bf16.msra.mxu0 %v4604
      %4622 = vmatprep.subr.bf16.mxu0 0
      %4623 = vmatpush1.bf16.msra.mxu0 %v4605
      %4624 = vmatprep.subr.bf16.mxu0 0
      %4625 = vmatpush1.bf16.msra.mxu0 %v4606
      %4626 = vmatprep.subr.bf16.mxu0 0
      %4627 = vmatpush1.bf16.msra.mxu0 %v4607
      %4628 = vmatprep.subr.bf16.mxu0 0
      %4629 = vmatpush1.bf16.msra.mxu0 %v4608
      %4630 = vmatprep.subr.bf16.mxu0 0
      %4631 = vmatpush1.bf16.msra.mxu0 %v4609
      %4632 = vmatprep.subr.bf16.mxu0 0
      %4633 = vmatpush1.bf16.msra.mxu0 %v4610
      %4634 = vmatprep.subr.bf16.mxu0 0
      %4635 = vmatpush1.bf16.msra.mxu0 %v4611
      %4636 = vmatprep.subr.bf16.mxu0 0
      %4637 = vmatpush1.bf16.msra.mxu0 0
      %4638 = vmatprep.subr.bf16.mxu0 0
      %4639 = vmatpush1.bf16.msra.mxu0 0
      %4640 = vmatprep.subr.bf16.mxu0 0
      %4641 = vmatpush1.bf16.msra.mxu0 0
      %4642 = vmatprep.subr.bf16.mxu0 0
      %4643 = vmatpush1.bf16.msra.mxu0 0
      %4644 = vmatprep.subr.bf16.mxu0 0
      %4645 = vmatpush1.bf16.msra.mxu0 0
      %4646 = vmatprep.subr.bf16.mxu0 0
      %4647 = vmatpush1.bf16.msra.mxu0 0
      %4648 = vmatprep.subr.bf16.mxu0 0
      %4649 = vmatpush1.bf16.msra.mxu0 0
      %4650 = vmatprep.subr.bf16.mxu0 0
      %4651 = vmatpush1.bf16.msra.mxu0 0
      %4652 = vmatprep.mubr.bf16.mxu0 0
      %4653 = vmatmul.mubr.bf16.gmra.mrb[0].mxu0 %v4552
      %v4654 = vpop.f32.mrb[0].mxu0
      %v4655 = vadd.f32 %v4571, %v4654
      %v4656 = vpop.f32.mrb[0].mxu0
      %v4657 = vpop.f32.mrb[0].mxu0
      %v4658 = vpop.f32.mrb[0].mxu0
      %4659 = vdwg.mxu0
      %v4660 = vmax.f32 %v4655, 0.0
      %v4661 = vpack.c.bf16 %v4660, %v4660
      %s4662 = scalar_lea.vmem %s1, 512
      %v4663 = vld [vmem:[%s4662] sm:$0xf]
      %v4664 = vld [vmem:[%s4662 + $0x4] sm:$0xf]
      %v4665 = vld [vmem:[%s4662 + $0x8] sm:$0xf]
      %v4666 = vld [vmem:[%s4662 + $0xc] sm:$0xf]
      %v4667 = vld [vmem:[%s4662 + $0x10] sm:$0xf]
      %v4668 = vld [vmem:[%s4662 + $0x14] sm:$0xf]
      %v4669 = vld [vmem:[%s4662 + $0x18] sm:$0xf]
      %v4670 = vld [vmem:[%s4662 + $0x1c] sm:$0xf]
      %v4671 = vld [vmem:[%s4662 + $0x20] sm:$0xf]
      %v4672 = vld [vmem:[%s4662 + $0x24] sm:$0xf]
      %v4673 = vld [vmem:[%s4662 + $0x28] sm:$0xf]
      %v4674 = vld [vmem:[%s4662 + $0x2c] sm:$0xf]
      %v4675 = vld [vmem:[%s4662 + $0x30] sm:$0xf]
      %v4676 = vld [vmem:[%s4662 + $0x34] sm:$0xf]
      %v4677 = vld [vmem:[%s4662 + $0x38] sm:$0xf]
      %v4678 = vld [vmem:[%s4662 + $0x3c] sm:$0xf]
      %s4679 = scalar_lea.vmem %s2, 11
      %v4680 = vld [vmem:[%s4679] sm:$0x1]
      %v4697 = vunpack.c.l.b16 %v4663
      %v4698 = vunpack.c.l.b16 %v4664
      %v4699 = vunpack.c.l.b16 %v4665
      %v4700 = vunpack.c.l.b16 %v4666
      %v4701 = vunpack.c.l.b16 %v4667
      %v4702 = vunpack.c.l.b16 %v4668
      %v4703 = vunpack.c.l.b16 %v4669
      %v4704 = vunpack.c.l.b16 %v4670
      %v4705 = vunpack.c.l.b16 %v4671
      %v4706 = vunpack.c.l.b16 %v4672
      %v4707 = vunpack.c.l.b16 %v4673
      %v4708 = vunpack.c.l.b16 %v4674
      %v4709 = vunpack.c.l.b16 %v4675
      %v4710 = vunpack.c.l.b16 %v4676
      %v4711 = vunpack.c.l.b16 %v4677
      %v4712 = vunpack.c.l.b16 %v4678
      %v4713 = vpack.c.b16 %v4698, %v4697
      %v4714 = vpack.c.b16 %v4700, %v4699
      %v4715 = vpack.c.b16 %v4702, %v4701
      %v4716 = vpack.c.b16 %v4704, %v4703
      %v4717 = vpack.c.b16 %v4706, %v4705
      %v4718 = vpack.c.b16 %v4708, %v4707
      %v4719 = vpack.c.b16 %v4710, %v4709
      %v4720 = vpack.c.b16 %v4712, %v4711
      %4729 = vmatprep.subr.bf16.mxu0 0
      %4730 = vmatpush1.bf16.msra.mxu0 %v4713
      %4731 = vmatprep.subr.bf16.mxu0 0
      %4732 = vmatpush1.bf16.msra.mxu0 %v4714
      %4733 = vmatprep.subr.bf16.mxu0 0
      %4734 = vmatpush1.bf16.msra.mxu0 %v4715
      %4735 = vmatprep.subr.bf16.mxu0 0
      %4736 = vmatpush1.bf16.msra.mxu0 %v4716
      %4737 = vmatprep.subr.bf16.mxu0 0
      %4738 = vmatpush1.bf16.msra.mxu0 %v4717
      %4739 = vmatprep.subr.bf16.mxu0 0
      %4740 = vmatpush1.bf16.msra.mxu0 %v4718
      %4741 = vmatprep.subr.bf16.mxu0 0
      %4742 = vmatpush1.bf16.msra.mxu0 %v4719
      %4743 = vmatprep.subr.bf16.mxu0 0
      %4744 = vmatpush1.bf16.msra.mxu0 %v4720
      %4745 = vmatprep.subr.bf16.mxu0 0
      %4746 = vmatpush1.bf16.msra.mxu0 0
      %4747 = vmatprep.subr.bf16.mxu0 0
      %4748 = vmatpush1.bf16.msra.mxu0 0
      %4749 = vmatprep.subr.bf16.mxu0 0
      %4750 = vmatpush1.bf16.msra.mxu0 0
      %4751 = vmatprep.subr.bf16.mxu0 0
      %4752 = vmatpush1.bf16.msra.mxu0 0
      %4753 = vmatprep.subr.bf16.mxu0 0
      %4754 = vmatpush1.bf16.msra.mxu0 0
      %4755 = vmatprep.subr.bf16.mxu0 0
      %4756 = vmatpush1.bf16.msra.mxu0 0
      %4757 = vmatprep.subr.bf16.mxu0 0
      %4758 = vmatpush1.bf16.msra.mxu0 0
      %4759 = vmatprep.subr.bf16.mxu0 0
      %4760 = vmatpush1.bf16.msra.mxu0 0
      %4761 = vmatprep.mubr.bf16.mxu0 0
      %4762 = vmatmul.mubr.bf16.gmra.mrb[0].mxu0 %v4661
      %v4763 = vpop.f32.mrb[0].mxu0
      %v4764 = vadd.f32 %v4680, %v4763
      %v4765 = vpop.f32.mrb[0].mxu0
      %v4766 = vpop.f32.mrb[0].mxu0
      %v4767 = vpop.f32.mrb[0].mxu0
      %4768 = vdwg.mxu0
      %v4769 = vadd.f32 %v4764, 3.0
      %v4770 = vmax.f32 %v4769, 0.0
      %v4771 = vmin.f32 %v4770, 6.0
      %v4772 = vmul.f32 %v4771, 0.16666667
      %v4773 = vlaneseq
      %v4774 = vshrl.u32 %v4773, 7
      %v4775 = vsub.s32 0, %v4774
      %v4776 = vrot.slane %v4772, %v4775
      %v4777 = vmul.f32 %v4530, %v4776
      %v4778 = vmul.f32 %v4531, %v4776
      %v4779 = vmul.f32 %v4532, %v4776
      %v4780 = vmul.f32 %v4533, %v4776
      %v4781 = vmul.f32 %v4534, %v4776
      %v4782 = vmul.f32 %v4535, %v4776
      %v4783 = vmul.f32 %v4536, %v4776
      %v4784 = vmul.f32 %v4537, %v4776
      %v4785 = vpack.c.bf16 %v4778, %v4777
      %v4786 = vpack.c.bf16 %v4780, %v4779
      %v4787 = vpack.c.bf16 %v4782, %v4781
      %v4788 = vpack.c.bf16 %v4784, %v4783
      %s4789 = scalar_lea.vmem %s1, 576
      %v4790 = vld [vmem:[%s4789] sm:$0xf]
      %v4791 = vld [vmem:[%s4789 + $0x4] sm:$0xf]
      %v4792 = vld [vmem:[%s4789 + $0x8] sm:$0xf]
      %v4793 = vld [vmem:[%s4789 + $0xc] sm:$0xf]
      %v4794 = vld [vmem:[%s4789 + $0x10] sm:$0xf]
      %v4795 = vld [vmem:[%s4789 + $0x14] sm:$0xf]
      %v4796 = vld [vmem:[%s4789 + $0x18] sm:$0xf]
      %v4797 = vld [vmem:[%s4789 + $0x1c] sm:$0xf]
      %v4798 = vld [vmem:[%s4789 + $0x20] sm:$0xf]
      %v4799 = vld [vmem:[%s4789 + $0x24] sm:$0xf]
      %v4800 = vld [vmem:[%s4789 + $0x28] sm:$0xf]
      %v4801 = vld [vmem:[%s4789 + $0x2c] sm:$0xf]
      %v4802 = vld [vmem:[%s4789 + $0x30] sm:$0xf]
      %v4803 = vld [vmem:[%s4789 + $0x34] sm:$0xf]
      %v4804 = vld [vmem:[%s4789 + $0x38] sm:$0xf]
      %v4805 = vld [vmem:[%s4789 + $0x3c] sm:$0xf]
      %s4806 = scalar_lea.vmem %s2, 12
      %v4807 = vld [vmem:[%s4806] sm:$0x1]
      %v4809 = vlaneseq
      %v4810 = vshrl.u32 %v4809, 7
      %v4811 = vsub.s32 0, %v4810
      %v4812 = vrot.slane %v4807, %v4811
      %v4830 = vunpack.c.l.b16 %v4790
      %v4831 = vunpack.c.l.b16 %v4791
      %v4832 = vunpack.c.l.b16 %v4792
      %v4833 = vunpack.c.l.b16 %v4793
      %v4834 = vunpack.c.l.b16 %v4794
      %v4835 = vunpack.c.l.b16 %v4795
      %v4836 = vunpack.c.l.b16 %v4796
      %v4837 = vunpack.c.l.b16 %v4797
      %v4838 = vunpack.c.l.b16 %v4798
      %v4839 = vunpack.c.l.b16 %v4799
      %v4840 = vunpack.c.l.b16 %v4800
      %v4841 = vunpack.c.l.b16 %v4801
      %v4842 = vunpack.c.l.b16 %v4802
      %v4843 = vunpack.c.l.b16 %v4803
      %v4844 = vunpack.c.l.b16 %v4804
      %v4845 = vunpack.c.l.b16 %v4805
      %v4846 = vpack.c.b16 %v4831, %v4830
      %v4847 = vpack.c.b16 %v4833, %v4832
      %v4848 = vpack.c.b16 %v4835, %v4834
      %v4849 = vpack.c.b16 %v4837, %v4836
      %v4850 = vpack.c.b16 %v4839, %v4838
      %v4851 = vpack.c.b16 %v4841, %v4840
      %v4852 = vpack.c.b16 %v4843, %v4842
      %v4853 = vpack.c.b16 %v4845, %v4844
      %4862 = vmatprep.subr.bf16.mxu0 0
      %4863 = vmatpush1.bf16.msra.mxu0 %v4846
      %4864 = vmatprep.subr.bf16.mxu0 0
      %4865 = vmatpush1.bf16.msra.mxu0 %v4847
      %4866 = vmatprep.subr.bf16.mxu0 0
      %4867 = vmatpush1.bf16.msra.mxu0 %v4848
      %4868 = vmatprep.subr.bf16.mxu0 0
      %4869 = vmatpush1.bf16.msra.mxu0 %v4849
      %4870 = vmatprep.subr.bf16.mxu0 0
      %4871 = vmatpush1.bf16.msra.mxu0 %v4850
      %4872 = vmatprep.subr.bf16.mxu0 0
      %4873 = vmatpush1.bf16.msra.mxu0 %v4851
      %4874 = vmatprep.subr.bf16.mxu0 0
      %4875 = vmatpush1.bf16.msra.mxu0 %v4852
      %4876 = vmatprep.subr.bf16.mxu0 0
      %4877 = vmatpush1.bf16.msra.mxu0 %v4853
      %4878 = vmatprep.subr.bf16.mxu0 0
      %4879 = vmatpush1.bf16.msra.mxu0 0
      %4880 = vmatprep.subr.bf16.mxu0 0
      %4881 = vmatpush1.bf16.msra.mxu0 0
      %4882 = vmatprep.subr.bf16.mxu0 0
      %4883 = vmatpush1.bf16.msra.mxu0 0
      %4884 = vmatprep.subr.bf16.mxu0 0
      %4885 = vmatpush1.bf16.msra.mxu0 0
      %4886 = vmatprep.subr.bf16.mxu0 0
      %4887 = vmatpush1.bf16.msra.mxu0 0
      %4888 = vmatprep.subr.bf16.mxu0 0
      %4889 = vmatpush1.bf16.msra.mxu0 0
      %4890 = vmatprep.subr.bf16.mxu0 0
      %4891 = vmatpush1.bf16.msra.mxu0 0
      %4892 = vmatprep.subr.bf16.mxu0 0
      %4893 = vmatpush1.bf16.msra.mxu0 0
      %4894 = vmatprep.mubr.bf16.mxu0 0
      %4895 = vmatmul.mubr.bf16.gmra.mrb[0].mxu0 %v4785
      %v4896 = vpop.f32.mrb[0].mxu0
      %v4897 = vadd.f32 %v4812, %v4896
      %v4898 = vpop.f32.mrb[0].mxu0
      %v4899 = vpop.f32.mrb[0].mxu0
      %v4900 = vadd.f32 %v4812, %v4899
      %v4901 = vpop.f32.mrb[0].mxu0
      %4902 = vmatprep.mubr.bf16.mxu0 0
      %4903 = vmatmul.mubr.bf16.gmra.mrb[0].mxu0 %v4786
      %v4904 = vpop.f32.mrb[0].mxu0
      %v4905 = vadd.f32 %v4812, %v4904
      %v4906 = vpop.f32.mrb[0].mxu0
      %v4907 = vpop.f32.mrb[0].mxu0
      %v4908 = vadd.f32 %v4812, %v4907
      %v4909 = vpop.f32.mrb[0].mxu0
      %4910 = vmatprep.mubr.bf16.mxu0 0
      %4911 = vmatmul.mubr.bf16.gmra.mrb[0].mxu0 %v4787
      %v4912 = vpop.f32.mrb[0].mxu0
      %v4913 = vadd.f32 %v4812, %v4912
      %v4914 = vpop.f32.mrb[0].mxu0
      %v4915 = vpop.f32.mrb[0].mxu0
      %v4916 = vadd.f32 %v4812, %v4915
      %v4917 = vpop.f32.mrb[0].mxu0
      %4918 = vmatprep.mubr.bf16.mxu0 0
      %4919 = vmatmul.mubr.bf16.gmra.mrb[0].mxu0 %v4788
      %v4920 = vpop.f32.mrb[0].mxu0
      %v4921 = vadd.f32 %v4812, %v4920
      %v4922 = vpop.f32.mrb[0].mxu0
      %v4923 = vpop.f32.mrb[0].mxu0
      %v4924 = vadd.f32 %v4812, %v4923
      %v4925 = vpop.f32.mrb[0].mxu0
      %4926 = vdwg.mxu0
      %v4927 = vadd.f32 %v4897, %v3859
      %v4928 = vadd.f32 %v4900, %v3862
      %v4929 = vadd.f32 %v4905, %v3867
      %v4930 = vadd.f32 %v4908, %v3870
      %v4931 = vadd.f32 %v4913, %v3875
      %v4932 = vadd.f32 %v4916, %v3878
      %v4933 = vadd.f32 %v4921, %v3883
      %v4934 = vadd.f32 %v4924, %v3886
      %v4935 = vadd.f32 %v4927, %v4928
      %v4936 = vadd.f32 %v4935, %v4929
      %v4937 = vadd.f32 %v4936, %v4930
      %v4938 = vadd.f32 %v4937, %v4931
      %v4939 = vadd.f32 %v4938, %v4932
      %v4940 = vadd.f32 %v4939, %v4933
      %v4941 = vadd.f32 %v4940, %v4934
      %v4942 = vrot.slane %v4941, 4
      %v4943 = vadd.f32 %v4941, %v4942
      %v4944 = vrot.slane %v4943, 2
      %v4945 = vadd.f32 %v4943, %v4944
      %v4946 = vrot.slane %v4945, 1
      %v4947 = vadd.f32 %v4945, %v4946
      %v4948 = vmul.f32 %v4947, %v3512
      %v4949 = vpack.c.bf16 %v4948, %v4948
      %s4950 = scalar_lea.vmem %s1, 640
      %v4951 = vld [vmem:[%s4950] sm:$0xf]
      %v4952 = vld [vmem:[%s4950 + $0x4] sm:$0xf]
      %v4953 = vld [vmem:[%s4950 + $0x8] sm:$0xf]
      %v4954 = vld [vmem:[%s4950 + $0xc] sm:$0xf]
      %v4955 = vld [vmem:[%s4950 + $0x10] sm:$0xf]
      %v4956 = vld [vmem:[%s4950 + $0x14] sm:$0xf]
      %v4957 = vld [vmem:[%s4950 + $0x18] sm:$0xf]
      %v4958 = vld [vmem:[%s4950 + $0x1c] sm:$0xf]
      %v4959 = vld [vmem:[%s4950 + $0x20] sm:$0xf]
      %v4960 = vld [vmem:[%s4950 + $0x24] sm:$0xf]
      %v4961 = vld [vmem:[%s4950 + $0x28] sm:$0xf]
      %v4962 = vld [vmem:[%s4950 + $0x2c] sm:$0xf]
      %v4963 = vld [vmem:[%s4950 + $0x30] sm:$0xf]
      %v4964 = vld [vmem:[%s4950 + $0x34] sm:$0xf]
      %v4965 = vld [vmem:[%s4950 + $0x38] sm:$0xf]
      %v4966 = vld [vmem:[%s4950 + $0x3c] sm:$0xf]
      %s4967 = scalar_lea.vmem %s2, 13
      %v4968 = vld [vmem:[%s4967] sm:$0x1]
      %v4985 = vunpack.c.l.b16 %v4951
      %v4986 = vunpack.c.l.b16 %v4952
      %v4987 = vunpack.c.l.b16 %v4953
      %v4988 = vunpack.c.l.b16 %v4954
      %v4989 = vunpack.c.l.b16 %v4955
      %v4990 = vunpack.c.l.b16 %v4956
      %v4991 = vunpack.c.l.b16 %v4957
      %v4992 = vunpack.c.l.b16 %v4958
      %v4993 = vunpack.c.l.b16 %v4959
      %v4994 = vunpack.c.l.b16 %v4960
      %v4995 = vunpack.c.l.b16 %v4961
      %v4996 = vunpack.c.l.b16 %v4962
      %v4997 = vunpack.c.l.b16 %v4963
      %v4998 = vunpack.c.l.b16 %v4964
      %v4999 = vunpack.c.l.b16 %v4965
      %v5000 = vunpack.c.l.b16 %v4966
      %v5001 = vpack.c.b16 %v4986, %v4985
      %v5002 = vpack.c.b16 %v4988, %v4987
      %v5003 = vpack.c.b16 %v4990, %v4989
      %v5004 = vpack.c.b16 %v4992, %v4991
      %v5005 = vpack.c.b16 %v4994, %v4993
      %v5006 = vpack.c.b16 %v4996, %v4995
      %v5007 = vpack.c.b16 %v4998, %v4997
      %v5008 = vpack.c.b16 %v5000, %v4999
      %5017 = vmatprep.subr.bf16.mxu0 0
      %5018 = vmatpush1.bf16.msra.mxu0 %v5001
      %5019 = vmatprep.subr.bf16.mxu0 0
      %5020 = vmatpush1.bf16.msra.mxu0 %v5002
      %5021 = vmatprep.subr.bf16.mxu0 0
      %5022 = vmatpush1.bf16.msra.mxu0 %v5003
      %5023 = vmatprep.subr.bf16.mxu0 0
      %5024 = vmatpush1.bf16.msra.mxu0 %v5004
      %5025 = vmatprep.subr.bf16.mxu0 0
      %5026 = vmatpush1.bf16.msra.mxu0 %v5005
      %5027 = vmatprep.subr.bf16.mxu0 0
      %5028 = vmatpush1.bf16.msra.mxu0 %v5006
      %5029 = vmatprep.subr.bf16.mxu0 0
      %5030 = vmatpush1.bf16.msra.mxu0 %v5007
      %5031 = vmatprep.subr.bf16.mxu0 0
      %5032 = vmatpush1.bf16.msra.mxu0 %v5008
      %5033 = vmatprep.subr.bf16.mxu0 0
      %5034 = vmatpush1.bf16.msra.mxu0 0
      %5035 = vmatprep.subr.bf16.mxu0 0
      %5036 = vmatpush1.bf16.msra.mxu0 0
      %5037 = vmatprep.subr.bf16.mxu0 0
      %5038 = vmatpush1.bf16.msra.mxu0 0
      %5039 = vmatprep.subr.bf16.mxu0 0
      %5040 = vmatpush1.bf16.msra.mxu0 0
      %5041 = vmatprep.subr.bf16.mxu0 0
      %5042 = vmatpush1.bf16.msra.mxu0 0
      %5043 = vmatprep.subr.bf16.mxu0 0
      %5044 = vmatpush1.bf16.msra.mxu0 0
      %5045 = vmatprep.subr.bf16.mxu0 0
      %5046 = vmatpush1.bf16.msra.mxu0 0
      %5047 = vmatprep.subr.bf16.mxu0 0
      %5048 = vmatpush1.bf16.msra.mxu0 0
      %5049 = vmatprep.mubr.bf16.mxu0 0
      %5050 = vmatmul.mubr.bf16.gmra.mrb[0].mxu0 %v4949
      %v5051 = vpop.f32.mrb[0].mxu0
      %v5052 = vadd.f32 %v4968, %v5051
      %v5053 = vpop.f32.mrb[0].mxu0
      %v5054 = vpop.f32.mrb[0].mxu0
      %v5055 = vpop.f32.mrb[0].mxu0
      %5056 = vdwg.mxu0
      %v5057 = vadd.f32 %v5052, 3.0
      %v5058 = vmax.f32 %v5057, 0.0
      %v5059 = vmin.f32 %v5058, 6.0
      %v5060 = vmul.f32 %v5052, %v5059
      %v5061 = vmul.f32 %v5060, 0.16666667
      %v5062 = vpack.c.bf16 %v5061, %v5061
      %s5063 = scalar_lea.vmem %s1, 704
      %v5064 = vld [vmem:[%s5063] sm:$0xf]
      %v5065 = vld [vmem:[%s5063 + $0x4] sm:$0xf]
      %v5066 = vld [vmem:[%s5063 + $0x8] sm:$0xf]
      %v5067 = vld [vmem:[%s5063 + $0xc] sm:$0xf]
      %v5068 = vld [vmem:[%s5063 + $0x10] sm:$0xf]
      %v5069 = vld [vmem:[%s5063 + $0x14] sm:$0xf]
      %v5070 = vld [vmem:[%s5063 + $0x18] sm:$0xf]
      %v5071 = vld [vmem:[%s5063 + $0x1c] sm:$0xf]
      %v5072 = vld [vmem:[%s5063 + $0x20] sm:$0xf]
      %v5073 = vld [vmem:[%s5063 + $0x24] sm:$0xf]
      %v5074 = vld [vmem:[%s5063 + $0x28] sm:$0xf]
      %v5075 = vld [vmem:[%s5063 + $0x2c] sm:$0xf]
      %v5076 = vld [vmem:[%s5063 + $0x30] sm:$0xf]
      %v5077 = vld [vmem:[%s5063 + $0x34] sm:$0xf]
      %v5078 = vld [vmem:[%s5063 + $0x38] sm:$0xf]
      %v5079 = vld [vmem:[%s5063 + $0x3c] sm:$0xf]
      %s5080 = scalar_lea.vmem %s2, 14
      %v5081 = vld [vmem:[%s5080] sm:$0x1]
      %v5098 = vunpack.c.l.b16 %v5064
      %v5099 = vunpack.c.l.b16 %v5065
      %v5100 = vunpack.c.l.b16 %v5066
      %v5101 = vunpack.c.l.b16 %v5067
      %v5102 = vunpack.c.l.b16 %v5068
      %v5103 = vunpack.c.l.b16 %v5069
      %v5104 = vunpack.c.l.b16 %v5070
      %v5105 = vunpack.c.l.b16 %v5071
      %v5106 = vunpack.c.l.b16 %v5072
      %v5107 = vunpack.c.l.b16 %v5073
      %v5108 = vunpack.c.l.b16 %v5074
      %v5109 = vunpack.c.l.b16 %v5075
      %v5110 = vunpack.c.l.b16 %v5076
      %v5111 = vunpack.c.l.b16 %v5077
      %v5112 = vunpack.c.l.b16 %v5078
      %v5113 = vunpack.c.l.b16 %v5079
      %v5114 = vpack.c.b16 %v5099, %v5098
      %v5115 = vpack.c.b16 %v5101, %v5100
      %v5116 = vpack.c.b16 %v5103, %v5102
      %v5117 = vpack.c.b16 %v5105, %v5104
      %v5118 = vpack.c.b16 %v5107, %v5106
      %v5119 = vpack.c.b16 %v5109, %v5108
      %v5120 = vpack.c.b16 %v5111, %v5110
      %v5121 = vpack.c.b16 %v5113, %v5112
      %5130 = vmatprep.subr.bf16.mxu0 0
      %5131 = vmatpush1.bf16.msra.mxu0 %v5114
      %5132 = vmatprep.subr.bf16.mxu0 0
      %5133 = vmatpush1.bf16.msra.mxu0 %v5115
      %5134 = vmatprep.subr.bf16.mxu0 0
      %5135 = vmatpush1.bf16.msra.mxu0 %v5116
      %5136 = vmatprep.subr.bf16.mxu0 0
      %5137 = vmatpush1.bf16.msra.mxu0 %v5117
      %5138 = vmatprep.subr.bf16.mxu0 0
      %5139 = vmatpush1.bf16.msra.mxu0 %v5118
      %5140 = vmatprep.subr.bf16.mxu0 0
      %5141 = vmatpush1.bf16.msra.mxu0 %v5119
      %5142 = vmatprep.subr.bf16.mxu0 0
      %5143 = vmatpush1.bf16.msra.mxu0 %v5120
      %5144 = vmatprep.subr.bf16.mxu0 0
      %5145 = vmatpush1.bf16.msra.mxu0 %v5121
      %5146 = vmatprep.subr.bf16.mxu0 0
      %5147 = vmatpush1.bf16.msra.mxu0 0
      %5148 = vmatprep.subr.bf16.mxu0 0
      %5149 = vmatpush1.bf16.msra.mxu0 0
      %5150 = vmatprep.subr.bf16.mxu0 0
      %5151 = vmatpush1.bf16.msra.mxu0 0
      %5152 = vmatprep.subr.bf16.mxu0 0
      %5153 = vmatpush1.bf16.msra.mxu0 0
      %5154 = vmatprep.subr.bf16.mxu0 0
      %5155 = vmatpush1.bf16.msra.mxu0 0
      %5156 = vmatprep.subr.bf16.mxu0 0
      %5157 = vmatpush1.bf16.msra.mxu0 0
      %5158 = vmatprep.subr.bf16.mxu0 0
      %5159 = vmatpush1.bf16.msra.mxu0 0
      %5160 = vmatprep.subr.bf16.mxu0 0
      %5161 = vmatpush1.bf16.msra.mxu0 0
      %5162 = vmatprep.mubr.bf16.mxu0 0
      %5163 = vmatmul.mubr.bf16.gmra.mrb[0].mxu0 %v5062
      %v5164 = vpop.f32.mrb[0].mxu0
      %v5165 = vadd.f32 %v5081, %v5164
      %v5166 = vpop.f32.mrb[0].mxu0
      %v5167 = vpop.f32.mrb[0].mxu0
      %v5168 = vpop.f32.mrb[0].mxu0
      %5169 = vdwg.mxu0
      %v5170 = vlaneseq
      %v5171 = vshrl.u32 %v5170, 7
      %v5172 = vsub.s32 0, %v5171
      %v5173 = vrot.slane %v5165, %v5172
      %5174 = vst [vmem:[%s386] sm:$0xff] %v5173
      %p5175 = scmp.lt.s32.totalorder %s22, 1
      %s5176 = scalar_select %p5175, %s22, 1
      %s5177 = smul.addr %s5176, 8
      %s5178 = scalar_lea.vmem %s11, %s5177
      // Predicated region
      $region65: #{mobilenetv3_forward.1} parent=63 // pred_check
        %p5179 = pneg %p276
      $region66: #{mobilenetv3_forward.1} parent=63 // pred_check_branch
        %5181 = sbr.rel (%p5179) target = $region68
      $region67: #{mobilenetv3_forward.1} parent=63 // pred_region
        _
      $region68: #{mobilenetv3_forward.1} parent=63 // pred_fallthru
        _
    $region64: #{mobilenetv3_forward.1} parent=5 // pred_fallthru
      _
    %p5182 = scmp.le.s32.totalorder 2, %s17
    // Predicated region
    $region69: #{mobilenetv3_forward.1} parent=5 // pred_check
      %p5183 = pneg %p5182
    $region70: #{mobilenetv3_forward.1} parent=5 // pred_check_branch
      %5185 = sbr.rel (%p5183) target = $region72
    $region71: #{mobilenetv3_forward.1} parent=5 // pred_region
      %s5186 = ssub.s32 %s17, 2
      // Predicated region
      $region73: #{mobilenetv3_forward.1} parent=71 // pred_check
        %p5187 = pneg %p282
      $region74: #{mobilenetv3_forward.1} parent=71 // pred_check_branch
        %5189 = sbr.rel (%p5187) target = $region76
      $region75: #{mobilenetv3_forward.1} parent=71 // pred_region
        %p5190 = scmp.lt.s32.totalorder %s23, 1
        %s5191 = scalar_select %p5190, %s23, 1
        %s5192 = smul.addr %s5191, 8
        %s5193 = scalar_lea.vmem %s11, %s5192
      $region76: #{mobilenetv3_forward.1} parent=71 // pred_fallthru
        _
    $region72: #{mobilenetv3_forward.1} parent=5 // pred_fallthru
      _
  $region6: #{mobilenetv3_forward.1} parent=0 // loop_footer
    %s21 = sadd.s32 1, %s17
  $region7: #{mobilenetv3_forward.1} parent=0 // loop_footer_branch
    %16 = sbr.rel target = $region3
  $region8: #{mobilenetv3_forward.1} parent=0 // loop_exit
    _

</llo_original>
